<compile_context>
chip_gen: v6e
topology: v6e:2x2x1
jax: 0.10.0
libtpu: 0.0.40
codegen_flags: <defaults>
</compile_context>

<pallas_src>
import jax
import jax.numpy as jnp
import numpy as np
from jax import lax
from jax.experimental import pallas as pl
from jax.experimental.pallas import tpu as pltpu

VOCAB = 50
EMBED = 16
HIDDEN = 32
NUM_LAYERS = 2          # kernel below is specialized to 2 layers (matches the spec)
NUM_CLASSES = 10


# ---------------------------------------------------------------------------
# Fused Pallas kernel: embedding + 2 bidirectional LSTM layers + decoder
# ---------------------------------------------------------------------------
def _birnn_fused_kernel(tok_ref,                       # (T*B, 1) int32, time-major
                        emb_tbl_ref,                   # (VOCAB, E)
                        w0_ref, b0_ref,                # (E, 8H), (1, 8H)   fwd|bwd stacked
                        whh0f_ref, whh0b_ref,          # (H, 4H) each
                        w1_ref, b1_ref,                # (2H, 8H), (1, 8H)
                        whh1f_ref, whh1b_ref,          # (H, 4H) each
                        decw_ref, decb_ref,            # (4H, 10), (1, 10)
                        out_ref,                       # (B, 10)
                        seq_scr):                      # (T*B, 2H) layer-0 output scratch
    H = whh0f_ref.shape[0]
    B = out_ref.shape[0]
    TB = tok_ref.shape[0]
    T = TB // B
    V = emb_tbl_ref.shape[0]

    def cell(pre, h, c, w_hh):
        # pre: (B, 4H) precomputed x @ W_ih + b ; gate order i, f, g, o (PyTorch)
        gates = pre + jnp.dot(h, w_hh, preferred_element_type=jnp.float32)
        sg = jax.nn.sigmoid(gates)          # full 128-lane EUP op
        tg = jnp.tanh(gates)
        i_g = sg[:, 0 * H:1 * H]
        f_g = sg[:, 1 * H:2 * H]
        g_g = tg[:, 2 * H:3 * H]
        o_g = sg[:, 3 * H:4 * H]
        c_new = f_g * c + i_g * g_g
        h_new = o_g * jnp.tanh(c_new)
        return h_new, c_new

    zeros = jnp.zeros((B, H), jnp.float32)

    # ---- Embedding lookup: one-hot (T*B, V) @ table (V, E) on the MXU ----
    vocab_iota = lax.broadcasted_iota(jnp.int32, (TB, V), 1)
    onehot = (tok_ref[...] == vocab_iota).astype(jnp.float32)          # (T*B, V)
    emb = jnp.dot(onehot, emb_tbl_ref[...],
                  preferred_element_type=jnp.float32)                  # (T*B, E)

    # ---- Layer 0: hoisted input projection, both directions in one matmul ----
    proj0 = (jnp.dot(emb, w0_ref[...],
                     preferred_element_type=jnp.float32) + b0_ref[...])  # (T*B, 8H)
    whh0f = whh0f_ref[...]
    whh0b = whh0b_ref[...]
    h_f, c_f, h_b, c_b = zeros, zeros, zeros, zeros
    for s in range(T):                       # fully unrolled, static slices
        r = T - 1 - s                        # backward direction time index
        pre_f = proj0[s * B:(s + 1) * B, 0:4 * H]
        pre_b = proj0[r * B:(r + 1) * B, 4 * H:8 * H]
        h_f, c_f = cell(pre_f, h_f, c_f, whh0f)
        h_b, c_b = cell(pre_b, h_b, c_b, whh0b)
        seq_scr[s * B:(s + 1) * B, 0:H] = h_f
        seq_scr[r * B:(r + 1) * B, H:2 * H] = h_b

    # ---- Layer 1 ----
    proj1 = (jnp.dot(seq_scr[...], w1_ref[...],
                     preferred_element_type=jnp.float32) + b1_ref[...])  # (T*B, 8H)
    whh1f = whh1f_ref[...]
    whh1b = whh1b_ref[...]
    h_f, c_f, h_b, c_b = zeros, zeros, zeros, zeros
    hf_t0 = zeros        # fwd output at t = 0
    hb_tlast = zeros     # bwd output at t = T-1
    for s in range(T):
        r = T - 1 - s
        pre_f = proj1[s * B:(s + 1) * B, 0:4 * H]
        pre_b = proj1[r * B:(r + 1) * B, 4 * H:8 * H]
        h_f, c_f = cell(pre_f, h_f, c_f, whh1f)
        h_b, c_b = cell(pre_b, h_b, c_b, whh1b)
        if s == 0:
            hf_t0 = h_f
            hb_tlast = h_b
    # after loop: h_f = fwd output at t=T-1, h_b = bwd output at t=0
    # encoding = cat(outputs[0], outputs[-1], dim=1)
    #          = [fwd@0, bwd@0, fwd@T-1, bwd@T-1]
    encoding = jnp.concatenate([hf_t0, h_b, h_f, hb_tlast], axis=1)      # (B, 4H)

    out_ref[...] = (jnp.dot(encoding, decw_ref[...],
                            preferred_element_type=jnp.float32) + decb_ref[...])


def _birnn_pallas(tok_flat, emb_tbl, w0, b0, whh0f, whh0b, w1, b1,
                  whh1f, whh1b, dec_w, dec_b, *, batch, seq):
    vmem = pl.BlockSpec(memory_space=pltpu.MemorySpace.VMEM)
    return pl.pallas_call(
        _birnn_fused_kernel,
        out_shape=jax.ShapeDtypeStruct((batch, NUM_CLASSES), jnp.float32),
        in_specs=[vmem] * 12,
        out_specs=vmem,
        scratch_shapes=[pltpu.VMEM((seq * batch, 2 * HIDDEN), jnp.float32)],
    )(tok_flat, emb_tbl, w0, b0, whh0f, whh0b, w1, b1, whh1f, whh1b,
      dec_w, dec_b)


# ---------------------------------------------------------------------------
# Parameter init (deterministic, synthetic)
# ---------------------------------------------------------------------------
def init_params(key):
    n_keys = 2 + NUM_LAYERS * 2 * 3 + 2
    keys = iter(jax.random.split(key, n_keys))
    scale = 0.1
    params = {
        "embedding": scale * jax.random.normal(next(keys), (VOCAB, EMBED),
                                               jnp.float32),
        "lstm": [],
    }
    for layer in range(NUM_LAYERS):
        in_size = EMBED if layer == 0 else 2 * HIDDEN
        layer_p = {}
        for direction in ("fwd", "bwd"):
            layer_p[direction] = {
                "w_ih": scale * jax.random.normal(next(keys),
                                                  (in_size, 4 * HIDDEN),
                                                  jnp.float32),
                "w_hh": scale * jax.random.normal(next(keys),
                                                  (HIDDEN, 4 * HIDDEN),
                                                  jnp.float32),
                # b_ih + b_hh folded into one bias (mathematically identical)
                "b": scale * jax.random.normal(next(keys), (1, 4 * HIDDEN),
                                               jnp.float32),
            }
        params["lstm"].append(layer_p)
    params["dec_w"] = scale * jax.random.normal(next(keys),
                                                (4 * HIDDEN, NUM_CLASSES),
                                                jnp.float32)
    params["dec_b"] = scale * jax.random.normal(next(keys), (1, NUM_CLASSES),
                                                jnp.float32)
    return params


# ---------------------------------------------------------------------------
# Forward pass (fully fused Pallas) and pure-JAX reference
# ---------------------------------------------------------------------------
@jax.jit
def birnn_forward(params, tokens):
    # tokens: (B, T) int32
    B, T = tokens.shape
    # Time-major flattened token ids; everything (incl. the embedding gather)
    # runs inside one Pallas call.
    tok_flat = tokens.T.reshape(T * B, 1).astype(jnp.int32)

    p0f, p0b = params["lstm"][0]["fwd"], params["lstm"][0]["bwd"]
    p1f, p1b = params["lstm"][1]["fwd"], params["lstm"][1]["bwd"]
    # Stack fwd|bwd input-projection weights/biases -> 8H = 256 lanes per matmul.
    w0 = jnp.concatenate([p0f["w_ih"], p0b["w_ih"]], axis=1)        # (E, 8H)
    b0 = jnp.concatenate([p0f["b"], p0b["b"]], axis=1)              # (1, 8H)
    w1 = jnp.concatenate([p1f["w_ih"], p1b["w_ih"]], axis=1)        # (2H, 8H)
    b1 = jnp.concatenate([p1f["b"], p1b["b"]], axis=1)              # (1, 8H)

    return _birnn_pallas(tok_flat, params["embedding"],
                         w0, b0, p0f["w_hh"], p0b["w_hh"],
                         w1, b1, p1f["w_hh"], p1b["w_hh"],
                         params["dec_w"], params["dec_b"],
                         batch=B, seq=T)


def _ref_lstm_dir(x_seq, w_ih, w_hh, b):
    H = w_hh.shape[0]
    B = x_seq.shape[1]

    def step(carry, x_t):
        h, c = carry
        gates = x_t @ w_ih + h @ w_hh + b
        i_g = jax.nn.sigmoid(gates[:, :H])
        f_g = jax.nn.sigmoid(gates[:, H:2 * H])
        g_g = jnp.tanh(gates[:, 2 * H:3 * H])
        o_g = jax.nn.sigmoid(gates[:, 3 * H:])
        c = f_g * c + i_g * g_g
        h = o_g * jnp.tanh(c)
        return (h, c), h

    init = (jnp.zeros((B, H), jnp.float32), jnp.zeros((B, H), jnp.float32))
    _, out = lax.scan(step, init, x_seq)
    return out


def birnn_reference(params, tokens):
    emb = jnp.take(params["embedding"], tokens.T, axis=0)
    x = emb.astype(jnp.float32)
    for layer in range(NUM_LAYERS):
        pf = params["lstm"][layer]["fwd"]
        pb = params["lstm"][layer]["bwd"]
        out_f = _ref_lstm_dir(x, pf["w_ih"], pf["w_hh"], pf["b"])
        out_b = jnp.flip(
            _ref_lstm_dir(jnp.flip(x, axis=0), pb["w_ih"], pb["w_hh"], pb["b"]),
            axis=0)
        x = jnp.concatenate([out_f, out_b], axis=-1)
    encoding = jnp.concatenate([x[0], x[-1]], axis=1)
    return encoding @ params["dec_w"] + params["dec_b"]


# ---------------------------------------------------------------------------
if __name__ == "__main__":
    key = jax.random.PRNGKey(0)
    k_param, k_tok = jax.random.split(key)
    params = init_params(k_param)

    B, T = 2, 8
    tokens = jax.random.randint(k_tok, (B, T), 0, VOCAB, dtype=jnp.int32)

    out = jax.block_until_ready(birnn_forward(params, tokens))
    assert out.shape == (B, NUM_CLASSES) and out.dtype == jnp.float32

    ref = jax.block_until_ready(birnn_reference(params, tokens))
    np.testing.assert_allclose(np.asarray(out), np.asarray(ref),
                               atol=1e-2, rtol=1e-2)

    print("KERNEL_OK")
</pallas_src>

<mosaic_0001>
module attributes {stable_mosaic.version = 11 : i64} {
  func.func @_birnn_fused_kernel(%arg0: memref<16x1xi32, #tpu.memory_space<vmem>>, %arg1: memref<50x16xf32, #tpu.memory_space<vmem>>, %arg2: memref<16x256xf32, #tpu.memory_space<vmem>>, %arg3: memref<1x256xf32, #tpu.memory_space<vmem>>, %arg4: memref<32x128xf32, #tpu.memory_space<vmem>>, %arg5: memref<32x128xf32, #tpu.memory_space<vmem>>, %arg6: memref<64x256xf32, #tpu.memory_space<vmem>>, %arg7: memref<1x256xf32, #tpu.memory_space<vmem>>, %arg8: memref<32x128xf32, #tpu.memory_space<vmem>>, %arg9: memref<32x128xf32, #tpu.memory_space<vmem>>, %arg10: memref<128x10xf32, #tpu.memory_space<vmem>>, %arg11: memref<1x10xf32, #tpu.memory_space<vmem>>, %arg12: memref<2x10xf32, #tpu.memory_space<vmem>>, %arg13: memref<16x64xf32, #tpu.memory_space<vmem>>) attributes {dimension_semantics = [], scalar_prefetch = 0 : i64, scratch_operands = 1 : i64, tpu.core_type = #tpu.core_type<tc>} {
    %cst = arith.constant 0.000000e+00 : f32
    %0 = vector.broadcast %cst : f32 to vector<2x32xf32>
    %1 = tpu.iota {dimensions = array<i32: 1>} : vector<16x50xi32>
    %c0 = arith.constant 0 : index
    %c0_0 = arith.constant 0 : index
    %2 = vector.load %arg0[%c0, %c0_0] : memref<16x1xi32, #tpu.memory_space<vmem>>, vector<16x1xi32>
    %3 = vector.broadcast %2 : vector<16x1xi32> to vector<16x50xi32>
    %4 = arith.cmpi eq, %3, %1 : vector<16x50xi32>
    %5 = arith.extui %4 : vector<16x50xi1> to vector<16x50xi32>
    %6 = arith.sitofp %5 : vector<16x50xi32> to vector<16x50xf32>
    %c0_1 = arith.constant 0 : index
    %c0_2 = arith.constant 0 : index
    %7 = vector.load %arg1[%c0_1, %c0_2] : memref<50x16xf32, #tpu.memory_space<vmem>>, vector<50x16xf32>
    %cst_3 = arith.constant dense<0.000000e+00> : vector<16x16xf32>
    %8 = tpu.matmul %6, %7, %cst_3 {dimension_numbers = #tpu.dot_dimension_numbers<[1], [0], [0], [1], [0, 0, 1, 1], [], []>} : vector<16x50xf32>, vector<50x16xf32>, vector<16x16xf32> -> vector<16x16xf32>
    %c0_4 = arith.constant 0 : index
    %c0_5 = arith.constant 0 : index
    %9 = vector.load %arg2[%c0_4, %c0_5] : memref<16x256xf32, #tpu.memory_space<vmem>>, vector<16x256xf32>
    %cst_6 = arith.constant dense<0.000000e+00> : vector<16x256xf32>
    %10 = tpu.matmul %8, %9, %cst_6 {dimension_numbers = #tpu.dot_dimension_numbers<[1], [0], [0], [1], [0, 0, 1, 1], [], []>} : vector<16x16xf32>, vector<16x256xf32>, vector<16x256xf32> -> vector<16x256xf32>
    %c0_7 = arith.constant 0 : index
    %c0_8 = arith.constant 0 : index
    %11 = vector.load %arg3[%c0_7, %c0_8] : memref<1x256xf32, #tpu.memory_space<vmem>>, vector<1x256xf32>
    %12 = vector.broadcast %11 : vector<1x256xf32> to vector<16x256xf32>
    %13 = arith.addf %10, %12 : vector<16x256xf32>
    %c0_9 = arith.constant 0 : index
    %c0_10 = arith.constant 0 : index
    %14 = vector.load %arg4[%c0_9, %c0_10] : memref<32x128xf32, #tpu.memory_space<vmem>>, vector<32x128xf32>
    %c0_11 = arith.constant 0 : index
    %c0_12 = arith.constant 0 : index
    %15 = vector.load %arg5[%c0_11, %c0_12] : memref<32x128xf32, #tpu.memory_space<vmem>>, vector<32x128xf32>
    %16 = vector.extract_strided_slice %13 {offsets = [0, 0], sizes = [2, 128], strides = [1, 1]} : vector<16x256xf32> to vector<2x128xf32>
    %17 = vector.extract_strided_slice %13 {offsets = [14, 128], sizes = [2, 128], strides = [1, 1]} : vector<16x256xf32> to vector<2x128xf32>
    %cst_13 = arith.constant dense<0.000000e+00> : vector<2x128xf32>
    %18 = tpu.matmul %0, %14, %cst_13 {dimension_numbers = #tpu.dot_dimension_numbers<[1], [0], [0], [1], [0, 0, 1, 1], [], []>} : vector<2x32xf32>, vector<32x128xf32>, vector<2x128xf32> -> vector<2x128xf32>
    %19 = arith.addf %16, %18 : vector<2x128xf32>
    %20 = arith.negf %19 : vector<2x128xf32>
    %21 = math.exp %20 : vector<2x128xf32>
    %cst_14 = arith.constant 1.000000e+00 : f32
    %22 = vector.broadcast %cst_14 : f32 to vector<2x128xf32>
    %23 = arith.addf %22, %21 : vector<2x128xf32>
    %24 = arith.divf %22, %23 : vector<2x128xf32>
    %25 = math.tanh %19 : vector<2x128xf32>
    %26 = vector.extract_strided_slice %24 {offsets = [0, 0], sizes = [2, 32], strides = [1, 1]} : vector<2x128xf32> to vector<2x32xf32>
    %27 = vector.extract_strided_slice %24 {offsets = [0, 32], sizes = [2, 32], strides = [1, 1]} : vector<2x128xf32> to vector<2x32xf32>
    %28 = vector.extract_strided_slice %25 {offsets = [0, 64], sizes = [2, 32], strides = [1, 1]} : vector<2x128xf32> to vector<2x32xf32>
    %29 = vector.extract_strided_slice %24 {offsets = [0, 96], sizes = [2, 32], strides = [1, 1]} : vector<2x128xf32> to vector<2x32xf32>
    %30 = arith.mulf %27, %0 : vector<2x32xf32>
    %31 = arith.mulf %26, %28 : vector<2x32xf32>
    %32 = arith.addf %30, %31 : vector<2x32xf32>
    %33 = math.tanh %32 : vector<2x32xf32>
    %34 = arith.mulf %29, %33 : vector<2x32xf32>
    %cst_15 = arith.constant dense<0.000000e+00> : vector<2x128xf32>
    %35 = tpu.matmul %0, %15, %cst_15 {dimension_numbers = #tpu.dot_dimension_numbers<[1], [0], [0], [1], [0, 0, 1, 1], [], []>} : vector<2x32xf32>, vector<32x128xf32>, vector<2x128xf32> -> vector<2x128xf32>
    %36 = arith.addf %17, %35 : vector<2x128xf32>
    %37 = arith.negf %36 : vector<2x128xf32>
    %38 = math.exp %37 : vector<2x128xf32>
    %cst_16 = arith.constant 1.000000e+00 : f32
    %39 = vector.broadcast %cst_16 : f32 to vector<2x128xf32>
    %40 = arith.addf %39, %38 : vector<2x128xf32>
    %41 = arith.divf %39, %40 : vector<2x128xf32>
    %42 = math.tanh %36 : vector<2x128xf32>
    %43 = vector.extract_strided_slice %41 {offsets = [0, 0], sizes = [2, 32], strides = [1, 1]} : vector<2x128xf32> to vector<2x32xf32>
    %44 = vector.extract_strided_slice %41 {offsets = [0, 32], sizes = [2, 32], strides = [1, 1]} : vector<2x128xf32> to vector<2x32xf32>
    %45 = vector.extract_strided_slice %42 {offsets = [0, 64], sizes = [2, 32], strides = [1, 1]} : vector<2x128xf32> to vector<2x32xf32>
    %46 = vector.extract_strided_slice %41 {offsets = [0, 96], sizes = [2, 32], strides = [1, 1]} : vector<2x128xf32> to vector<2x32xf32>
    %47 = arith.mulf %44, %0 : vector<2x32xf32>
    %48 = arith.mulf %43, %45 : vector<2x32xf32>
    %49 = arith.addf %47, %48 : vector<2x32xf32>
    %50 = math.tanh %49 : vector<2x32xf32>
    %51 = arith.mulf %46, %50 : vector<2x32xf32>
    %c0_17 = arith.constant 0 : index
    %c0_18 = arith.constant 0 : index
    %52 = vector.load %arg13[%c0_17, %c0_18] : memref<16x64xf32, #tpu.memory_space<vmem>>, vector<2x32xf32>
    tpu.vector_store %arg13[%c0_17, %c0_18], %34 {strides = array<i32>} : memref<16x64xf32, #tpu.memory_space<vmem>>, vector<2x32xf32>,
    %c14 = arith.constant 14 : index
    %c32 = arith.constant 32 : index
    %53 = vector.load %arg13[%c14, %c32] : memref<16x64xf32, #tpu.memory_space<vmem>>, vector<2x32xf32>
    tpu.vector_store %arg13[%c14, %c32], %51 {strides = array<i32>} : memref<16x64xf32, #tpu.memory_space<vmem>>, vector<2x32xf32>,
    %54 = vector.extract_strided_slice %13 {offsets = [2, 0], sizes = [2, 128], strides = [1, 1]} : vector<16x256xf32> to vector<2x128xf32>
    %55 = vector.extract_strided_slice %13 {offsets = [12, 128], sizes = [2, 128], strides = [1, 1]} : vector<16x256xf32> to vector<2x128xf32>
    %cst_19 = arith.constant dense<0.000000e+00> : vector<2x128xf32>
    %56 = tpu.matmul %34, %14, %cst_19 {dimension_numbers = #tpu.dot_dimension_numbers<[1], [0], [0], [1], [0, 0, 1, 1], [], []>} : vector<2x32xf32>, vector<32x128xf32>, vector<2x128xf32> -> vector<2x128xf32>
    %57 = arith.addf %54, %56 : vector<2x128xf32>
    %58 = arith.negf %57 : vector<2x128xf32>
    %59 = math.exp %58 : vector<2x128xf32>
    %cst_20 = arith.constant 1.000000e+00 : f32
    %60 = vector.broadcast %cst_20 : f32 to vector<2x128xf32>
    %61 = arith.addf %60, %59 : vector<2x128xf32>
    %62 = arith.divf %60, %61 : vector<2x128xf32>
    %63 = math.tanh %57 : vector<2x128xf32>
    %64 = vector.extract_strided_slice %62 {offsets = [0, 0], sizes = [2, 32], strides = [1, 1]} : vector<2x128xf32> to vector<2x32xf32>
    %65 = vector.extract_strided_slice %62 {offsets = [0, 32], sizes = [2, 32], strides = [1, 1]} : vector<2x128xf32> to vector<2x32xf32>
    %66 = vector.extract_strided_slice %63 {offsets = [0, 64], sizes = [2, 32], strides = [1, 1]} : vector<2x128xf32> to vector<2x32xf32>
    %67 = vector.extract_strided_slice %62 {offsets = [0, 96], sizes = [2, 32], strides = [1, 1]} : vector<2x128xf32> to vector<2x32xf32>
    %68 = arith.mulf %65, %32 : vector<2x32xf32>
    %69 = arith.mulf %64, %66 : vector<2x32xf32>
    %70 = arith.addf %68, %69 : vector<2x32xf32>
    %71 = math.tanh %70 : vector<2x32xf32>
    %72 = arith.mulf %67, %71 : vector<2x32xf32>
    %cst_21 = arith.constant dense<0.000000e+00> : vector<2x128xf32>
    %73 = tpu.matmul %51, %15, %cst_21 {dimension_numbers = #tpu.dot_dimension_numbers<[1], [0], [0], [1], [0, 0, 1, 1], [], []>} : vector<2x32xf32>, vector<32x128xf32>, vector<2x128xf32> -> vector<2x128xf32>
    %74 = arith.addf %55, %73 : vector<2x128xf32>
    %75 = arith.negf %74 : vector<2x128xf32>
    %76 = math.exp %75 : vector<2x128xf32>
    %cst_22 = arith.constant 1.000000e+00 : f32
    %77 = vector.broadcast %cst_22 : f32 to vector<2x128xf32>
    %78 = arith.addf %77, %76 : vector<2x128xf32>
    %79 = arith.divf %77, %78 : vector<2x128xf32>
    %80 = math.tanh %74 : vector<2x128xf32>
    %81 = vector.extract_strided_slice %79 {offsets = [0, 0], sizes = [2, 32], strides = [1, 1]} : vector<2x128xf32> to vector<2x32xf32>
    %82 = vector.extract_strided_slice %79 {offsets = [0, 32], sizes = [2, 32], strides = [1, 1]} : vector<2x128xf32> to vector<2x32xf32>
    %83 = vector.extract_strided_slice %80 {offsets = [0, 64], sizes = [2, 32], strides = [1, 1]} : vector<2x128xf32> to vector<2x32xf32>
    %84 = vector.extract_strided_slice %79 {offsets = [0, 96], sizes = [2, 32], strides = [1, 1]} : vector<2x128xf32> to vector<2x32xf32>
    %85 = arith.mulf %82, %49 : vector<2x32xf32>
    %86 = arith.mulf %81, %83 : vector<2x32xf32>
    %87 = arith.addf %85, %86 : vector<2x32xf32>
    %88 = math.tanh %87 : vector<2x32xf32>
    %89 = arith.mulf %84, %88 : vector<2x32xf32>
    %c2 = arith.constant 2 : index
    %c0_23 = arith.constant 0 : index
    %90 = vector.load %arg13[%c2, %c0_23] : memref<16x64xf32, #tpu.memory_space<vmem>>, vector<2x32xf32>
    tpu.vector_store %arg13[%c2, %c0_23], %72 {strides = array<i32>} : memref<16x64xf32, #tpu.memory_space<vmem>>, vector<2x32xf32>,
    %c12 = arith.constant 12 : index
    %c32_24 = arith.constant 32 : index
    %91 = vector.load %arg13[%c12, %c32_24] : memref<16x64xf32, #tpu.memory_space<vmem>>, vector<2x32xf32>
    tpu.vector_store %arg13[%c12, %c32_24], %89 {strides = array<i32>} : memref<16x64xf32, #tpu.memory_space<vmem>>, vector<2x32xf32>,
    %92 = vector.extract_strided_slice %13 {offsets = [4, 0], sizes = [2, 128], strides = [1, 1]} : vector<16x256xf32> to vector<2x128xf32>
    %93 = vector.extract_strided_slice %13 {offsets = [10, 128], sizes = [2, 128], strides = [1, 1]} : vector<16x256xf32> to vector<2x128xf32>
    %cst_25 = arith.constant dense<0.000000e+00> : vector<2x128xf32>
    %94 = tpu.matmul %72, %14, %cst_25 {dimension_numbers = #tpu.dot_dimension_numbers<[1], [0], [0], [1], [0, 0, 1, 1], [], []>} : vector<2x32xf32>, vector<32x128xf32>, vector<2x128xf32> -> vector<2x128xf32>
    %95 = arith.addf %92, %94 : vector<2x128xf32>
    %96 = arith.negf %95 : vector<2x128xf32>
    %97 = math.exp %96 : vector<2x128xf32>
    %cst_26 = arith.constant 1.000000e+00 : f32
    %98 = vector.broadcast %cst_26 : f32 to vector<2x128xf32>
    %99 = arith.addf %98, %97 : vector<2x128xf32>
    %100 = arith.divf %98, %99 : vector<2x128xf32>
    %101 = math.tanh %95 : vector<2x128xf32>
    %102 = vector.extract_strided_slice %100 {offsets = [0, 0], sizes = [2, 32], strides = [1, 1]} : vector<2x128xf32> to vector<2x32xf32>
    %103 = vector.extract_strided_slice %100 {offsets = [0, 32], sizes = [2, 32], strides = [1, 1]} : vector<2x128xf32> to vector<2x32xf32>
    %104 = vector.extract_strided_slice %101 {offsets = [0, 64], sizes = [2, 32], strides = [1, 1]} : vector<2x128xf32> to vector<2x32xf32>
    %105 = vector.extract_strided_slice %100 {offsets = [0, 96], sizes = [2, 32], strides = [1, 1]} : vector<2x128xf32> to vector<2x32xf32>
    %106 = arith.mulf %103, %70 : vector<2x32xf32>
    %107 = arith.mulf %102, %104 : vector<2x32xf32>
    %108 = arith.addf %106, %107 : vector<2x32xf32>
    %109 = math.tanh %108 : vector<2x32xf32>
    %110 = arith.mulf %105, %109 : vector<2x32xf32>
    %cst_27 = arith.constant dense<0.000000e+00> : vector<2x128xf32>
    %111 = tpu.matmul %89, %15, %cst_27 {dimension_numbers = #tpu.dot_dimension_numbers<[1], [0], [0], [1], [0, 0, 1, 1], [], []>} : vector<2x32xf32>, vector<32x128xf32>, vector<2x128xf32> -> vector<2x128xf32>
    %112 = arith.addf %93, %111 : vector<2x128xf32>
    %113 = arith.negf %112 : vector<2x128xf32>
    %114 = math.exp %113 : vector<2x128xf32>
    %cst_28 = arith.constant 1.000000e+00 : f32
    %115 = vector.broadcast %cst_28 : f32 to vector<2x128xf32>
    %116 = arith.addf %115, %114 : vector<2x128xf32>
    %117 = arith.divf %115, %116 : vector<2x128xf32>
    %118 = math.tanh %112 : vector<2x128xf32>
    %119 = vector.extract_strided_slice %117 {offsets = [0, 0], sizes = [2, 32], strides = [1, 1]} : vector<2x128xf32> to vector<2x32xf32>
    %120 = vector.extract_strided_slice %117 {offsets = [0, 32], sizes = [2, 32], strides = [1, 1]} : vector<2x128xf32> to vector<2x32xf32>
    %121 = vector.extract_strided_slice %118 {offsets = [0, 64], sizes = [2, 32], strides = [1, 1]} : vector<2x128xf32> to vector<2x32xf32>
    %122 = vector.extract_strided_slice %117 {offsets = [0, 96], sizes = [2, 32], strides = [1, 1]} : vector<2x128xf32> to vector<2x32xf32>
    %123 = arith.mulf %120, %87 : vector<2x32xf32>
    %124 = arith.mulf %119, %121 : vector<2x32xf32>
    %125 = arith.addf %123, %124 : vector<2x32xf32>
    %126 = math.tanh %125 : vector<2x32xf32>
    %127 = arith.mulf %122, %126 : vector<2x32xf32>
    %c4 = arith.constant 4 : index
    %c0_29 = arith.constant 0 : index
    %128 = vector.load %arg13[%c4, %c0_29] : memref<16x64xf32, #tpu.memory_space<vmem>>, vector<2x32xf32>
    tpu.vector_store %arg13[%c4, %c0_29], %110 {strides = array<i32>} : memref<16x64xf32, #tpu.memory_space<vmem>>, vector<2x32xf32>,
    %c10 = arith.constant 10 : index
    %c32_30 = arith.constant 32 : index
    %129 = vector.load %arg13[%c10, %c32_30] : memref<16x64xf32, #tpu.memory_space<vmem>>, vector<2x32xf32>
    tpu.vector_store %arg13[%c10, %c32_30], %127 {strides = array<i32>} : memref<16x64xf32, #tpu.memory_space<vmem>>, vector<2x32xf32>,
    %130 = vector.extract_strided_slice %13 {offsets = [6, 0], sizes = [2, 128], strides = [1, 1]} : vector<16x256xf32> to vector<2x128xf32>
    %131 = vector.extract_strided_slice %13 {offsets = [8, 128], sizes = [2, 128], strides = [1, 1]} : vector<16x256xf32> to vector<2x128xf32>
    %cst_31 = arith.constant dense<0.000000e+00> : vector<2x128xf32>
    %132 = tpu.matmul %110, %14, %cst_31 {dimension_numbers = #tpu.dot_dimension_numbers<[1], [0], [0], [1], [0, 0, 1, 1], [], []>} : vector<2x32xf32>, vector<32x128xf32>, vector<2x128xf32> -> vector<2x128xf32>
    %133 = arith.addf %130, %132 : vector<2x128xf32>
    %134 = arith.negf %133 : vector<2x128xf32>
    %135 = math.exp %134 : vector<2x128xf32>
    %cst_32 = arith.constant 1.000000e+00 : f32
    %136 = vector.broadcast %cst_32 : f32 to vector<2x128xf32>
    %137 = arith.addf %136, %135 : vector<2x128xf32>
    %138 = arith.divf %136, %137 : vector<2x128xf32>
    %139 = math.tanh %133 : vector<2x128xf32>
    %140 = vector.extract_strided_slice %138 {offsets = [0, 0], sizes = [2, 32], strides = [1, 1]} : vector<2x128xf32> to vector<2x32xf32>
    %141 = vector.extract_strided_slice %138 {offsets = [0, 32], sizes = [2, 32], strides = [1, 1]} : vector<2x128xf32> to vector<2x32xf32>
    %142 = vector.extract_strided_slice %139 {offsets = [0, 64], sizes = [2, 32], strides = [1, 1]} : vector<2x128xf32> to vector<2x32xf32>
    %143 = vector.extract_strided_slice %138 {offsets = [0, 96], sizes = [2, 32], strides = [1, 1]} : vector<2x128xf32> to vector<2x32xf32>
    %144 = arith.mulf %141, %108 : vector<2x32xf32>
    %145 = arith.mulf %140, %142 : vector<2x32xf32>
    %146 = arith.addf %144, %145 : vector<2x32xf32>
    %147 = math.tanh %146 : vector<2x32xf32>
    %148 = arith.mulf %143, %147 : vector<2x32xf32>
    %cst_33 = arith.constant dense<0.000000e+00> : vector<2x128xf32>
    %149 = tpu.matmul %127, %15, %cst_33 {dimension_numbers = #tpu.dot_dimension_numbers<[1], [0], [0], [1], [0, 0, 1, 1], [], []>} : vector<2x32xf32>, vector<32x128xf32>, vector<2x128xf32> -> vector<2x128xf32>
    %150 = arith.addf %131, %149 : vector<2x128xf32>
    %151 = arith.negf %150 : vector<2x128xf32>
    %152 = math.exp %151 : vector<2x128xf32>
    %cst_34 = arith.constant 1.000000e+00 : f32
    %153 = vector.broadcast %cst_34 : f32 to vector<2x128xf32>
    %154 = arith.addf %153, %152 : vector<2x128xf32>
    %155 = arith.divf %153, %154 : vector<2x128xf32>
    %156 = math.tanh %150 : vector<2x128xf32>
    %157 = vector.extract_strided_slice %155 {offsets = [0, 0], sizes = [2, 32], strides = [1, 1]} : vector<2x128xf32> to vector<2x32xf32>
    %158 = vector.extract_strided_slice %155 {offsets = [0, 32], sizes = [2, 32], strides = [1, 1]} : vector<2x128xf32> to vector<2x32xf32>
    %159 = vector.extract_strided_slice %156 {offsets = [0, 64], sizes = [2, 32], strides = [1, 1]} : vector<2x128xf32> to vector<2x32xf32>
    %160 = vector.extract_strided_slice %155 {offsets = [0, 96], sizes = [2, 32], strides = [1, 1]} : vector<2x128xf32> to vector<2x32xf32>
    %161 = arith.mulf %158, %125 : vector<2x32xf32>
    %162 = arith.mulf %157, %159 : vector<2x32xf32>
    %163 = arith.addf %161, %162 : vector<2x32xf32>
    %164 = math.tanh %163 : vector<2x32xf32>
    %165 = arith.mulf %160, %164 : vector<2x32xf32>
    %c6 = arith.constant 6 : index
    %c0_35 = arith.constant 0 : index
    %166 = vector.load %arg13[%c6, %c0_35] : memref<16x64xf32, #tpu.memory_space<vmem>>, vector<2x32xf32>
    tpu.vector_store %arg13[%c6, %c0_35], %148 {strides = array<i32>} : memref<16x64xf32, #tpu.memory_space<vmem>>, vector<2x32xf32>,
    %c8 = arith.constant 8 : index
    %c32_36 = arith.constant 32 : index
    %167 = vector.load %arg13[%c8, %c32_36] : memref<16x64xf32, #tpu.memory_space<vmem>>, vector<2x32xf32>
    tpu.vector_store %arg13[%c8, %c32_36], %165 {strides = array<i32>} : memref<16x64xf32, #tpu.memory_space<vmem>>, vector<2x32xf32>,
    %168 = vector.extract_strided_slice %13 {offsets = [8, 0], sizes = [2, 128], strides = [1, 1]} : vector<16x256xf32> to vector<2x128xf32>
    %169 = vector.extract_strided_slice %13 {offsets = [6, 128], sizes = [2, 128], strides = [1, 1]} : vector<16x256xf32> to vector<2x128xf32>
    %cst_37 = arith.constant dense<0.000000e+00> : vector<2x128xf32>
    %170 = tpu.matmul %148, %14, %cst_37 {dimension_numbers = #tpu.dot_dimension_numbers<[1], [0], [0], [1], [0, 0, 1, 1], [], []>} : vector<2x32xf32>, vector<32x128xf32>, vector<2x128xf32> -> vector<2x128xf32>
    %171 = arith.addf %168, %170 : vector<2x128xf32>
    %172 = arith.negf %171 : vector<2x128xf32>
    %173 = math.exp %172 : vector<2x128xf32>
    %cst_38 = arith.constant 1.000000e+00 : f32
    %174 = vector.broadcast %cst_38 : f32 to vector<2x128xf32>
    %175 = arith.addf %174, %173 : vector<2x128xf32>
    %176 = arith.divf %174, %175 : vector<2x128xf32>
    %177 = math.tanh %171 : vector<2x128xf32>
    %178 = vector.extract_strided_slice %176 {offsets = [0, 0], sizes = [2, 32], strides = [1, 1]} : vector<2x128xf32> to vector<2x32xf32>
    %179 = vector.extract_strided_slice %176 {offsets = [0, 32], sizes = [2, 32], strides = [1, 1]} : vector<2x128xf32> to vector<2x32xf32>
    %180 = vector.extract_strided_slice %177 {offsets = [0, 64], sizes = [2, 32], strides = [1, 1]} : vector<2x128xf32> to vector<2x32xf32>
    %181 = vector.extract_strided_slice %176 {offsets = [0, 96], sizes = [2, 32], strides = [1, 1]} : vector<2x128xf32> to vector<2x32xf32>
    %182 = arith.mulf %179, %146 : vector<2x32xf32>
    %183 = arith.mulf %178, %180 : vector<2x32xf32>
    %184 = arith.addf %182, %183 : vector<2x32xf32>
    %185 = math.tanh %184 : vector<2x32xf32>
    %186 = arith.mulf %181, %185 : vector<2x32xf32>
    %cst_39 = arith.constant dense<0.000000e+00> : vector<2x128xf32>
    %187 = tpu.matmul %165, %15, %cst_39 {dimension_numbers = #tpu.dot_dimension_numbers<[1], [0], [0], [1], [0, 0, 1, 1], [], []>} : vector<2x32xf32>, vector<32x128xf32>, vector<2x128xf32> -> vector<2x128xf32>
    %188 = arith.addf %169, %187 : vector<2x128xf32>
    %189 = arith.negf %188 : vector<2x128xf32>
    %190 = math.exp %189 : vector<2x128xf32>
    %cst_40 = arith.constant 1.000000e+00 : f32
    %191 = vector.broadcast %cst_40 : f32 to vector<2x128xf32>
    %192 = arith.addf %191, %190 : vector<2x128xf32>
    %193 = arith.divf %191, %192 : vector<2x128xf32>
    %194 = math.tanh %188 : vector<2x128xf32>
    %195 = vector.extract_strided_slice %193 {offsets = [0, 0], sizes = [2, 32], strides = [1, 1]} : vector<2x128xf32> to vector<2x32xf32>
    %196 = vector.extract_strided_slice %193 {offsets = [0, 32], sizes = [2, 32], strides = [1, 1]} : vector<2x128xf32> to vector<2x32xf32>
    %197 = vector.extract_strided_slice %194 {offsets = [0, 64], sizes = [2, 32], strides = [1, 1]} : vector<2x128xf32> to vector<2x32xf32>
    %198 = vector.extract_strided_slice %193 {offsets = [0, 96], sizes = [2, 32], strides = [1, 1]} : vector<2x128xf32> to vector<2x32xf32>
    %199 = arith.mulf %196, %163 : vector<2x32xf32>
    %200 = arith.mulf %195, %197 : vector<2x32xf32>
    %201 = arith.addf %199, %200 : vector<2x32xf32>
    %202 = math.tanh %201 : vector<2x32xf32>
    %203 = arith.mulf %198, %202 : vector<2x32xf32>
    %c8_41 = arith.constant 8 : index
    %c0_42 = arith.constant 0 : index
    %204 = vector.load %arg13[%c8_41, %c0_42] : memref<16x64xf32, #tpu.memory_space<vmem>>, vector<2x32xf32>
    tpu.vector_store %arg13[%c8_41, %c0_42], %186 {strides = array<i32>} : memref<16x64xf32, #tpu.memory_space<vmem>>, vector<2x32xf32>,
    %c6_43 = arith.constant 6 : index
    %c32_44 = arith.constant 32 : index
    %205 = vector.load %arg13[%c6_43, %c32_44] : memref<16x64xf32, #tpu.memory_space<vmem>>, vector<2x32xf32>
    tpu.vector_store %arg13[%c6_43, %c32_44], %203 {strides = array<i32>} : memref<16x64xf32, #tpu.memory_space<vmem>>, vector<2x32xf32>,
    %206 = vector.extract_strided_slice %13 {offsets = [10, 0], sizes = [2, 128], strides = [1, 1]} : vector<16x256xf32> to vector<2x128xf32>
    %207 = vector.extract_strided_slice %13 {offsets = [4, 128], sizes = [2, 128], strides = [1, 1]} : vector<16x256xf32> to vector<2x128xf32>
    %cst_45 = arith.constant dense<0.000000e+00> : vector<2x128xf32>
    %208 = tpu.matmul %186, %14, %cst_45 {dimension_numbers = #tpu.dot_dimension_numbers<[1], [0], [0], [1], [0, 0, 1, 1], [], []>} : vector<2x32xf32>, vector<32x128xf32>, vector<2x128xf32> -> vector<2x128xf32>
    %209 = arith.addf %206, %208 : vector<2x128xf32>
    %210 = arith.negf %209 : vector<2x128xf32>
    %211 = math.exp %210 : vector<2x128xf32>
    %cst_46 = arith.constant 1.000000e+00 : f32
    %212 = vector.broadcast %cst_46 : f32 to vector<2x128xf32>
    %213 = arith.addf %212, %211 : vector<2x128xf32>
    %214 = arith.divf %212, %213 : vector<2x128xf32>
    %215 = math.tanh %209 : vector<2x128xf32>
    %216 = vector.extract_strided_slice %214 {offsets = [0, 0], sizes = [2, 32], strides = [1, 1]} : vector<2x128xf32> to vector<2x32xf32>
    %217 = vector.extract_strided_slice %214 {offsets = [0, 32], sizes = [2, 32], strides = [1, 1]} : vector<2x128xf32> to vector<2x32xf32>
    %218 = vector.extract_strided_slice %215 {offsets = [0, 64], sizes = [2, 32], strides = [1, 1]} : vector<2x128xf32> to vector<2x32xf32>
    %219 = vector.extract_strided_slice %214 {offsets = [0, 96], sizes = [2, 32], strides = [1, 1]} : vector<2x128xf32> to vector<2x32xf32>
    %220 = arith.mulf %217, %184 : vector<2x32xf32>
    %221 = arith.mulf %216, %218 : vector<2x32xf32>
    %222 = arith.addf %220, %221 : vector<2x32xf32>
    %223 = math.tanh %222 : vector<2x32xf32>
    %224 = arith.mulf %219, %223 : vector<2x32xf32>
    %cst_47 = arith.constant dense<0.000000e+00> : vector<2x128xf32>
    %225 = tpu.matmul %203, %15, %cst_47 {dimension_numbers = #tpu.dot_dimension_numbers<[1], [0], [0], [1], [0, 0, 1, 1], [], []>} : vector<2x32xf32>, vector<32x128xf32>, vector<2x128xf32> -> vector<2x128xf32>
    %226 = arith.addf %207, %225 : vector<2x128xf32>
    %227 = arith.negf %226 : vector<2x128xf32>
    %228 = math.exp %227 : vector<2x128xf32>
    %cst_48 = arith.constant 1.000000e+00 : f32
    %229 = vector.broadcast %cst_48 : f32 to vector<2x128xf32>
    %230 = arith.addf %229, %228 : vector<2x128xf32>
    %231 = arith.divf %229, %230 : vector<2x128xf32>
    %232 = math.tanh %226 : vector<2x128xf32>
    %233 = vector.extract_strided_slice %231 {offsets = [0, 0], sizes = [2, 32], strides = [1, 1]} : vector<2x128xf32> to vector<2x32xf32>
    %234 = vector.extract_strided_slice %231 {offsets = [0, 32], sizes = [2, 32], strides = [1, 1]} : vector<2x128xf32> to vector<2x32xf32>
    %235 = vector.extract_strided_slice %232 {offsets = [0, 64], sizes = [2, 32], strides = [1, 1]} : vector<2x128xf32> to vector<2x32xf32>
    %236 = vector.extract_strided_slice %231 {offsets = [0, 96], sizes = [2, 32], strides = [1, 1]} : vector<2x128xf32> to vector<2x32xf32>
    %237 = arith.mulf %234, %201 : vector<2x32xf32>
    %238 = arith.mulf %233, %235 : vector<2x32xf32>
    %239 = arith.addf %237, %238 : vector<2x32xf32>
    %240 = math.tanh %239 : vector<2x32xf32>
    %241 = arith.mulf %236, %240 : vector<2x32xf32>
    %c10_49 = arith.constant 10 : index
    %c0_50 = arith.constant 0 : index
    %242 = vector.load %arg13[%c10_49, %c0_50] : memref<16x64xf32, #tpu.memory_space<vmem>>, vector<2x32xf32>
    tpu.vector_store %arg13[%c10_49, %c0_50], %224 {strides = array<i32>} : memref<16x64xf32, #tpu.memory_space<vmem>>, vector<2x32xf32>,
    %c4_51 = arith.constant 4 : index
    %c32_52 = arith.constant 32 : index
    %243 = vector.load %arg13[%c4_51, %c32_52] : memref<16x64xf32, #tpu.memory_space<vmem>>, vector<2x32xf32>
    tpu.vector_store %arg13[%c4_51, %c32_52], %241 {strides = array<i32>} : memref<16x64xf32, #tpu.memory_space<vmem>>, vector<2x32xf32>,
    %244 = vector.extract_strided_slice %13 {offsets = [12, 0], sizes = [2, 128], strides = [1, 1]} : vector<16x256xf32> to vector<2x128xf32>
    %245 = vector.extract_strided_slice %13 {offsets = [2, 128], sizes = [2, 128], strides = [1, 1]} : vector<16x256xf32> to vector<2x128xf32>
    %cst_53 = arith.constant dense<0.000000e+00> : vector<2x128xf32>
    %246 = tpu.matmul %224, %14, %cst_53 {dimension_numbers = #tpu.dot_dimension_numbers<[1], [0], [0], [1], [0, 0, 1, 1], [], []>} : vector<2x32xf32>, vector<32x128xf32>, vector<2x128xf32> -> vector<2x128xf32>
    %247 = arith.addf %244, %246 : vector<2x128xf32>
    %248 = arith.negf %247 : vector<2x128xf32>
    %249 = math.exp %248 : vector<2x128xf32>
    %cst_54 = arith.constant 1.000000e+00 : f32
    %250 = vector.broadcast %cst_54 : f32 to vector<2x128xf32>
    %251 = arith.addf %250, %249 : vector<2x128xf32>
    %252 = arith.divf %250, %251 : vector<2x128xf32>
    %253 = math.tanh %247 : vector<2x128xf32>
    %254 = vector.extract_strided_slice %252 {offsets = [0, 0], sizes = [2, 32], strides = [1, 1]} : vector<2x128xf32> to vector<2x32xf32>
    %255 = vector.extract_strided_slice %252 {offsets = [0, 32], sizes = [2, 32], strides = [1, 1]} : vector<2x128xf32> to vector<2x32xf32>
    %256 = vector.extract_strided_slice %253 {offsets = [0, 64], sizes = [2, 32], strides = [1, 1]} : vector<2x128xf32> to vector<2x32xf32>
    %257 = vector.extract_strided_slice %252 {offsets = [0, 96], sizes = [2, 32], strides = [1, 1]} : vector<2x128xf32> to vector<2x32xf32>
    %258 = arith.mulf %255, %222 : vector<2x32xf32>
    %259 = arith.mulf %254, %256 : vector<2x32xf32>
    %260 = arith.addf %258, %259 : vector<2x32xf32>
    %261 = math.tanh %260 : vector<2x32xf32>
    %262 = arith.mulf %257, %261 : vector<2x32xf32>
    %cst_55 = arith.constant dense<0.000000e+00> : vector<2x128xf32>
    %263 = tpu.matmul %241, %15, %cst_55 {dimension_numbers = #tpu.dot_dimension_numbers<[1], [0], [0], [1], [0, 0, 1, 1], [], []>} : vector<2x32xf32>, vector<32x128xf32>, vector<2x128xf32> -> vector<2x128xf32>
    %264 = arith.addf %245, %263 : vector<2x128xf32>
    %265 = arith.negf %264 : vector<2x128xf32>
    %266 = math.exp %265 : vector<2x128xf32>
    %cst_56 = arith.constant 1.000000e+00 : f32
    %267 = vector.broadcast %cst_56 : f32 to vector<2x128xf32>
    %268 = arith.addf %267, %266 : vector<2x128xf32>
    %269 = arith.divf %267, %268 : vector<2x128xf32>
    %270 = math.tanh %264 : vector<2x128xf32>
    %271 = vector.extract_strided_slice %269 {offsets = [0, 0], sizes = [2, 32], strides = [1, 1]} : vector<2x128xf32> to vector<2x32xf32>
    %272 = vector.extract_strided_slice %269 {offsets = [0, 32], sizes = [2, 32], strides = [1, 1]} : vector<2x128xf32> to vector<2x32xf32>
    %273 = vector.extract_strided_slice %270 {offsets = [0, 64], sizes = [2, 32], strides = [1, 1]} : vector<2x128xf32> to vector<2x32xf32>
    %274 = vector.extract_strided_slice %269 {offsets = [0, 96], sizes = [2, 32], strides = [1, 1]} : vector<2x128xf32> to vector<2x32xf32>
    %275 = arith.mulf %272, %239 : vector<2x32xf32>
    %276 = arith.mulf %271, %273 : vector<2x32xf32>
    %277 = arith.addf %275, %276 : vector<2x32xf32>
    %278 = math.tanh %277 : vector<2x32xf32>
    %279 = arith.mulf %274, %278 : vector<2x32xf32>
    %c12_57 = arith.constant 12 : index
    %c0_58 = arith.constant 0 : index
    %280 = vector.load %arg13[%c12_57, %c0_58] : memref<16x64xf32, #tpu.memory_space<vmem>>, vector<2x32xf32>
    tpu.vector_store %arg13[%c12_57, %c0_58], %262 {strides = array<i32>} : memref<16x64xf32, #tpu.memory_space<vmem>>, vector<2x32xf32>,
    %c2_59 = arith.constant 2 : index
    %c32_60 = arith.constant 32 : index
    %281 = vector.load %arg13[%c2_59, %c32_60] : memref<16x64xf32, #tpu.memory_space<vmem>>, vector<2x32xf32>
    tpu.vector_store %arg13[%c2_59, %c32_60], %279 {strides = array<i32>} : memref<16x64xf32, #tpu.memory_space<vmem>>, vector<2x32xf32>,
    %282 = vector.extract_strided_slice %13 {offsets = [14, 0], sizes = [2, 128], strides = [1, 1]} : vector<16x256xf32> to vector<2x128xf32>
    %283 = vector.extract_strided_slice %13 {offsets = [0, 128], sizes = [2, 128], strides = [1, 1]} : vector<16x256xf32> to vector<2x128xf32>
    %cst_61 = arith.constant dense<0.000000e+00> : vector<2x128xf32>
    %284 = tpu.matmul %262, %14, %cst_61 {dimension_numbers = #tpu.dot_dimension_numbers<[1], [0], [0], [1], [0, 0, 1, 1], [], []>} : vector<2x32xf32>, vector<32x128xf32>, vector<2x128xf32> -> vector<2x128xf32>
    %285 = arith.addf %282, %284 : vector<2x128xf32>
    %286 = arith.negf %285 : vector<2x128xf32>
    %287 = math.exp %286 : vector<2x128xf32>
    %cst_62 = arith.constant 1.000000e+00 : f32
    %288 = vector.broadcast %cst_62 : f32 to vector<2x128xf32>
    %289 = arith.addf %288, %287 : vector<2x128xf32>
    %290 = arith.divf %288, %289 : vector<2x128xf32>
    %291 = math.tanh %285 : vector<2x128xf32>
    %292 = vector.extract_strided_slice %290 {offsets = [0, 0], sizes = [2, 32], strides = [1, 1]} : vector<2x128xf32> to vector<2x32xf32>
    %293 = vector.extract_strided_slice %290 {offsets = [0, 32], sizes = [2, 32], strides = [1, 1]} : vector<2x128xf32> to vector<2x32xf32>
    %294 = vector.extract_strided_slice %291 {offsets = [0, 64], sizes = [2, 32], strides = [1, 1]} : vector<2x128xf32> to vector<2x32xf32>
    %295 = vector.extract_strided_slice %290 {offsets = [0, 96], sizes = [2, 32], strides = [1, 1]} : vector<2x128xf32> to vector<2x32xf32>
    %296 = arith.mulf %293, %260 : vector<2x32xf32>
    %297 = arith.mulf %292, %294 : vector<2x32xf32>
    %298 = arith.addf %296, %297 : vector<2x32xf32>
    %299 = math.tanh %298 : vector<2x32xf32>
    %300 = arith.mulf %295, %299 : vector<2x32xf32>
    %cst_63 = arith.constant dense<0.000000e+00> : vector<2x128xf32>
    %301 = tpu.matmul %279, %15, %cst_63 {dimension_numbers = #tpu.dot_dimension_numbers<[1], [0], [0], [1], [0, 0, 1, 1], [], []>} : vector<2x32xf32>, vector<32x128xf32>, vector<2x128xf32> -> vector<2x128xf32>
    %302 = arith.addf %283, %301 : vector<2x128xf32>
    %303 = arith.negf %302 : vector<2x128xf32>
    %304 = math.exp %303 : vector<2x128xf32>
    %cst_64 = arith.constant 1.000000e+00 : f32
    %305 = vector.broadcast %cst_64 : f32 to vector<2x128xf32>
    %306 = arith.addf %305, %304 : vector<2x128xf32>
    %307 = arith.divf %305, %306 : vector<2x128xf32>
    %308 = math.tanh %302 : vector<2x128xf32>
    %309 = vector.extract_strided_slice %307 {offsets = [0, 0], sizes = [2, 32], strides = [1, 1]} : vector<2x128xf32> to vector<2x32xf32>
    %310 = vector.extract_strided_slice %307 {offsets = [0, 32], sizes = [2, 32], strides = [1, 1]} : vector<2x128xf32> to vector<2x32xf32>
    %311 = vector.extract_strided_slice %308 {offsets = [0, 64], sizes = [2, 32], strides = [1, 1]} : vector<2x128xf32> to vector<2x32xf32>
    %312 = vector.extract_strided_slice %307 {offsets = [0, 96], sizes = [2, 32], strides = [1, 1]} : vector<2x128xf32> to vector<2x32xf32>
    %313 = arith.mulf %310, %277 : vector<2x32xf32>
    %314 = arith.mulf %309, %311 : vector<2x32xf32>
    %315 = arith.addf %313, %314 : vector<2x32xf32>
    %316 = math.tanh %315 : vector<2x32xf32>
    %317 = arith.mulf %312, %316 : vector<2x32xf32>
    %c14_65 = arith.constant 14 : index
    %c0_66 = arith.constant 0 : index
    %318 = vector.load %arg13[%c14_65, %c0_66] : memref<16x64xf32, #tpu.memory_space<vmem>>, vector<2x32xf32>
    tpu.vector_store %arg13[%c14_65, %c0_66], %300 {strides = array<i32>} : memref<16x64xf32, #tpu.memory_space<vmem>>, vector<2x32xf32>,
    %c0_67 = arith.constant 0 : index
    %c32_68 = arith.constant 32 : index
    %319 = vector.load %arg13[%c0_67, %c32_68] : memref<16x64xf32, #tpu.memory_space<vmem>>, vector<2x32xf32>
    tpu.vector_store %arg13[%c0_67, %c32_68], %317 {strides = array<i32>} : memref<16x64xf32, #tpu.memory_space<vmem>>, vector<2x32xf32>,
    %c0_69 = arith.constant 0 : index
    %c0_70 = arith.constant 0 : index
    %320 = vector.load %arg13[%c0_69, %c0_70] : memref<16x64xf32, #tpu.memory_space<vmem>>, vector<16x64xf32>
    %c0_71 = arith.constant 0 : index
    %c0_72 = arith.constant 0 : index
    %321 = vector.load %arg6[%c0_71, %c0_72] : memref<64x256xf32, #tpu.memory_space<vmem>>, vector<64x256xf32>
    %cst_73 = arith.constant dense<0.000000e+00> : vector<16x256xf32>
    %322 = tpu.matmul %320, %321, %cst_73 {dimension_numbers = #tpu.dot_dimension_numbers<[1], [0], [0], [1], [0, 0, 1, 1], [], []>} : vector<16x64xf32>, vector<64x256xf32>, vector<16x256xf32> -> vector<16x256xf32>
    %c0_74 = arith.constant 0 : index
    %c0_75 = arith.constant 0 : index
    %323 = vector.load %arg7[%c0_74, %c0_75] : memref<1x256xf32, #tpu.memory_space<vmem>>, vector<1x256xf32>
    %324 = vector.broadcast %323 : vector<1x256xf32> to vector<16x256xf32>
    %325 = arith.addf %322, %324 : vector<16x256xf32>
    %c0_76 = arith.constant 0 : index
    %c0_77 = arith.constant 0 : index
    %326 = vector.load %arg8[%c0_76, %c0_77] : memref<32x128xf32, #tpu.memory_space<vmem>>, vector<32x128xf32>
    %c0_78 = arith.constant 0 : index
    %c0_79 = arith.constant 0 : index
    %327 = vector.load %arg9[%c0_78, %c0_79] : memref<32x128xf32, #tpu.memory_space<vmem>>, vector<32x128xf32>
    %328 = vector.extract_strided_slice %325 {offsets = [0, 0], sizes = [2, 128], strides = [1, 1]} : vector<16x256xf32> to vector<2x128xf32>
    %329 = vector.extract_strided_slice %325 {offsets = [14, 128], sizes = [2, 128], strides = [1, 1]} : vector<16x256xf32> to vector<2x128xf32>
    %cst_80 = arith.constant dense<0.000000e+00> : vector<2x128xf32>
    %330 = tpu.matmul %0, %326, %cst_80 {dimension_numbers = #tpu.dot_dimension_numbers<[1], [0], [0], [1], [0, 0, 1, 1], [], []>} : vector<2x32xf32>, vector<32x128xf32>, vector<2x128xf32> -> vector<2x128xf32>
    %331 = arith.addf %328, %330 : vector<2x128xf32>
    %332 = arith.negf %331 : vector<2x128xf32>
    %333 = math.exp %332 : vector<2x128xf32>
    %cst_81 = arith.constant 1.000000e+00 : f32
    %334 = vector.broadcast %cst_81 : f32 to vector<2x128xf32>
    %335 = arith.addf %334, %333 : vector<2x128xf32>
    %336 = arith.divf %334, %335 : vector<2x128xf32>
    %337 = math.tanh %331 : vector<2x128xf32>
    %338 = vector.extract_strided_slice %336 {offsets = [0, 0], sizes = [2, 32], strides = [1, 1]} : vector<2x128xf32> to vector<2x32xf32>
    %339 = vector.extract_strided_slice %336 {offsets = [0, 32], sizes = [2, 32], strides = [1, 1]} : vector<2x128xf32> to vector<2x32xf32>
    %340 = vector.extract_strided_slice %337 {offsets = [0, 64], sizes = [2, 32], strides = [1, 1]} : vector<2x128xf32> to vector<2x32xf32>
    %341 = vector.extract_strided_slice %336 {offsets = [0, 96], sizes = [2, 32], strides = [1, 1]} : vector<2x128xf32> to vector<2x32xf32>
    %342 = arith.mulf %339, %0 : vector<2x32xf32>
    %343 = arith.mulf %338, %340 : vector<2x32xf32>
    %344 = arith.addf %342, %343 : vector<2x32xf32>
    %345 = math.tanh %344 : vector<2x32xf32>
    %346 = arith.mulf %341, %345 : vector<2x32xf32>
    %cst_82 = arith.constant dense<0.000000e+00> : vector<2x128xf32>
    %347 = tpu.matmul %0, %327, %cst_82 {dimension_numbers = #tpu.dot_dimension_numbers<[1], [0], [0], [1], [0, 0, 1, 1], [], []>} : vector<2x32xf32>, vector<32x128xf32>, vector<2x128xf32> -> vector<2x128xf32>
    %348 = arith.addf %329, %347 : vector<2x128xf32>
    %349 = arith.negf %348 : vector<2x128xf32>
    %350 = math.exp %349 : vector<2x128xf32>
    %cst_83 = arith.constant 1.000000e+00 : f32
    %351 = vector.broadcast %cst_83 : f32 to vector<2x128xf32>
    %352 = arith.addf %351, %350 : vector<2x128xf32>
    %353 = arith.divf %351, %352 : vector<2x128xf32>
    %354 = math.tanh %348 : vector<2x128xf32>
    %355 = vector.extract_strided_slice %353 {offsets = [0, 0], sizes = [2, 32], strides = [1, 1]} : vector<2x128xf32> to vector<2x32xf32>
    %356 = vector.extract_strided_slice %353 {offsets = [0, 32], sizes = [2, 32], strides = [1, 1]} : vector<2x128xf32> to vector<2x32xf32>
    %357 = vector.extract_strided_slice %354 {offsets = [0, 64], sizes = [2, 32], strides = [1, 1]} : vector<2x128xf32> to vector<2x32xf32>
    %358 = vector.extract_strided_slice %353 {offsets = [0, 96], sizes = [2, 32], strides = [1, 1]} : vector<2x128xf32> to vector<2x32xf32>
    %359 = arith.mulf %356, %0 : vector<2x32xf32>
    %360 = arith.mulf %355, %357 : vector<2x32xf32>
    %361 = arith.addf %359, %360 : vector<2x32xf32>
    %362 = math.tanh %361 : vector<2x32xf32>
    %363 = arith.mulf %358, %362 : vector<2x32xf32>
    %364 = vector.extract_strided_slice %325 {offsets = [2, 0], sizes = [2, 128], strides = [1, 1]} : vector<16x256xf32> to vector<2x128xf32>
    %365 = vector.extract_strided_slice %325 {offsets = [12, 128], sizes = [2, 128], strides = [1, 1]} : vector<16x256xf32> to vector<2x128xf32>
    %cst_84 = arith.constant dense<0.000000e+00> : vector<2x128xf32>
    %366 = tpu.matmul %346, %326, %cst_84 {dimension_numbers = #tpu.dot_dimension_numbers<[1], [0], [0], [1], [0, 0, 1, 1], [], []>} : vector<2x32xf32>, vector<32x128xf32>, vector<2x128xf32> -> vector<2x128xf32>
    %367 = arith.addf %364, %366 : vector<2x128xf32>
    %368 = arith.negf %367 : vector<2x128xf32>
    %369 = math.exp %368 : vector<2x128xf32>
    %cst_85 = arith.constant 1.000000e+00 : f32
    %370 = vector.broadcast %cst_85 : f32 to vector<2x128xf32>
    %371 = arith.addf %370, %369 : vector<2x128xf32>
    %372 = arith.divf %370, %371 : vector<2x128xf32>
    %373 = math.tanh %367 : vector<2x128xf32>
    %374 = vector.extract_strided_slice %372 {offsets = [0, 0], sizes = [2, 32], strides = [1, 1]} : vector<2x128xf32> to vector<2x32xf32>
    %375 = vector.extract_strided_slice %372 {offsets = [0, 32], sizes = [2, 32], strides = [1, 1]} : vector<2x128xf32> to vector<2x32xf32>
    %376 = vector.extract_strided_slice %373 {offsets = [0, 64], sizes = [2, 32], strides = [1, 1]} : vector<2x128xf32> to vector<2x32xf32>
    %377 = vector.extract_strided_slice %372 {offsets = [0, 96], sizes = [2, 32], strides = [1, 1]} : vector<2x128xf32> to vector<2x32xf32>
    %378 = arith.mulf %375, %344 : vector<2x32xf32>
    %379 = arith.mulf %374, %376 : vector<2x32xf32>
    %380 = arith.addf %378, %379 : vector<2x32xf32>
    %381 = math.tanh %380 : vector<2x32xf32>
    %382 = arith.mulf %377, %381 : vector<2x32xf32>
    %cst_86 = arith.constant dense<0.000000e+00> : vector<2x128xf32>
    %383 = tpu.matmul %363, %327, %cst_86 {dimension_numbers = #tpu.dot_dimension_numbers<[1], [0], [0], [1], [0, 0, 1, 1], [], []>} : vector<2x32xf32>, vector<32x128xf32>, vector<2x128xf32> -> vector<2x128xf32>
    %384 = arith.addf %365, %383 : vector<2x128xf32>
    %385 = arith.negf %384 : vector<2x128xf32>
    %386 = math.exp %385 : vector<2x128xf32>
    %cst_87 = arith.constant 1.000000e+00 : f32
    %387 = vector.broadcast %cst_87 : f32 to vector<2x128xf32>
    %388 = arith.addf %387, %386 : vector<2x128xf32>
    %389 = arith.divf %387, %388 : vector<2x128xf32>
    %390 = math.tanh %384 : vector<2x128xf32>
    %391 = vector.extract_strided_slice %389 {offsets = [0, 0], sizes = [2, 32], strides = [1, 1]} : vector<2x128xf32> to vector<2x32xf32>
    %392 = vector.extract_strided_slice %389 {offsets = [0, 32], sizes = [2, 32], strides = [1, 1]} : vector<2x128xf32> to vector<2x32xf32>
    %393 = vector.extract_strided_slice %390 {offsets = [0, 64], sizes = [2, 32], strides = [1, 1]} : vector<2x128xf32> to vector<2x32xf32>
    %394 = vector.extract_strided_slice %389 {offsets = [0, 96], sizes = [2, 32], strides = [1, 1]} : vector<2x128xf32> to vector<2x32xf32>
    %395 = arith.mulf %392, %361 : vector<2x32xf32>
    %396 = arith.mulf %391, %393 : vector<2x32xf32>
    %397 = arith.addf %395, %396 : vector<2x32xf32>
    %398 = math.tanh %397 : vector<2x32xf32>
    %399 = arith.mulf %394, %398 : vector<2x32xf32>
    %400 = vector.extract_strided_slice %325 {offsets = [4, 0], sizes = [2, 128], strides = [1, 1]} : vector<16x256xf32> to vector<2x128xf32>
    %401 = vector.extract_strided_slice %325 {offsets = [10, 128], sizes = [2, 128], strides = [1, 1]} : vector<16x256xf32> to vector<2x128xf32>
    %cst_88 = arith.constant dense<0.000000e+00> : vector<2x128xf32>
    %402 = tpu.matmul %382, %326, %cst_88 {dimension_numbers = #tpu.dot_dimension_numbers<[1], [0], [0], [1], [0, 0, 1, 1], [], []>} : vector<2x32xf32>, vector<32x128xf32>, vector<2x128xf32> -> vector<2x128xf32>
    %403 = arith.addf %400, %402 : vector<2x128xf32>
    %404 = arith.negf %403 : vector<2x128xf32>
    %405 = math.exp %404 : vector<2x128xf32>
    %cst_89 = arith.constant 1.000000e+00 : f32
    %406 = vector.broadcast %cst_89 : f32 to vector<2x128xf32>
    %407 = arith.addf %406, %405 : vector<2x128xf32>
    %408 = arith.divf %406, %407 : vector<2x128xf32>
    %409 = math.tanh %403 : vector<2x128xf32>
    %410 = vector.extract_strided_slice %408 {offsets = [0, 0], sizes = [2, 32], strides = [1, 1]} : vector<2x128xf32> to vector<2x32xf32>
    %411 = vector.extract_strided_slice %408 {offsets = [0, 32], sizes = [2, 32], strides = [1, 1]} : vector<2x128xf32> to vector<2x32xf32>
    %412 = vector.extract_strided_slice %409 {offsets = [0, 64], sizes = [2, 32], strides = [1, 1]} : vector<2x128xf32> to vector<2x32xf32>
    %413 = vector.extract_strided_slice %408 {offsets = [0, 96], sizes = [2, 32], strides = [1, 1]} : vector<2x128xf32> to vector<2x32xf32>
    %414 = arith.mulf %411, %380 : vector<2x32xf32>
    %415 = arith.mulf %410, %412 : vector<2x32xf32>
    %416 = arith.addf %414, %415 : vector<2x32xf32>
    %417 = math.tanh %416 : vector<2x32xf32>
    %418 = arith.mulf %413, %417 : vector<2x32xf32>
    %cst_90 = arith.constant dense<0.000000e+00> : vector<2x128xf32>
    %419 = tpu.matmul %399, %327, %cst_90 {dimension_numbers = #tpu.dot_dimension_numbers<[1], [0], [0], [1], [0, 0, 1, 1], [], []>} : vector<2x32xf32>, vector<32x128xf32>, vector<2x128xf32> -> vector<2x128xf32>
    %420 = arith.addf %401, %419 : vector<2x128xf32>
    %421 = arith.negf %420 : vector<2x128xf32>
    %422 = math.exp %421 : vector<2x128xf32>
    %cst_91 = arith.constant 1.000000e+00 : f32
    %423 = vector.broadcast %cst_91 : f32 to vector<2x128xf32>
    %424 = arith.addf %423, %422 : vector<2x128xf32>
    %425 = arith.divf %423, %424 : vector<2x128xf32>
    %426 = math.tanh %420 : vector<2x128xf32>
    %427 = vector.extract_strided_slice %425 {offsets = [0, 0], sizes = [2, 32], strides = [1, 1]} : vector<2x128xf32> to vector<2x32xf32>
    %428 = vector.extract_strided_slice %425 {offsets = [0, 32], sizes = [2, 32], strides = [1, 1]} : vector<2x128xf32> to vector<2x32xf32>
    %429 = vector.extract_strided_slice %426 {offsets = [0, 64], sizes = [2, 32], strides = [1, 1]} : vector<2x128xf32> to vector<2x32xf32>
    %430 = vector.extract_strided_slice %425 {offsets = [0, 96], sizes = [2, 32], strides = [1, 1]} : vector<2x128xf32> to vector<2x32xf32>
    %431 = arith.mulf %428, %397 : vector<2x32xf32>
    %432 = arith.mulf %427, %429 : vector<2x32xf32>
    %433 = arith.addf %431, %432 : vector<2x32xf32>
    %434 = math.tanh %433 : vector<2x32xf32>
    %435 = arith.mulf %430, %434 : vector<2x32xf32>
    %436 = vector.extract_strided_slice %325 {offsets = [6, 0], sizes = [2, 128], strides = [1, 1]} : vector<16x256xf32> to vector<2x128xf32>
    %437 = vector.extract_strided_slice %325 {offsets = [8, 128], sizes = [2, 128], strides = [1, 1]} : vector<16x256xf32> to vector<2x128xf32>
    %cst_92 = arith.constant dense<0.000000e+00> : vector<2x128xf32>
    %438 = tpu.matmul %418, %326, %cst_92 {dimension_numbers = #tpu.dot_dimension_numbers<[1], [0], [0], [1], [0, 0, 1, 1], [], []>} : vector<2x32xf32>, vector<32x128xf32>, vector<2x128xf32> -> vector<2x128xf32>
    %439 = arith.addf %436, %438 : vector<2x128xf32>
    %440 = arith.negf %439 : vector<2x128xf32>
    %441 = math.exp %440 : vector<2x128xf32>
    %cst_93 = arith.constant 1.000000e+00 : f32
    %442 = vector.broadcast %cst_93 : f32 to vector<2x128xf32>
    %443 = arith.addf %442, %441 : vector<2x128xf32>
    %444 = arith.divf %442, %443 : vector<2x128xf32>
    %445 = math.tanh %439 : vector<2x128xf32>
    %446 = vector.extract_strided_slice %444 {offsets = [0, 0], sizes = [2, 32], strides = [1, 1]} : vector<2x128xf32> to vector<2x32xf32>
    %447 = vector.extract_strided_slice %444 {offsets = [0, 32], sizes = [2, 32], strides = [1, 1]} : vector<2x128xf32> to vector<2x32xf32>
    %448 = vector.extract_strided_slice %445 {offsets = [0, 64], sizes = [2, 32], strides = [1, 1]} : vector<2x128xf32> to vector<2x32xf32>
    %449 = vector.extract_strided_slice %444 {offsets = [0, 96], sizes = [2, 32], strides = [1, 1]} : vector<2x128xf32> to vector<2x32xf32>
    %450 = arith.mulf %447, %416 : vector<2x32xf32>
    %451 = arith.mulf %446, %448 : vector<2x32xf32>
    %452 = arith.addf %450, %451 : vector<2x32xf32>
    %453 = math.tanh %452 : vector<2x32xf32>
    %454 = arith.mulf %449, %453 : vector<2x32xf32>
    %cst_94 = arith.constant dense<0.000000e+00> : vector<2x128xf32>
    %455 = tpu.matmul %435, %327, %cst_94 {dimension_numbers = #tpu.dot_dimension_numbers<[1], [0], [0], [1], [0, 0, 1, 1], [], []>} : vector<2x32xf32>, vector<32x128xf32>, vector<2x128xf32> -> vector<2x128xf32>
    %456 = arith.addf %437, %455 : vector<2x128xf32>
    %457 = arith.negf %456 : vector<2x128xf32>
    %458 = math.exp %457 : vector<2x128xf32>
    %cst_95 = arith.constant 1.000000e+00 : f32
    %459 = vector.broadcast %cst_95 : f32 to vector<2x128xf32>
    %460 = arith.addf %459, %458 : vector<2x128xf32>
    %461 = arith.divf %459, %460 : vector<2x128xf32>
    %462 = math.tanh %456 : vector<2x128xf32>
    %463 = vector.extract_strided_slice %461 {offsets = [0, 0], sizes = [2, 32], strides = [1, 1]} : vector<2x128xf32> to vector<2x32xf32>
    %464 = vector.extract_strided_slice %461 {offsets = [0, 32], sizes = [2, 32], strides = [1, 1]} : vector<2x128xf32> to vector<2x32xf32>
    %465 = vector.extract_strided_slice %462 {offsets = [0, 64], sizes = [2, 32], strides = [1, 1]} : vector<2x128xf32> to vector<2x32xf32>
    %466 = vector.extract_strided_slice %461 {offsets = [0, 96], sizes = [2, 32], strides = [1, 1]} : vector<2x128xf32> to vector<2x32xf32>
    %467 = arith.mulf %464, %433 : vector<2x32xf32>
    %468 = arith.mulf %463, %465 : vector<2x32xf32>
    %469 = arith.addf %467, %468 : vector<2x32xf32>
    %470 = math.tanh %469 : vector<2x32xf32>
    %471 = arith.mulf %466, %470 : vector<2x32xf32>
    %472 = vector.extract_strided_slice %325 {offsets = [8, 0], sizes = [2, 128], strides = [1, 1]} : vector<16x256xf32> to vector<2x128xf32>
    %473 = vector.extract_strided_slice %325 {offsets = [6, 128], sizes = [2, 128], strides = [1, 1]} : vector<16x256xf32> to vector<2x128xf32>
    %cst_96 = arith.constant dense<0.000000e+00> : vector<2x128xf32>
    %474 = tpu.matmul %454, %326, %cst_96 {dimension_numbers = #tpu.dot_dimension_numbers<[1], [0], [0], [1], [0, 0, 1, 1], [], []>} : vector<2x32xf32>, vector<32x128xf32>, vector<2x128xf32> -> vector<2x128xf32>
    %475 = arith.addf %472, %474 : vector<2x128xf32>
    %476 = arith.negf %475 : vector<2x128xf32>
    %477 = math.exp %476 : vector<2x128xf32>
    %cst_97 = arith.constant 1.000000e+00 : f32
    %478 = vector.broadcast %cst_97 : f32 to vector<2x128xf32>
    %479 = arith.addf %478, %477 : vector<2x128xf32>
    %480 = arith.divf %478, %479 : vector<2x128xf32>
    %481 = math.tanh %475 : vector<2x128xf32>
    %482 = vector.extract_strided_slice %480 {offsets = [0, 0], sizes = [2, 32], strides = [1, 1]} : vector<2x128xf32> to vector<2x32xf32>
    %483 = vector.extract_strided_slice %480 {offsets = [0, 32], sizes = [2, 32], strides = [1, 1]} : vector<2x128xf32> to vector<2x32xf32>
    %484 = vector.extract_strided_slice %481 {offsets = [0, 64], sizes = [2, 32], strides = [1, 1]} : vector<2x128xf32> to vector<2x32xf32>
    %485 = vector.extract_strided_slice %480 {offsets = [0, 96], sizes = [2, 32], strides = [1, 1]} : vector<2x128xf32> to vector<2x32xf32>
    %486 = arith.mulf %483, %452 : vector<2x32xf32>
    %487 = arith.mulf %482, %484 : vector<2x32xf32>
    %488 = arith.addf %486, %487 : vector<2x32xf32>
    %489 = math.tanh %488 : vector<2x32xf32>
    %490 = arith.mulf %485, %489 : vector<2x32xf32>
    %cst_98 = arith.constant dense<0.000000e+00> : vector<2x128xf32>
    %491 = tpu.matmul %471, %327, %cst_98 {dimension_numbers = #tpu.dot_dimension_numbers<[1], [0], [0], [1], [0, 0, 1, 1], [], []>} : vector<2x32xf32>, vector<32x128xf32>, vector<2x128xf32> -> vector<2x128xf32>
    %492 = arith.addf %473, %491 : vector<2x128xf32>
    %493 = arith.negf %492 : vector<2x128xf32>
    %494 = math.exp %493 : vector<2x128xf32>
    %cst_99 = arith.constant 1.000000e+00 : f32
    %495 = vector.broadcast %cst_99 : f32 to vector<2x128xf32>
    %496 = arith.addf %495, %494 : vector<2x128xf32>
    %497 = arith.divf %495, %496 : vector<2x128xf32>
    %498 = math.tanh %492 : vector<2x128xf32>
    %499 = vector.extract_strided_slice %497 {offsets = [0, 0], sizes = [2, 32], strides = [1, 1]} : vector<2x128xf32> to vector<2x32xf32>
    %500 = vector.extract_strided_slice %497 {offsets = [0, 32], sizes = [2, 32], strides = [1, 1]} : vector<2x128xf32> to vector<2x32xf32>
    %501 = vector.extract_strided_slice %498 {offsets = [0, 64], sizes = [2, 32], strides = [1, 1]} : vector<2x128xf32> to vector<2x32xf32>
    %502 = vector.extract_strided_slice %497 {offsets = [0, 96], sizes = [2, 32], strides = [1, 1]} : vector<2x128xf32> to vector<2x32xf32>
    %503 = arith.mulf %500, %469 : vector<2x32xf32>
    %504 = arith.mulf %499, %501 : vector<2x32xf32>
    %505 = arith.addf %503, %504 : vector<2x32xf32>
    %506 = math.tanh %505 : vector<2x32xf32>
    %507 = arith.mulf %502, %506 : vector<2x32xf32>
    %508 = vector.extract_strided_slice %325 {offsets = [10, 0], sizes = [2, 128], strides = [1, 1]} : vector<16x256xf32> to vector<2x128xf32>
    %509 = vector.extract_strided_slice %325 {offsets = [4, 128], sizes = [2, 128], strides = [1, 1]} : vector<16x256xf32> to vector<2x128xf32>
    %cst_100 = arith.constant dense<0.000000e+00> : vector<2x128xf32>
    %510 = tpu.matmul %490, %326, %cst_100 {dimension_numbers = #tpu.dot_dimension_numbers<[1], [0], [0], [1], [0, 0, 1, 1], [], []>} : vector<2x32xf32>, vector<32x128xf32>, vector<2x128xf32> -> vector<2x128xf32>
    %511 = arith.addf %508, %510 : vector<2x128xf32>
    %512 = arith.negf %511 : vector<2x128xf32>
    %513 = math.exp %512 : vector<2x128xf32>
    %cst_101 = arith.constant 1.000000e+00 : f32
    %514 = vector.broadcast %cst_101 : f32 to vector<2x128xf32>
    %515 = arith.addf %514, %513 : vector<2x128xf32>
    %516 = arith.divf %514, %515 : vector<2x128xf32>
    %517 = math.tanh %511 : vector<2x128xf32>
    %518 = vector.extract_strided_slice %516 {offsets = [0, 0], sizes = [2, 32], strides = [1, 1]} : vector<2x128xf32> to vector<2x32xf32>
    %519 = vector.extract_strided_slice %516 {offsets = [0, 32], sizes = [2, 32], strides = [1, 1]} : vector<2x128xf32> to vector<2x32xf32>
    %520 = vector.extract_strided_slice %517 {offsets = [0, 64], sizes = [2, 32], strides = [1, 1]} : vector<2x128xf32> to vector<2x32xf32>
    %521 = vector.extract_strided_slice %516 {offsets = [0, 96], sizes = [2, 32], strides = [1, 1]} : vector<2x128xf32> to vector<2x32xf32>
    %522 = arith.mulf %519, %488 : vector<2x32xf32>
    %523 = arith.mulf %518, %520 : vector<2x32xf32>
    %524 = arith.addf %522, %523 : vector<2x32xf32>
    %525 = math.tanh %524 : vector<2x32xf32>
    %526 = arith.mulf %521, %525 : vector<2x32xf32>
    %cst_102 = arith.constant dense<0.000000e+00> : vector<2x128xf32>
    %527 = tpu.matmul %507, %327, %cst_102 {dimension_numbers = #tpu.dot_dimension_numbers<[1], [0], [0], [1], [0, 0, 1, 1], [], []>} : vector<2x32xf32>, vector<32x128xf32>, vector<2x128xf32> -> vector<2x128xf32>
    %528 = arith.addf %509, %527 : vector<2x128xf32>
    %529 = arith.negf %528 : vector<2x128xf32>
    %530 = math.exp %529 : vector<2x128xf32>
    %cst_103 = arith.constant 1.000000e+00 : f32
    %531 = vector.broadcast %cst_103 : f32 to vector<2x128xf32>
    %532 = arith.addf %531, %530 : vector<2x128xf32>
    %533 = arith.divf %531, %532 : vector<2x128xf32>
    %534 = math.tanh %528 : vector<2x128xf32>
    %535 = vector.extract_strided_slice %533 {offsets = [0, 0], sizes = [2, 32], strides = [1, 1]} : vector<2x128xf32> to vector<2x32xf32>
    %536 = vector.extract_strided_slice %533 {offsets = [0, 32], sizes = [2, 32], strides = [1, 1]} : vector<2x128xf32> to vector<2x32xf32>
    %537 = vector.extract_strided_slice %534 {offsets = [0, 64], sizes = [2, 32], strides = [1, 1]} : vector<2x128xf32> to vector<2x32xf32>
    %538 = vector.extract_strided_slice %533 {offsets = [0, 96], sizes = [2, 32], strides = [1, 1]} : vector<2x128xf32> to vector<2x32xf32>
    %539 = arith.mulf %536, %505 : vector<2x32xf32>
    %540 = arith.mulf %535, %537 : vector<2x32xf32>
    %541 = arith.addf %539, %540 : vector<2x32xf32>
    %542 = math.tanh %541 : vector<2x32xf32>
    %543 = arith.mulf %538, %542 : vector<2x32xf32>
    %544 = vector.extract_strided_slice %325 {offsets = [12, 0], sizes = [2, 128], strides = [1, 1]} : vector<16x256xf32> to vector<2x128xf32>
    %545 = vector.extract_strided_slice %325 {offsets = [2, 128], sizes = [2, 128], strides = [1, 1]} : vector<16x256xf32> to vector<2x128xf32>
    %cst_104 = arith.constant dense<0.000000e+00> : vector<2x128xf32>
    %546 = tpu.matmul %526, %326, %cst_104 {dimension_numbers = #tpu.dot_dimension_numbers<[1], [0], [0], [1], [0, 0, 1, 1], [], []>} : vector<2x32xf32>, vector<32x128xf32>, vector<2x128xf32> -> vector<2x128xf32>
    %547 = arith.addf %544, %546 : vector<2x128xf32>
    %548 = arith.negf %547 : vector<2x128xf32>
    %549 = math.exp %548 : vector<2x128xf32>
    %cst_105 = arith.constant 1.000000e+00 : f32
    %550 = vector.broadcast %cst_105 : f32 to vector<2x128xf32>
    %551 = arith.addf %550, %549 : vector<2x128xf32>
    %552 = arith.divf %550, %551 : vector<2x128xf32>
    %553 = math.tanh %547 : vector<2x128xf32>
    %554 = vector.extract_strided_slice %552 {offsets = [0, 0], sizes = [2, 32], strides = [1, 1]} : vector<2x128xf32> to vector<2x32xf32>
    %555 = vector.extract_strided_slice %552 {offsets = [0, 32], sizes = [2, 32], strides = [1, 1]} : vector<2x128xf32> to vector<2x32xf32>
    %556 = vector.extract_strided_slice %553 {offsets = [0, 64], sizes = [2, 32], strides = [1, 1]} : vector<2x128xf32> to vector<2x32xf32>
    %557 = vector.extract_strided_slice %552 {offsets = [0, 96], sizes = [2, 32], strides = [1, 1]} : vector<2x128xf32> to vector<2x32xf32>
    %558 = arith.mulf %555, %524 : vector<2x32xf32>
    %559 = arith.mulf %554, %556 : vector<2x32xf32>
    %560 = arith.addf %558, %559 : vector<2x32xf32>
    %561 = math.tanh %560 : vector<2x32xf32>
    %562 = arith.mulf %557, %561 : vector<2x32xf32>
    %cst_106 = arith.constant dense<0.000000e+00> : vector<2x128xf32>
    %563 = tpu.matmul %543, %327, %cst_106 {dimension_numbers = #tpu.dot_dimension_numbers<[1], [0], [0], [1], [0, 0, 1, 1], [], []>} : vector<2x32xf32>, vector<32x128xf32>, vector<2x128xf32> -> vector<2x128xf32>
    %564 = arith.addf %545, %563 : vector<2x128xf32>
    %565 = arith.negf %564 : vector<2x128xf32>
    %566 = math.exp %565 : vector<2x128xf32>
    %cst_107 = arith.constant 1.000000e+00 : f32
    %567 = vector.broadcast %cst_107 : f32 to vector<2x128xf32>
    %568 = arith.addf %567, %566 : vector<2x128xf32>
    %569 = arith.divf %567, %568 : vector<2x128xf32>
    %570 = math.tanh %564 : vector<2x128xf32>
    %571 = vector.extract_strided_slice %569 {offsets = [0, 0], sizes = [2, 32], strides = [1, 1]} : vector<2x128xf32> to vector<2x32xf32>
    %572 = vector.extract_strided_slice %569 {offsets = [0, 32], sizes = [2, 32], strides = [1, 1]} : vector<2x128xf32> to vector<2x32xf32>
    %573 = vector.extract_strided_slice %570 {offsets = [0, 64], sizes = [2, 32], strides = [1, 1]} : vector<2x128xf32> to vector<2x32xf32>
    %574 = vector.extract_strided_slice %569 {offsets = [0, 96], sizes = [2, 32], strides = [1, 1]} : vector<2x128xf32> to vector<2x32xf32>
    %575 = arith.mulf %572, %541 : vector<2x32xf32>
    %576 = arith.mulf %571, %573 : vector<2x32xf32>
    %577 = arith.addf %575, %576 : vector<2x32xf32>
    %578 = math.tanh %577 : vector<2x32xf32>
    %579 = arith.mulf %574, %578 : vector<2x32xf32>
    %580 = vector.extract_strided_slice %325 {offsets = [14, 0], sizes = [2, 128], strides = [1, 1]} : vector<16x256xf32> to vector<2x128xf32>
    %581 = vector.extract_strided_slice %325 {offsets = [0, 128], sizes = [2, 128], strides = [1, 1]} : vector<16x256xf32> to vector<2x128xf32>
    %cst_108 = arith.constant dense<0.000000e+00> : vector<2x128xf32>
    %582 = tpu.matmul %562, %326, %cst_108 {dimension_numbers = #tpu.dot_dimension_numbers<[1], [0], [0], [1], [0, 0, 1, 1], [], []>} : vector<2x32xf32>, vector<32x128xf32>, vector<2x128xf32> -> vector<2x128xf32>
    %583 = arith.addf %580, %582 : vector<2x128xf32>
    %584 = arith.negf %583 : vector<2x128xf32>
    %585 = math.exp %584 : vector<2x128xf32>
    %cst_109 = arith.constant 1.000000e+00 : f32
    %586 = vector.broadcast %cst_109 : f32 to vector<2x128xf32>
    %587 = arith.addf %586, %585 : vector<2x128xf32>
    %588 = arith.divf %586, %587 : vector<2x128xf32>
    %589 = math.tanh %583 : vector<2x128xf32>
    %590 = vector.extract_strided_slice %588 {offsets = [0, 0], sizes = [2, 32], strides = [1, 1]} : vector<2x128xf32> to vector<2x32xf32>
    %591 = vector.extract_strided_slice %588 {offsets = [0, 32], sizes = [2, 32], strides = [1, 1]} : vector<2x128xf32> to vector<2x32xf32>
    %592 = vector.extract_strided_slice %589 {offsets = [0, 64], sizes = [2, 32], strides = [1, 1]} : vector<2x128xf32> to vector<2x32xf32>
    %593 = vector.extract_strided_slice %588 {offsets = [0, 96], sizes = [2, 32], strides = [1, 1]} : vector<2x128xf32> to vector<2x32xf32>
    %594 = arith.mulf %591, %560 : vector<2x32xf32>
    %595 = arith.mulf %590, %592 : vector<2x32xf32>
    %596 = arith.addf %594, %595 : vector<2x32xf32>
    %597 = math.tanh %596 : vector<2x32xf32>
    %598 = arith.mulf %593, %597 : vector<2x32xf32>
    %cst_110 = arith.constant dense<0.000000e+00> : vector<2x128xf32>
    %599 = tpu.matmul %579, %327, %cst_110 {dimension_numbers = #tpu.dot_dimension_numbers<[1], [0], [0], [1], [0, 0, 1, 1], [], []>} : vector<2x32xf32>, vector<32x128xf32>, vector<2x128xf32> -> vector<2x128xf32>
    %600 = arith.addf %581, %599 : vector<2x128xf32>
    %601 = arith.negf %600 : vector<2x128xf32>
    %602 = math.exp %601 : vector<2x128xf32>
    %cst_111 = arith.constant 1.000000e+00 : f32
    %603 = vector.broadcast %cst_111 : f32 to vector<2x128xf32>
    %604 = arith.addf %603, %602 : vector<2x128xf32>
    %605 = arith.divf %603, %604 : vector<2x128xf32>
    %606 = math.tanh %600 : vector<2x128xf32>
    %607 = vector.extract_strided_slice %605 {offsets = [0, 0], sizes = [2, 32], strides = [1, 1]} : vector<2x128xf32> to vector<2x32xf32>
    %608 = vector.extract_strided_slice %605 {offsets = [0, 32], sizes = [2, 32], strides = [1, 1]} : vector<2x128xf32> to vector<2x32xf32>
    %609 = vector.extract_strided_slice %606 {offsets = [0, 64], sizes = [2, 32], strides = [1, 1]} : vector<2x128xf32> to vector<2x32xf32>
    %610 = vector.extract_strided_slice %605 {offsets = [0, 96], sizes = [2, 32], strides = [1, 1]} : vector<2x128xf32> to vector<2x32xf32>
    %611 = arith.mulf %608, %577 : vector<2x32xf32>
    %612 = arith.mulf %607, %609 : vector<2x32xf32>
    %613 = arith.addf %611, %612 : vector<2x32xf32>
    %614 = math.tanh %613 : vector<2x32xf32>
    %615 = arith.mulf %610, %614 : vector<2x32xf32>
    %616 = tpu.concatenate %346, %615, %598, %363 in 1 : vector<2x32xf32>, vector<2x32xf32>, vector<2x32xf32>, vector<2x32xf32> -> vector<2x128xf32>
    %c0_112 = arith.constant 0 : index
    %c0_113 = arith.constant 0 : index
    %617 = vector.load %arg10[%c0_112, %c0_113] : memref<128x10xf32, #tpu.memory_space<vmem>>, vector<128x10xf32>
    %cst_114 = arith.constant dense<0.000000e+00> : vector<2x10xf32>
    %618 = tpu.matmul %616, %617, %cst_114 {dimension_numbers = #tpu.dot_dimension_numbers<[1], [0], [0], [1], [0, 0, 1, 1], [], []>} : vector<2x128xf32>, vector<128x10xf32>, vector<2x10xf32> -> vector<2x10xf32>
    %c0_115 = arith.constant 0 : index
    %c0_116 = arith.constant 0 : index
    %619 = vector.load %arg11[%c0_115, %c0_116] : memref<1x10xf32, #tpu.memory_space<vmem>>, vector<1x10xf32>
    %620 = vector.broadcast %619 : vector<1x10xf32> to vector<2x10xf32>
    %621 = arith.addf %618, %620 : vector<2x10xf32>
    %c0_117 = arith.constant 0 : index
    %c0_118 = arith.constant 0 : index
    %622 = vector.load %arg12[%c0_117, %c0_118] : memref<2x10xf32, #tpu.memory_space<vmem>>, vector<2x10xf32>
    tpu.vector_store %arg12[%c0_117, %c0_118], %621 {strides = array<i32>} : memref<2x10xf32, #tpu.memory_space<vmem>>, vector<2x10xf32>,
    return
  }
}

</mosaic_0001>

<llo_original>
// kernel: birnn_forward.1
$region0: #{birnn_forward.1}
  #allocation0 [shape = 'u32[]', space=smem, size = 0x4, offset = 0x4, fixed_abs, tag = 'smem constant byte address 0x4 - core index']
  #allocation1 [shape = 'u32[144,128]{1,0:T(1,128)}', space=vmem, size = 0x12000, scoped, tag = 'internal scratch']
  #allocation2 [shape = 'f32[16,64]{1,0:T(8,128)}', space=vmem, size = 0x2000, scoped, tag = 'scratch operand']
  %s0 = inlined_call_operand.vmem [shape: s32[16,1], index: 0, kind: input, shape index: {}]
  %s1 = inlined_call_operand.vmem [shape: f32[50,16], index: 1, kind: input, shape index: {}]
  %s2 = inlined_call_operand.vmem [shape: f32[16,256], index: 2, kind: input, shape index: {}]
  %s3 = inlined_call_operand.vmem [shape: f32[1,256], index: 3, kind: input, shape index: {}]
  %s4 = inlined_call_operand.vmem [shape: f32[32,128], index: 4, kind: input, shape index: {}]
  %s5 = inlined_call_operand.vmem [shape: f32[32,128], index: 5, kind: input, shape index: {}]
  %s6 = inlined_call_operand.vmem [shape: f32[64,256], index: 6, kind: input, shape index: {}]
  %s7 = inlined_call_operand.vmem [shape: f32[1,256], index: 7, kind: input, shape index: {}]
  %s8 = inlined_call_operand.vmem [shape: f32[32,128], index: 8, kind: input, shape index: {}]
  %s9 = inlined_call_operand.vmem [shape: f32[32,128], index: 9, kind: input, shape index: {}]
  %s10 = inlined_call_operand.vmem [shape: f32[128,10], index: 10, kind: input, shape index: {}]
  %s11 = inlined_call_operand.vmem [shape: f32[1,10], index: 11, kind: input, shape index: {}]
  %s12 = inlined_call_operand.hbm [shape: f32[2,10], index: 12, kind: output, shape index: {}]
  %s13 = sld [smem:[#allocation0]]
  $region58: #{birnn_forward.1} parent=0
    _
  %s15 = ssub.s32 1, %s13
  %s16 = scalar_select 0, %s15, %s13
  $region1: #{birnn_forward.1} parent=0
    #allocation3 [shape = 'u8[1024]{0}', space=vmem, size = 0x400, scoped, tag = 'output window, operand 0, single buffered']
    #allocation4 [shape = 's32[1]{0}', space=sflag, size = 0x4, scoped, tag = 'scoped memory for birnn_forward.1']
    %17 = vsyncpa [#allocation4], 0
    // Predicated region
    $region2: #{birnn_forward.1} parent=1 // pred_check
      _
    $region3: #{birnn_forward.1} parent=1 // pred_check_branch
      %19 = sbr.rel (0) target = $region5
    $region4: #{birnn_forward.1} parent=1 // pred_region
      _
    $region5: #{birnn_forward.1} parent=1 // pred_fallthru
      _
    // Predicated region
    $region6: #{birnn_forward.1} parent=1 // pred_check
      _
    $region7: #{birnn_forward.1} parent=1 // pred_check_branch
      %21 = sbr.rel (0) target = $region9
    $region8: #{birnn_forward.1} parent=1 // pred_region
      _
    $region9: #{birnn_forward.1} parent=1 // pred_fallthru
      _
    // Predicated region
    $region10: #{birnn_forward.1} parent=1 // pred_check
      _
    $region11: #{birnn_forward.1} parent=1 // pred_check_branch
      %23 = sbr.rel (0) target = $region13
    $region12: #{birnn_forward.1} parent=1 // pred_region
      _
    $region13: #{birnn_forward.1} parent=1 // pred_fallthru
      _
    // Predicated region
    $region14: #{birnn_forward.1} parent=1 // pred_check
      _
    $region15: #{birnn_forward.1} parent=1 // pred_check_branch
      %25 = sbr.rel (0) target = $region17
    $region16: #{birnn_forward.1} parent=1 // pred_region
      _
    $region17: #{birnn_forward.1} parent=1 // pred_fallthru
      _
    // Predicated region
    $region18: #{birnn_forward.1} parent=1 // pred_check
      _
    $region19: #{birnn_forward.1} parent=1 // pred_check_branch
      %27 = sbr.rel (0) target = $region21
    $region20: #{birnn_forward.1} parent=1 // pred_region
      _
    $region21: #{birnn_forward.1} parent=1 // pred_fallthru
      _
    // Predicated region
    $region22: #{birnn_forward.1} parent=1 // pred_check
      _
    $region23: #{birnn_forward.1} parent=1 // pred_check_branch
      %29 = sbr.rel (0) target = $region25
    $region24: #{birnn_forward.1} parent=1 // pred_region
      _
    $region25: #{birnn_forward.1} parent=1 // pred_fallthru
      _
    // Predicated region
    $region26: #{birnn_forward.1} parent=1 // pred_check
      _
    $region27: #{birnn_forward.1} parent=1 // pred_check_branch
      %31 = sbr.rel (0) target = $region29
    $region28: #{birnn_forward.1} parent=1 // pred_region
      _
    $region29: #{birnn_forward.1} parent=1 // pred_fallthru
      _
    // Predicated region
    $region30: #{birnn_forward.1} parent=1 // pred_check
      _
    $region31: #{birnn_forward.1} parent=1 // pred_check_branch
      %33 = sbr.rel (0) target = $region33
    $region32: #{birnn_forward.1} parent=1 // pred_region
      _
    $region33: #{birnn_forward.1} parent=1 // pred_fallthru
      _
    // Predicated region
    $region34: #{birnn_forward.1} parent=1 // pred_check
      _
    $region35: #{birnn_forward.1} parent=1 // pred_check_branch
      %35 = sbr.rel (0) target = $region37
    $region36: #{birnn_forward.1} parent=1 // pred_region
      _
    $region37: #{birnn_forward.1} parent=1 // pred_fallthru
      _
    // Predicated region
    $region38: #{birnn_forward.1} parent=1 // pred_check
      _
    $region39: #{birnn_forward.1} parent=1 // pred_check_branch
      %37 = sbr.rel (0) target = $region41
    $region40: #{birnn_forward.1} parent=1 // pred_region
      _
    $region41: #{birnn_forward.1} parent=1 // pred_fallthru
      _
    // Predicated region
    $region42: #{birnn_forward.1} parent=1 // pred_check
      _
    $region43: #{birnn_forward.1} parent=1 // pred_check_branch
      %39 = sbr.rel (0) target = $region45
    $region44: #{birnn_forward.1} parent=1 // pred_region
      _
    $region45: #{birnn_forward.1} parent=1 // pred_fallthru
      _
    // Predicated region
    $region46: #{birnn_forward.1} parent=1 // pred_check
      _
    $region47: #{birnn_forward.1} parent=1 // pred_check_branch
      %41 = sbr.rel (0) target = $region49
    $region48: #{birnn_forward.1} parent=1 // pred_region
      _
    $region49: #{birnn_forward.1} parent=1 // pred_fallthru
      _
    %v42 = vlaneseq
    %v43 = vand.u32 %v42, 127
    %v44 = vld [vmem:[%s0] sm:$0xff]
    %v45 = vld [vmem:[%s0 + $0x8] sm:$0xff]
    %46 = vset.pattern.permute.xlu0 0
    %47 = vperm.xlu0 %46, %v44
    %v48 = vpop.permute.xlu0 %47
    %49 = vset.pattern.permute.xlu0 0
    %50 = vperm.xlu0 %49, %v45
    %v51 = vpop.permute.xlu0 %50
    %vm52 = vcmp.eq.s32.totalorder %v48, %v43
    %vm53 = vcmp.eq.s32.totalorder %v51, %v43
    %v54 = vsel %vm52, 1, 0
    %v55 = vsel %vm53, 1, 0
    %v56 = vcvt.s32.f32 %v54
    %v57 = vcvt.s32.f32 %v55
    %v58 = vld [vmem:[%s1] sm:$0xff]
    %v59 = vld [vmem:[%s1 + $0x8] sm:$0xff]
    %v60 = vld [vmem:[%s1 + $0x10] sm:$0xff]
    %v61 = vld [vmem:[%s1 + $0x18] sm:$0xff]
    %v62 = vld [vmem:[%s1 + $0x20] sm:$0xff]
    %v63 = vld [vmem:[%s1 + $0x28] sm:$0xff]
    %v64 = vld [vmem:[%s1 + $0x30] sm:$0x3]
    %vm65 = vcmask 408576
    %v67 = vsel %vm65, %v56, 0
    %v70 = vsel %vm65, %v57, 0
    %vm72 = vcmask 1041408
    %v74 = vsel %vm72, %v64, 0
    %76 = vmatprep.subr.mxu0 0.0
    %77 = vmatpush1.msra.mxu0 0.0
    %78 = vmatprep.subr.mxu0 0.0
    %79 = vmatpush1.msra.mxu0 0.0
    %80 = vmatprep.subr.mxu0 0.0
    %81 = vmatpush1.msra.mxu0 0.0
    %82 = vmatprep.subr.mxu0 0.0
    %83 = vmatpush1.msra.mxu0 0.0
    %84 = vmatprep.subr.mxu0 0.0
    %85 = vmatpush1.msra.mxu0 0.0
    %86 = vmatprep.subr.mxu0 0.0
    %87 = vmatpush1.msra.mxu0 0.0
    %88 = vmatprep.subr.mxu0 0.0
    %89 = vmatpush1.msra.mxu0 0.0
    %90 = vmatprep.subr.mxu0 0.0
    %91 = vmatpush1.msra.mxu0 0.0
    %92 = vmatprep.subr.mxu0 0.0
    %93 = vmatpush1.msra.mxu0 0.0
    %94 = vmatprep.subr.mxu0 0.0
    %95 = vmatpush1.msra.mxu0 %v74
    %96 = vmatprep.subr.mxu0 0.0
    %97 = vmatpush1.msra.mxu0 %v63
    %98 = vmatprep.subr.mxu0 0.0
    %99 = vmatpush1.msra.mxu0 %v62
    %100 = vmatprep.subr.mxu0 0.0
    %101 = vmatpush1.msra.mxu0 %v61
    %102 = vmatprep.subr.mxu0 0.0
    %103 = vmatpush1.msra.mxu0 %v60
    %104 = vmatprep.subr.mxu0 0.0
    %105 = vmatpush1.msra.mxu0 %v59
    %106 = vmatprep.subr.mxu0 0.0
    %107 = vmatpush1.msra.mxu0 %v58
    %108 = vmatprep.subr.mxu0 0.0
    %109 = vmatpush2.msra.mxu0 0.0
    %110 = vmatprep.subr.mxu0 0.0
    %111 = vmatpush2.msra.mxu0 0.0
    %112 = vmatprep.subr.mxu0 0.0
    %113 = vmatpush2.msra.mxu0 0.0
    %114 = vmatprep.subr.mxu0 0.0
    %115 = vmatpush2.msra.mxu0 0.0
    %116 = vmatprep.subr.mxu0 0.0
    %117 = vmatpush2.msra.mxu0 0.0
    %118 = vmatprep.subr.mxu0 0.0
    %119 = vmatpush2.msra.mxu0 0.0
    %120 = vmatprep.subr.mxu0 0.0
    %121 = vmatpush2.msra.mxu0 0.0
    %122 = vmatprep.subr.mxu0 0.0
    %123 = vmatpush2.msra.mxu0 0.0
    %124 = vmatprep.subr.mxu0 0.0
    %125 = vmatpush2.msra.mxu0 0.0
    %126 = vmatprep.subr.mxu0 0.0
    %127 = vmatpush2.msra.mxu0 0.0
    %128 = vmatprep.subr.mxu0 0.0
    %129 = vmatpush2.msra.mxu0 0.0
    %130 = vmatprep.subr.mxu0 0.0
    %131 = vmatpush2.msra.mxu0 0.0
    %132 = vmatprep.subr.mxu0 0.0
    %133 = vmatpush2.msra.mxu0 0.0
    %134 = vmatprep.subr.mxu0 0.0
    %135 = vmatpush2.msra.mxu0 0.0
    %136 = vmatprep.subr.mxu0 0.0
    %137 = vmatpush2.msra.mxu0 0.0
    %138 = vmatprep.subr.mxu0 0.0
    %139 = vmatpush2.msra.mxu0 0.0
    %140 = vmatprep.mubr.f32.mxu0 0.0
    %141 = vmatmul.mubr.f32.gmra.mxu0 %v67
    %v142 = vpop.f32.mrf.mxu0
    %v143 = vadd.f32 0.0, %v142
    %v144 = vpop.f32.mrf.mxu0
    %145 = vmatprep.mubr.f32.mxu0 0.0
    %146 = vmatmul.mubr.f32.gmra.mxu0 %v70
    %v147 = vpop.f32.mrf.mxu0
    %v148 = vadd.f32 0.0, %v147
    %v149 = vpop.f32.mrf.mxu0
    %150 = vdwg.mxu0
    %v151 = vld [vmem:[%s2] sm:$0xff]
    %v152 = vld [vmem:[%s2 + $0x8] sm:$0xff]
    %v153 = vld [vmem:[%s2 + $0x10] sm:$0xff]
    %v154 = vld [vmem:[%s2 + $0x18] sm:$0xff]
    %v155 = vld [vmem:[%s3] sm:$0x3]
    %v157 = vlaneseq
    %v158 = vshrl.u32 %v157, 7
    %v159 = vsub.s32 0, %v158
    %v160 = vrot.slane %v155, %v159
    %v161 = vlaneseq
    %v162 = vshrl.u32 %v161, 7
    %v163 = vsub.s32 1, %v162
    %v164 = vrot.slane %v155, %v163
    %vm167 = vcmask 130048
    %v169 = vsel %vm167, %v143, 0
    %v172 = vsel %vm167, %v148, 0
    %174 = vmatprep.subr.mxu0 0.0
    %175 = vmatpush1.msra.mxu0 0.0
    %176 = vmatprep.subr.mxu0 0.0
    %177 = vmatpush1.msra.mxu0 0.0
    %178 = vmatprep.subr.mxu0 0.0
    %179 = vmatpush1.msra.mxu0 0.0
    %180 = vmatprep.subr.mxu0 0.0
    %181 = vmatpush1.msra.mxu0 0.0
    %182 = vmatprep.subr.mxu0 0.0
    %183 = vmatpush1.msra.mxu0 0.0
    %184 = vmatprep.subr.mxu0 0.0
    %185 = vmatpush1.msra.mxu0 0.0
    %186 = vmatprep.subr.mxu0 0.0
    %187 = vmatpush1.msra.mxu0 0.0
    %188 = vmatprep.subr.mxu0 0.0
    %189 = vmatpush1.msra.mxu0 0.0
    %190 = vmatprep.subr.mxu0 0.0
    %191 = vmatpush1.msra.mxu0 0.0
    %192 = vmatprep.subr.mxu0 0.0
    %193 = vmatpush1.msra.mxu0 0.0
    %194 = vmatprep.subr.mxu0 0.0
    %195 = vmatpush1.msra.mxu0 0.0
    %196 = vmatprep.subr.mxu0 0.0
    %197 = vmatpush1.msra.mxu0 0.0
    %198 = vmatprep.subr.mxu0 0.0
    %199 = vmatpush1.msra.mxu0 0.0
    %200 = vmatprep.subr.mxu0 0.0
    %201 = vmatpush1.msra.mxu0 0.0
    %202 = vmatprep.subr.mxu0 %v154
    %203 = vmatpush1.msra.mxu0 %v153
    %204 = vmatprep.subr.mxu0 %v152
    %205 = vmatpush1.msra.mxu0 %v151
    %206 = vmatprep.subr.mxu0 0.0
    %207 = vmatpush2.msra.mxu0 0.0
    %208 = vmatprep.subr.mxu0 0.0
    %209 = vmatpush2.msra.mxu0 0.0
    %210 = vmatprep.subr.mxu0 0.0
    %211 = vmatpush2.msra.mxu0 0.0
    %212 = vmatprep.subr.mxu0 0.0
    %213 = vmatpush2.msra.mxu0 0.0
    %214 = vmatprep.subr.mxu0 0.0
    %215 = vmatpush2.msra.mxu0 0.0
    %216 = vmatprep.subr.mxu0 0.0
    %217 = vmatpush2.msra.mxu0 0.0
    %218 = vmatprep.subr.mxu0 0.0
    %219 = vmatpush2.msra.mxu0 0.0
    %220 = vmatprep.subr.mxu0 0.0
    %221 = vmatpush2.msra.mxu0 0.0
    %222 = vmatprep.subr.mxu0 0.0
    %223 = vmatpush2.msra.mxu0 0.0
    %224 = vmatprep.subr.mxu0 0.0
    %225 = vmatpush2.msra.mxu0 0.0
    %226 = vmatprep.subr.mxu0 0.0
    %227 = vmatpush2.msra.mxu0 0.0
    %228 = vmatprep.subr.mxu0 0.0
    %229 = vmatpush2.msra.mxu0 0.0
    %230 = vmatprep.subr.mxu0 0.0
    %231 = vmatpush2.msra.mxu0 0.0
    %232 = vmatprep.subr.mxu0 0.0
    %233 = vmatpush2.msra.mxu0 0.0
    %234 = vmatprep.subr.mxu0 0.0
    %235 = vmatpush2.msra.mxu0 0.0
    %236 = vmatprep.subr.mxu0 0.0
    %237 = vmatpush2.msra.mxu0 0.0
    %238 = vmatprep.mubr.f32.mxu0 0.0
    %239 = vmatmul.mubr.f32.gmra.mxu0 %v169
    %v240 = vpop.f32.mrf.mxu0
    %v241 = vadd.f32 %v160, %v240
    %v242 = vpop.f32.mrf.mxu0
    %v243 = vadd.f32 %v164, %v242
    %244 = vmatprep.mubr.f32.mxu0 0.0
    %245 = vmatmul.mubr.f32.gmra.mxu0 %v172
    %v246 = vpop.f32.mrf.mxu0
    %v247 = vadd.f32 %v160, %v246
    %v248 = vpop.f32.mrf.mxu0
    %v249 = vadd.f32 %v164, %v248
    %250 = vdwg.mxu0
    %v251 = vld [vmem:[%s4] sm:$0xff]
    %v252 = vld [vmem:[%s4 + $0x8] sm:$0xff]
    %v253 = vld [vmem:[%s4 + $0x10] sm:$0xff]
    %v254 = vld [vmem:[%s4 + $0x18] sm:$0xff]
    %v255 = vld [vmem:[%s5] sm:$0xff]
    %v256 = vld [vmem:[%s5 + $0x8] sm:$0xff]
    %v257 = vld [vmem:[%s5 + $0x10] sm:$0xff]
    %v258 = vld [vmem:[%s5 + $0x18] sm:$0xff]
    %vm259 = vcmask 261120
    %v261 = vsel %vm259, 0.0, 0
    %263 = vmatprep.subr.mxu0 0.0
    %264 = vmatpush1.msra.mxu0 0.0
    %265 = vmatprep.subr.mxu0 0.0
    %266 = vmatpush1.msra.mxu0 0.0
    %267 = vmatprep.subr.mxu0 0.0
    %268 = vmatpush1.msra.mxu0 0.0
    %269 = vmatprep.subr.mxu0 0.0
    %270 = vmatpush1.msra.mxu0 0.0
    %271 = vmatprep.subr.mxu0 0.0
    %272 = vmatpush1.msra.mxu0 0.0
    %273 = vmatprep.subr.mxu0 0.0
    %274 = vmatpush1.msra.mxu0 0.0
    %275 = vmatprep.subr.mxu0 0.0
    %276 = vmatpush1.msra.mxu0 0.0
    %277 = vmatprep.subr.mxu0 0.0
    %278 = vmatpush1.msra.mxu0 0.0
    %279 = vmatprep.subr.mxu0 0.0
    %280 = vmatpush1.msra.mxu0 0.0
    %281 = vmatprep.subr.mxu0 0.0
    %282 = vmatpush1.msra.mxu0 0.0
    %283 = vmatprep.subr.mxu0 0.0
    %284 = vmatpush1.msra.mxu0 0.0
    %285 = vmatprep.subr.mxu0 0.0
    %286 = vmatpush1.msra.mxu0 0.0
    %287 = vmatprep.subr.mxu0 0.0
    %288 = vmatpush1.msra.mxu0 %v254
    %289 = vmatprep.subr.mxu0 0.0
    %290 = vmatpush1.msra.mxu0 %v253
    %291 = vmatprep.subr.mxu0 0.0
    %292 = vmatpush1.msra.mxu0 %v252
    %293 = vmatprep.subr.mxu0 0.0
    %294 = vmatpush1.msra.mxu0 %v251
    %295 = vmatprep.subr.mxu0 0.0
    %296 = vmatpush2.msra.mxu0 0.0
    %297 = vmatprep.subr.mxu0 0.0
    %298 = vmatpush2.msra.mxu0 0.0
    %299 = vmatprep.subr.mxu0 0.0
    %300 = vmatpush2.msra.mxu0 0.0
    %301 = vmatprep.subr.mxu0 0.0
    %302 = vmatpush2.msra.mxu0 0.0
    %303 = vmatprep.subr.mxu0 0.0
    %304 = vmatpush2.msra.mxu0 0.0
    %305 = vmatprep.subr.mxu0 0.0
    %306 = vmatpush2.msra.mxu0 0.0
    %307 = vmatprep.subr.mxu0 0.0
    %308 = vmatpush2.msra.mxu0 0.0
    %309 = vmatprep.subr.mxu0 0.0
    %310 = vmatpush2.msra.mxu0 0.0
    %311 = vmatprep.subr.mxu0 0.0
    %312 = vmatpush2.msra.mxu0 0.0
    %313 = vmatprep.subr.mxu0 0.0
    %314 = vmatpush2.msra.mxu0 0.0
    %315 = vmatprep.subr.mxu0 0.0
    %316 = vmatpush2.msra.mxu0 0.0
    %317 = vmatprep.subr.mxu0 0.0
    %318 = vmatpush2.msra.mxu0 0.0
    %319 = vmatprep.subr.mxu0 0.0
    %320 = vmatpush2.msra.mxu0 0.0
    %321 = vmatprep.subr.mxu0 0.0
    %322 = vmatpush2.msra.mxu0 0.0
    %323 = vmatprep.subr.mxu0 0.0
    %324 = vmatpush2.msra.mxu0 0.0
    %325 = vmatprep.subr.mxu0 0.0
    %326 = vmatpush2.msra.mxu0 0.0
    %327 = vmatprep.mubr.f32.mxu0 0.0
    %328 = vmatmul.mubr.f32.gmra.mxu0 %v261
    %v329 = vpop.f32.mrf.mxu0
    %v330 = vadd.f32 0.0, %v329
    %v331 = vpop.f32.mrf.mxu0
    %332 = vdwg.mxu0
    %v333 = vadd.f32 %v241, %v330
    %v334 = vxor.u32 %v333, 2147483648
    %v335 = vmul.f32 %v334, 1.442695
    %v336 = vpow.pop %v335
    %v337 = vadd.f32 %v336, 1.0
    %v338 = vrcp.pop %v337
    %v339 = vmul.f32 1.0, %v338
    %v340 = vtanh.pop %v333
    %v341 = vmul.f32 %v339, 0.0
    %343 = vrot.lane.b32.xlu0 %v340, 64
    %v344 = vpop.permute.xlu0 %343
    %v346 = vmul.f32 %v339, %v344
    %348 = vrot.lane.b32.xlu0 %v346, 32
    %v349 = vpop.permute.xlu0 %348
    %v351 = vadd.f32 %v341, %v349
    %v352 = vtanh.pop %v351
    %354 = vrot.lane.b32.xlu0 %v352, 64
    %v355 = vpop.permute.xlu0 %354
    %v357 = vmul.f32 %v339, %v355
    %358 = vmatprep.subr.mxu0 0.0
    %359 = vmatpush1.msra.mxu0 0.0
    %360 = vmatprep.subr.mxu0 0.0
    %361 = vmatpush1.msra.mxu0 0.0
    %362 = vmatprep.subr.mxu0 0.0
    %363 = vmatpush1.msra.mxu0 0.0
    %364 = vmatprep.subr.mxu0 0.0
    %365 = vmatpush1.msra.mxu0 0.0
    %366 = vmatprep.subr.mxu0 0.0
    %367 = vmatpush1.msra.mxu0 0.0
    %368 = vmatprep.subr.mxu0 0.0
    %369 = vmatpush1.msra.mxu0 0.0
    %370 = vmatprep.subr.mxu0 0.0
    %371 = vmatpush1.msra.mxu0 0.0
    %372 = vmatprep.subr.mxu0 0.0
    %373 = vmatpush1.msra.mxu0 0.0
    %374 = vmatprep.subr.mxu0 0.0
    %375 = vmatpush1.msra.mxu0 0.0
    %376 = vmatprep.subr.mxu0 0.0
    %377 = vmatpush1.msra.mxu0 0.0
    %378 = vmatprep.subr.mxu0 0.0
    %379 = vmatpush1.msra.mxu0 0.0
    %380 = vmatprep.subr.mxu0 0.0
    %381 = vmatpush1.msra.mxu0 0.0
    %382 = vmatprep.subr.mxu0 0.0
    %383 = vmatpush1.msra.mxu0 %v258
    %384 = vmatprep.subr.mxu0 0.0
    %385 = vmatpush1.msra.mxu0 %v257
    %386 = vmatprep.subr.mxu0 0.0
    %387 = vmatpush1.msra.mxu0 %v256
    %388 = vmatprep.subr.mxu0 0.0
    %389 = vmatpush1.msra.mxu0 %v255
    %390 = vmatprep.subr.mxu0 0.0
    %391 = vmatpush2.msra.mxu0 0.0
    %392 = vmatprep.subr.mxu0 0.0
    %393 = vmatpush2.msra.mxu0 0.0
    %394 = vmatprep.subr.mxu0 0.0
    %395 = vmatpush2.msra.mxu0 0.0
    %396 = vmatprep.subr.mxu0 0.0
    %397 = vmatpush2.msra.mxu0 0.0
    %398 = vmatprep.subr.mxu0 0.0
    %399 = vmatpush2.msra.mxu0 0.0
    %400 = vmatprep.subr.mxu0 0.0
    %401 = vmatpush2.msra.mxu0 0.0
    %402 = vmatprep.subr.mxu0 0.0
    %403 = vmatpush2.msra.mxu0 0.0
    %404 = vmatprep.subr.mxu0 0.0
    %405 = vmatpush2.msra.mxu0 0.0
    %406 = vmatprep.subr.mxu0 0.0
    %407 = vmatpush2.msra.mxu0 0.0
    %408 = vmatprep.subr.mxu0 0.0
    %409 = vmatpush2.msra.mxu0 0.0
    %410 = vmatprep.subr.mxu0 0.0
    %411 = vmatpush2.msra.mxu0 0.0
    %412 = vmatprep.subr.mxu0 0.0
    %413 = vmatpush2.msra.mxu0 0.0
    %414 = vmatprep.subr.mxu0 0.0
    %415 = vmatpush2.msra.mxu0 0.0
    %416 = vmatprep.subr.mxu0 0.0
    %417 = vmatpush2.msra.mxu0 0.0
    %418 = vmatprep.subr.mxu0 0.0
    %419 = vmatpush2.msra.mxu0 0.0
    %420 = vmatprep.subr.mxu0 0.0
    %421 = vmatpush2.msra.mxu0 0.0
    %422 = vmatprep.mubr.f32.mxu0 0.0
    %423 = vmatmul.mubr.f32.gmra.mxu0 %v261
    %v424 = vpop.f32.mrf.mxu0
    %v425 = vadd.f32 0.0, %v424
    %v426 = vpop.f32.mrf.mxu0
    %427 = vdwg.mxu0
    %v429 = vrot.slane %v425, 2
    %v431 = vadd.f32 %v249, %v429
    %v432 = vxor.u32 %v431, 2147483648
    %v433 = vmul.f32 %v432, 1.442695
    %v434 = vpow.pop %v433
    %v435 = vadd.f32 %v434, 1.0
    %v436 = vrcp.pop %v435
    %v437 = vmul.f32 1.0, %v436
    %v438 = vtanh.pop %v431
    %v439 = vmul.f32 %v437, 0.0
    %441 = vrot.lane.b32.xlu0 %v438, 64
    %v442 = vpop.permute.xlu0 %441
    %v444 = vmul.f32 %v437, %v442
    %446 = vrot.lane.b32.xlu0 %v444, 32
    %v447 = vpop.permute.xlu0 %446
    %v449 = vadd.f32 %v439, %v447
    %v450 = vtanh.pop %v449
    %452 = vrot.lane.b32.xlu0 %v450, 64
    %v453 = vpop.permute.xlu0 %452
    %v455 = vmul.f32 %v437, %v453
    %457 = vrot.lane.b32.xlu0 %v357, 32
    %v458 = vpop.permute.xlu0 %457
    %vm460 = vcmask 254976
    %461 = vst.msk [vmem:[#allocation2] sm:$0x3] %vm460, %v458
    %463 = vrot.lane.b32.xlu0 %v455, 64
    %v464 = vpop.permute.xlu0 %463
    %vm466 = vcmask 523526
    %467 = vst.msk [vmem:[#allocation2 + $0x8] sm:$0xc0] %vm466, %v464
    %v468 = vsel %vm259, %v458, 0
    %470 = vmatprep.subr.mxu0 0.0
    %471 = vmatpush1.msra.mxu0 0.0
    %472 = vmatprep.subr.mxu0 0.0
    %473 = vmatpush1.msra.mxu0 0.0
    %474 = vmatprep.subr.mxu0 0.0
    %475 = vmatpush1.msra.mxu0 0.0
    %476 = vmatprep.subr.mxu0 0.0
    %477 = vmatpush1.msra.mxu0 0.0
    %478 = vmatprep.subr.mxu0 0.0
    %479 = vmatpush1.msra.mxu0 0.0
    %480 = vmatprep.subr.mxu0 0.0
    %481 = vmatpush1.msra.mxu0 0.0
    %482 = vmatprep.subr.mxu0 0.0
    %483 = vmatpush1.msra.mxu0 0.0
    %484 = vmatprep.subr.mxu0 0.0
    %485 = vmatpush1.msra.mxu0 0.0
    %486 = vmatprep.subr.mxu0 0.0
    %487 = vmatpush1.msra.mxu0 0.0
    %488 = vmatprep.subr.mxu0 0.0
    %489 = vmatpush1.msra.mxu0 0.0
    %490 = vmatprep.subr.mxu0 0.0
    %491 = vmatpush1.msra.mxu0 0.0
    %492 = vmatprep.subr.mxu0 0.0
    %493 = vmatpush1.msra.mxu0 0.0
    %494 = vmatprep.subr.mxu0 0.0
    %495 = vmatpush1.msra.mxu0 %v254
    %496 = vmatprep.subr.mxu0 0.0
    %497 = vmatpush1.msra.mxu0 %v253
    %498 = vmatprep.subr.mxu0 0.0
    %499 = vmatpush1.msra.mxu0 %v252
    %500 = vmatprep.subr.mxu0 0.0
    %501 = vmatpush1.msra.mxu0 %v251
    %502 = vmatprep.subr.mxu0 0.0
    %503 = vmatpush2.msra.mxu0 0.0
    %504 = vmatprep.subr.mxu0 0.0
    %505 = vmatpush2.msra.mxu0 0.0
    %506 = vmatprep.subr.mxu0 0.0
    %507 = vmatpush2.msra.mxu0 0.0
    %508 = vmatprep.subr.mxu0 0.0
    %509 = vmatpush2.msra.mxu0 0.0
    %510 = vmatprep.subr.mxu0 0.0
    %511 = vmatpush2.msra.mxu0 0.0
    %512 = vmatprep.subr.mxu0 0.0
    %513 = vmatpush2.msra.mxu0 0.0
    %514 = vmatprep.subr.mxu0 0.0
    %515 = vmatpush2.msra.mxu0 0.0
    %516 = vmatprep.subr.mxu0 0.0
    %517 = vmatpush2.msra.mxu0 0.0
    %518 = vmatprep.subr.mxu0 0.0
    %519 = vmatpush2.msra.mxu0 0.0
    %520 = vmatprep.subr.mxu0 0.0
    %521 = vmatpush2.msra.mxu0 0.0
    %522 = vmatprep.subr.mxu0 0.0
    %523 = vmatpush2.msra.mxu0 0.0
    %524 = vmatprep.subr.mxu0 0.0
    %525 = vmatpush2.msra.mxu0 0.0
    %526 = vmatprep.subr.mxu0 0.0
    %527 = vmatpush2.msra.mxu0 0.0
    %528 = vmatprep.subr.mxu0 0.0
    %529 = vmatpush2.msra.mxu0 0.0
    %530 = vmatprep.subr.mxu0 0.0
    %531 = vmatpush2.msra.mxu0 0.0
    %532 = vmatprep.subr.mxu0 0.0
    %533 = vmatpush2.msra.mxu0 0.0
    %534 = vmatprep.mubr.f32.mxu0 0.0
    %535 = vmatmul.mubr.f32.gmra.mxu0 %v468
    %v536 = vpop.f32.mrf.mxu0
    %v537 = vadd.f32 0.0, %v536
    %v538 = vpop.f32.mrf.mxu0
    %539 = vdwg.mxu0
    %v541 = vrot.slane %v537, 6
    %v543 = vadd.f32 %v241, %v541
    %v544 = vxor.u32 %v543, 2147483648
    %v545 = vmul.f32 %v544, 1.442695
    %v546 = vpow.pop %v545
    %v547 = vadd.f32 %v546, 1.0
    %v548 = vrcp.pop %v547
    %v549 = vmul.f32 1.0, %v548
    %v550 = vtanh.pop %v543
    %v552 = vrot.slane %v351, 6
    %v554 = vmul.f32 %v549, %v552
    %556 = vrot.lane.b32.xlu0 %v550, 64
    %v557 = vpop.permute.xlu0 %556
    %v559 = vmul.f32 %v549, %v557
    %561 = vrot.lane.b32.xlu0 %v559, 32
    %v562 = vpop.permute.xlu0 %561
    %v564 = vadd.f32 %v554, %v562
    %v565 = vtanh.pop %v564
    %567 = vrot.lane.b32.xlu0 %v565, 64
    %v568 = vpop.permute.xlu0 %567
    %v570 = vmul.f32 %v549, %v568
    %v571 = vrot.slane %v455, 6
    %572 = vrot.lane.b32.xlu0 %v571, 32
    %v573 = vpop.permute.xlu0 %572
    %v574 = vsel %vm259, %v573, 0
    %576 = vmatprep.subr.mxu0 0.0
    %577 = vmatpush1.msra.mxu0 0.0
    %578 = vmatprep.subr.mxu0 0.0
    %579 = vmatpush1.msra.mxu0 0.0
    %580 = vmatprep.subr.mxu0 0.0
    %581 = vmatpush1.msra.mxu0 0.0
    %582 = vmatprep.subr.mxu0 0.0
    %583 = vmatpush1.msra.mxu0 0.0
    %584 = vmatprep.subr.mxu0 0.0
    %585 = vmatpush1.msra.mxu0 0.0
    %586 = vmatprep.subr.mxu0 0.0
    %587 = vmatpush1.msra.mxu0 0.0
    %588 = vmatprep.subr.mxu0 0.0
    %589 = vmatpush1.msra.mxu0 0.0
    %590 = vmatprep.subr.mxu0 0.0
    %591 = vmatpush1.msra.mxu0 0.0
    %592 = vmatprep.subr.mxu0 0.0
    %593 = vmatpush1.msra.mxu0 0.0
    %594 = vmatprep.subr.mxu0 0.0
    %595 = vmatpush1.msra.mxu0 0.0
    %596 = vmatprep.subr.mxu0 0.0
    %597 = vmatpush1.msra.mxu0 0.0
    %598 = vmatprep.subr.mxu0 0.0
    %599 = vmatpush1.msra.mxu0 0.0
    %600 = vmatprep.subr.mxu0 0.0
    %601 = vmatpush1.msra.mxu0 %v258
    %602 = vmatprep.subr.mxu0 0.0
    %603 = vmatpush1.msra.mxu0 %v257
    %604 = vmatprep.subr.mxu0 0.0
    %605 = vmatpush1.msra.mxu0 %v256
    %606 = vmatprep.subr.mxu0 0.0
    %607 = vmatpush1.msra.mxu0 %v255
    %608 = vmatprep.subr.mxu0 0.0
    %609 = vmatpush2.msra.mxu0 0.0
    %610 = vmatprep.subr.mxu0 0.0
    %611 = vmatpush2.msra.mxu0 0.0
    %612 = vmatprep.subr.mxu0 0.0
    %613 = vmatpush2.msra.mxu0 0.0
    %614 = vmatprep.subr.mxu0 0.0
    %615 = vmatpush2.msra.mxu0 0.0
    %616 = vmatprep.subr.mxu0 0.0
    %617 = vmatpush2.msra.mxu0 0.0
    %618 = vmatprep.subr.mxu0 0.0
    %619 = vmatpush2.msra.mxu0 0.0
    %620 = vmatprep.subr.mxu0 0.0
    %621 = vmatpush2.msra.mxu0 0.0
    %622 = vmatprep.subr.mxu0 0.0
    %623 = vmatpush2.msra.mxu0 0.0
    %624 = vmatprep.subr.mxu0 0.0
    %625 = vmatpush2.msra.mxu0 0.0
    %626 = vmatprep.subr.mxu0 0.0
    %627 = vmatpush2.msra.mxu0 0.0
    %628 = vmatprep.subr.mxu0 0.0
    %629 = vmatpush2.msra.mxu0 0.0
    %630 = vmatprep.subr.mxu0 0.0
    %631 = vmatpush2.msra.mxu0 0.0
    %632 = vmatprep.subr.mxu0 0.0
    %633 = vmatpush2.msra.mxu0 0.0
    %634 = vmatprep.subr.mxu0 0.0
    %635 = vmatpush2.msra.mxu0 0.0
    %636 = vmatprep.subr.mxu0 0.0
    %637 = vmatpush2.msra.mxu0 0.0
    %638 = vmatprep.subr.mxu0 0.0
    %639 = vmatpush2.msra.mxu0 0.0
    %640 = vmatprep.mubr.f32.mxu0 0.0
    %641 = vmatmul.mubr.f32.gmra.mxu0 %v574
    %v642 = vpop.f32.mrf.mxu0
    %v643 = vadd.f32 0.0, %v642
    %v644 = vpop.f32.mrf.mxu0
    %645 = vdwg.mxu0
    %v647 = vrot.slane %v643, 4
    %v649 = vadd.f32 %v249, %v647
    %v650 = vxor.u32 %v649, 2147483648
    %v651 = vmul.f32 %v650, 1.442695
    %v652 = vpow.pop %v651
    %v653 = vadd.f32 %v652, 1.0
    %v654 = vrcp.pop %v653
    %v655 = vmul.f32 1.0, %v654
    %v656 = vtanh.pop %v649
    %v658 = vrot.slane %v449, 2
    %v660 = vmul.f32 %v655, %v658
    %662 = vrot.lane.b32.xlu0 %v656, 64
    %v663 = vpop.permute.xlu0 %662
    %v665 = vmul.f32 %v655, %v663
    %667 = vrot.lane.b32.xlu0 %v665, 32
    %v668 = vpop.permute.xlu0 %667
    %v670 = vadd.f32 %v660, %v668
    %v671 = vtanh.pop %v670
    %673 = vrot.lane.b32.xlu0 %v671, 64
    %v674 = vpop.permute.xlu0 %673
    %v676 = vmul.f32 %v655, %v674
    %678 = vrot.lane.b32.xlu0 %v570, 32
    %v679 = vpop.permute.xlu0 %678
    %vm681 = vcmask 257026
    %682 = vst.msk [vmem:[#allocation2] sm:$0xc] %vm681, %v679
    %684 = vrot.lane.b32.xlu0 %v676, 64
    %v685 = vpop.permute.xlu0 %684
    %vm687 = vcmask 521476
    %688 = vst.msk [vmem:[#allocation2 + $0x8] sm:$0x30] %vm687, %v685
    %v689 = vrot.slane %v570, 2
    %690 = vrot.lane.b32.xlu0 %v689, 32
    %v691 = vpop.permute.xlu0 %690
    %v692 = vsel %vm259, %v691, 0
    %694 = vmatprep.subr.mxu0 0.0
    %695 = vmatpush1.msra.mxu0 0.0
    %696 = vmatprep.subr.mxu0 0.0
    %697 = vmatpush1.msra.mxu0 0.0
    %698 = vmatprep.subr.mxu0 0.0
    %699 = vmatpush1.msra.mxu0 0.0
    %700 = vmatprep.subr.mxu0 0.0
    %701 = vmatpush1.msra.mxu0 0.0
    %702 = vmatprep.subr.mxu0 0.0
    %703 = vmatpush1.msra.mxu0 0.0
    %704 = vmatprep.subr.mxu0 0.0
    %705 = vmatpush1.msra.mxu0 0.0
    %706 = vmatprep.subr.mxu0 0.0
    %707 = vmatpush1.msra.mxu0 0.0
    %708 = vmatprep.subr.mxu0 0.0
    %709 = vmatpush1.msra.mxu0 0.0
    %710 = vmatprep.subr.mxu0 0.0
    %711 = vmatpush1.msra.mxu0 0.0
    %712 = vmatprep.subr.mxu0 0.0
    %713 = vmatpush1.msra.mxu0 0.0
    %714 = vmatprep.subr.mxu0 0.0
    %715 = vmatpush1.msra.mxu0 0.0
    %716 = vmatprep.subr.mxu0 0.0
    %717 = vmatpush1.msra.mxu0 0.0
    %718 = vmatprep.subr.mxu0 0.0
    %719 = vmatpush1.msra.mxu0 %v254
    %720 = vmatprep.subr.mxu0 0.0
    %721 = vmatpush1.msra.mxu0 %v253
    %722 = vmatprep.subr.mxu0 0.0
    %723 = vmatpush1.msra.mxu0 %v252
    %724 = vmatprep.subr.mxu0 0.0
    %725 = vmatpush1.msra.mxu0 %v251
    %726 = vmatprep.subr.mxu0 0.0
    %727 = vmatpush2.msra.mxu0 0.0
    %728 = vmatprep.subr.mxu0 0.0
    %729 = vmatpush2.msra.mxu0 0.0
    %730 = vmatprep.subr.mxu0 0.0
    %731 = vmatpush2.msra.mxu0 0.0
    %732 = vmatprep.subr.mxu0 0.0
    %733 = vmatpush2.msra.mxu0 0.0
    %734 = vmatprep.subr.mxu0 0.0
    %735 = vmatpush2.msra.mxu0 0.0
    %736 = vmatprep.subr.mxu0 0.0
    %737 = vmatpush2.msra.mxu0 0.0
    %738 = vmatprep.subr.mxu0 0.0
    %739 = vmatpush2.msra.mxu0 0.0
    %740 = vmatprep.subr.mxu0 0.0
    %741 = vmatpush2.msra.mxu0 0.0
    %742 = vmatprep.subr.mxu0 0.0
    %743 = vmatpush2.msra.mxu0 0.0
    %744 = vmatprep.subr.mxu0 0.0
    %745 = vmatpush2.msra.mxu0 0.0
    %746 = vmatprep.subr.mxu0 0.0
    %747 = vmatpush2.msra.mxu0 0.0
    %748 = vmatprep.subr.mxu0 0.0
    %749 = vmatpush2.msra.mxu0 0.0
    %750 = vmatprep.subr.mxu0 0.0
    %751 = vmatpush2.msra.mxu0 0.0
    %752 = vmatprep.subr.mxu0 0.0
    %753 = vmatpush2.msra.mxu0 0.0
    %754 = vmatprep.subr.mxu0 0.0
    %755 = vmatpush2.msra.mxu0 0.0
    %756 = vmatprep.subr.mxu0 0.0
    %757 = vmatpush2.msra.mxu0 0.0
    %758 = vmatprep.mubr.f32.mxu0 0.0
    %759 = vmatmul.mubr.f32.gmra.mxu0 %v692
    %v760 = vpop.f32.mrf.mxu0
    %v761 = vadd.f32 0.0, %v760
    %v762 = vpop.f32.mrf.mxu0
    %763 = vdwg.mxu0
    %v765 = vrot.slane %v761, 4
    %v767 = vadd.f32 %v241, %v765
    %v768 = vxor.u32 %v767, 2147483648
    %v769 = vmul.f32 %v768, 1.442695
    %v770 = vpow.pop %v769
    %v771 = vadd.f32 %v770, 1.0
    %v772 = vrcp.pop %v771
    %v773 = vmul.f32 1.0, %v772
    %v774 = vtanh.pop %v767
    %v776 = vrot.slane %v564, 6
    %v778 = vmul.f32 %v773, %v776
    %780 = vrot.lane.b32.xlu0 %v774, 64
    %v781 = vpop.permute.xlu0 %780
    %v783 = vmul.f32 %v773, %v781
    %785 = vrot.lane.b32.xlu0 %v783, 32
    %v786 = vpop.permute.xlu0 %785
    %v788 = vadd.f32 %v778, %v786
    %v789 = vtanh.pop %v788
    %791 = vrot.lane.b32.xlu0 %v789, 64
    %v792 = vpop.permute.xlu0 %791
    %v794 = vmul.f32 %v773, %v792
    %v795 = vrot.slane %v676, 4
    %796 = vrot.lane.b32.xlu0 %v795, 32
    %v797 = vpop.permute.xlu0 %796
    %v798 = vsel %vm259, %v797, 0
    %800 = vmatprep.subr.mxu0 0.0
    %801 = vmatpush1.msra.mxu0 0.0
    %802 = vmatprep.subr.mxu0 0.0
    %803 = vmatpush1.msra.mxu0 0.0
    %804 = vmatprep.subr.mxu0 0.0
    %805 = vmatpush1.msra.mxu0 0.0
    %806 = vmatprep.subr.mxu0 0.0
    %807 = vmatpush1.msra.mxu0 0.0
    %808 = vmatprep.subr.mxu0 0.0
    %809 = vmatpush1.msra.mxu0 0.0
    %810 = vmatprep.subr.mxu0 0.0
    %811 = vmatpush1.msra.mxu0 0.0
    %812 = vmatprep.subr.mxu0 0.0
    %813 = vmatpush1.msra.mxu0 0.0
    %814 = vmatprep.subr.mxu0 0.0
    %815 = vmatpush1.msra.mxu0 0.0
    %816 = vmatprep.subr.mxu0 0.0
    %817 = vmatpush1.msra.mxu0 0.0
    %818 = vmatprep.subr.mxu0 0.0
    %819 = vmatpush1.msra.mxu0 0.0
    %820 = vmatprep.subr.mxu0 0.0
    %821 = vmatpush1.msra.mxu0 0.0
    %822 = vmatprep.subr.mxu0 0.0
    %823 = vmatpush1.msra.mxu0 0.0
    %824 = vmatprep.subr.mxu0 0.0
    %825 = vmatpush1.msra.mxu0 %v258
    %826 = vmatprep.subr.mxu0 0.0
    %827 = vmatpush1.msra.mxu0 %v257
    %828 = vmatprep.subr.mxu0 0.0
    %829 = vmatpush1.msra.mxu0 %v256
    %830 = vmatprep.subr.mxu0 0.0
    %831 = vmatpush1.msra.mxu0 %v255
    %832 = vmatprep.subr.mxu0 0.0
    %833 = vmatpush2.msra.mxu0 0.0
    %834 = vmatprep.subr.mxu0 0.0
    %835 = vmatpush2.msra.mxu0 0.0
    %836 = vmatprep.subr.mxu0 0.0
    %837 = vmatpush2.msra.mxu0 0.0
    %838 = vmatprep.subr.mxu0 0.0
    %839 = vmatpush2.msra.mxu0 0.0
    %840 = vmatprep.subr.mxu0 0.0
    %841 = vmatpush2.msra.mxu0 0.0
    %842 = vmatprep.subr.mxu0 0.0
    %843 = vmatpush2.msra.mxu0 0.0
    %844 = vmatprep.subr.mxu0 0.0
    %845 = vmatpush2.msra.mxu0 0.0
    %846 = vmatprep.subr.mxu0 0.0
    %847 = vmatpush2.msra.mxu0 0.0
    %848 = vmatprep.subr.mxu0 0.0
    %849 = vmatpush2.msra.mxu0 0.0
    %850 = vmatprep.subr.mxu0 0.0
    %851 = vmatpush2.msra.mxu0 0.0
    %852 = vmatprep.subr.mxu0 0.0
    %853 = vmatpush2.msra.mxu0 0.0
    %854 = vmatprep.subr.mxu0 0.0
    %855 = vmatpush2.msra.mxu0 0.0
    %856 = vmatprep.subr.mxu0 0.0
    %857 = vmatpush2.msra.mxu0 0.0
    %858 = vmatprep.subr.mxu0 0.0
    %859 = vmatpush2.msra.mxu0 0.0
    %860 = vmatprep.subr.mxu0 0.0
    %861 = vmatpush2.msra.mxu0 0.0
    %862 = vmatprep.subr.mxu0 0.0
    %863 = vmatpush2.msra.mxu0 0.0
    %864 = vmatprep.mubr.f32.mxu0 0.0
    %865 = vmatmul.mubr.f32.gmra.mxu0 %v798
    %v866 = vpop.f32.mrf.mxu0
    %v867 = vadd.f32 0.0, %v866
    %v868 = vpop.f32.mrf.mxu0
    %869 = vdwg.mxu0
    %v871 = vrot.slane %v867, 6
    %v873 = vadd.f32 %v249, %v871
    %v874 = vxor.u32 %v873, 2147483648
    %v875 = vmul.f32 %v874, 1.442695
    %v876 = vpow.pop %v875
    %v877 = vadd.f32 %v876, 1.0
    %v878 = vrcp.pop %v877
    %v879 = vmul.f32 1.0, %v878
    %v880 = vtanh.pop %v873
    %v882 = vrot.slane %v670, 2
    %v884 = vmul.f32 %v879, %v882
    %886 = vrot.lane.b32.xlu0 %v880, 64
    %v887 = vpop.permute.xlu0 %886
    %v889 = vmul.f32 %v879, %v887
    %891 = vrot.lane.b32.xlu0 %v889, 32
    %v892 = vpop.permute.xlu0 %891
    %v894 = vadd.f32 %v884, %v892
    %v895 = vtanh.pop %v894
    %897 = vrot.lane.b32.xlu0 %v895, 64
    %v898 = vpop.permute.xlu0 %897
    %v900 = vmul.f32 %v879, %v898
    %902 = vrot.lane.b32.xlu0 %v794, 32
    %v903 = vpop.permute.xlu0 %902
    %vm905 = vcmask 259076
    %906 = vst.msk [vmem:[#allocation2] sm:$0x30] %vm905, %v903
    %908 = vrot.lane.b32.xlu0 %v900, 64
    %v909 = vpop.permute.xlu0 %908
    %vm911 = vcmask 519426
    %912 = vst.msk [vmem:[#allocation2 + $0x8] sm:$0xc] %vm911, %v909
    %v913 = vrot.slane %v794, 4
    %914 = vrot.lane.b32.xlu0 %v913, 32
    %v915 = vpop.permute.xlu0 %914
    %v916 = vsel %vm259, %v915, 0
    %918 = vmatprep.subr.mxu0 0.0
    %919 = vmatpush1.msra.mxu0 0.0
    %920 = vmatprep.subr.mxu0 0.0
    %921 = vmatpush1.msra.mxu0 0.0
    %922 = vmatprep.subr.mxu0 0.0
    %923 = vmatpush1.msra.mxu0 0.0
    %924 = vmatprep.subr.mxu0 0.0
    %925 = vmatpush1.msra.mxu0 0.0
    %926 = vmatprep.subr.mxu0 0.0
    %927 = vmatpush1.msra.mxu0 0.0
    %928 = vmatprep.subr.mxu0 0.0
    %929 = vmatpush1.msra.mxu0 0.0
    %930 = vmatprep.subr.mxu0 0.0
    %931 = vmatpush1.msra.mxu0 0.0
    %932 = vmatprep.subr.mxu0 0.0
    %933 = vmatpush1.msra.mxu0 0.0
    %934 = vmatprep.subr.mxu0 0.0
    %935 = vmatpush1.msra.mxu0 0.0
    %936 = vmatprep.subr.mxu0 0.0
    %937 = vmatpush1.msra.mxu0 0.0
    %938 = vmatprep.subr.mxu0 0.0
    %939 = vmatpush1.msra.mxu0 0.0
    %940 = vmatprep.subr.mxu0 0.0
    %941 = vmatpush1.msra.mxu0 0.0
    %942 = vmatprep.subr.mxu0 0.0
    %943 = vmatpush1.msra.mxu0 %v254
    %944 = vmatprep.subr.mxu0 0.0
    %945 = vmatpush1.msra.mxu0 %v253
    %946 = vmatprep.subr.mxu0 0.0
    %947 = vmatpush1.msra.mxu0 %v252
    %948 = vmatprep.subr.mxu0 0.0
    %949 = vmatpush1.msra.mxu0 %v251
    %950 = vmatprep.subr.mxu0 0.0
    %951 = vmatpush2.msra.mxu0 0.0
    %952 = vmatprep.subr.mxu0 0.0
    %953 = vmatpush2.msra.mxu0 0.0
    %954 = vmatprep.subr.mxu0 0.0
    %955 = vmatpush2.msra.mxu0 0.0
    %956 = vmatprep.subr.mxu0 0.0
    %957 = vmatpush2.msra.mxu0 0.0
    %958 = vmatprep.subr.mxu0 0.0
    %959 = vmatpush2.msra.mxu0 0.0
    %960 = vmatprep.subr.mxu0 0.0
    %961 = vmatpush2.msra.mxu0 0.0
    %962 = vmatprep.subr.mxu0 0.0
    %963 = vmatpush2.msra.mxu0 0.0
    %964 = vmatprep.subr.mxu0 0.0
    %965 = vmatpush2.msra.mxu0 0.0
    %966 = vmatprep.subr.mxu0 0.0
    %967 = vmatpush2.msra.mxu0 0.0
    %968 = vmatprep.subr.mxu0 0.0
    %969 = vmatpush2.msra.mxu0 0.0
    %970 = vmatprep.subr.mxu0 0.0
    %971 = vmatpush2.msra.mxu0 0.0
    %972 = vmatprep.subr.mxu0 0.0
    %973 = vmatpush2.msra.mxu0 0.0
    %974 = vmatprep.subr.mxu0 0.0
    %975 = vmatpush2.msra.mxu0 0.0
    %976 = vmatprep.subr.mxu0 0.0
    %977 = vmatpush2.msra.mxu0 0.0
    %978 = vmatprep.subr.mxu0 0.0
    %979 = vmatpush2.msra.mxu0 0.0
    %980 = vmatprep.subr.mxu0 0.0
    %981 = vmatpush2.msra.mxu0 0.0
    %982 = vmatprep.mubr.f32.mxu0 0.0
    %983 = vmatmul.mubr.f32.gmra.mxu0 %v916
    %v984 = vpop.f32.mrf.mxu0
    %v985 = vadd.f32 0.0, %v984
    %v986 = vpop.f32.mrf.mxu0
    %987 = vdwg.mxu0
    %v989 = vrot.slane %v985, 2
    %v991 = vadd.f32 %v241, %v989
    %v992 = vxor.u32 %v991, 2147483648
    %v993 = vmul.f32 %v992, 1.442695
    %v994 = vpow.pop %v993
    %v995 = vadd.f32 %v994, 1.0
    %v996 = vrcp.pop %v995
    %v997 = vmul.f32 1.0, %v996
    %v998 = vtanh.pop %v991
    %v1000 = vrot.slane %v788, 6
    %v1002 = vmul.f32 %v997, %v1000
    %1004 = vrot.lane.b32.xlu0 %v998, 64
    %v1005 = vpop.permute.xlu0 %1004
    %v1007 = vmul.f32 %v997, %v1005
    %1009 = vrot.lane.b32.xlu0 %v1007, 32
    %v1010 = vpop.permute.xlu0 %1009
    %v1012 = vadd.f32 %v1002, %v1010
    %v1013 = vtanh.pop %v1012
    %1015 = vrot.lane.b32.xlu0 %v1013, 64
    %v1016 = vpop.permute.xlu0 %1015
    %v1018 = vmul.f32 %v997, %v1016
    %v1019 = vrot.slane %v900, 2
    %1020 = vrot.lane.b32.xlu0 %v1019, 32
    %v1021 = vpop.permute.xlu0 %1020
    %v1022 = vsel %vm259, %v1021, 0
    %1024 = vmatprep.subr.mxu0 0.0
    %1025 = vmatpush1.msra.mxu0 0.0
    %1026 = vmatprep.subr.mxu0 0.0
    %1027 = vmatpush1.msra.mxu0 0.0
    %1028 = vmatprep.subr.mxu0 0.0
    %1029 = vmatpush1.msra.mxu0 0.0
    %1030 = vmatprep.subr.mxu0 0.0
    %1031 = vmatpush1.msra.mxu0 0.0
    %1032 = vmatprep.subr.mxu0 0.0
    %1033 = vmatpush1.msra.mxu0 0.0
    %1034 = vmatprep.subr.mxu0 0.0
    %1035 = vmatpush1.msra.mxu0 0.0
    %1036 = vmatprep.subr.mxu0 0.0
    %1037 = vmatpush1.msra.mxu0 0.0
    %1038 = vmatprep.subr.mxu0 0.0
    %1039 = vmatpush1.msra.mxu0 0.0
    %1040 = vmatprep.subr.mxu0 0.0
    %1041 = vmatpush1.msra.mxu0 0.0
    %1042 = vmatprep.subr.mxu0 0.0
    %1043 = vmatpush1.msra.mxu0 0.0
    %1044 = vmatprep.subr.mxu0 0.0
    %1045 = vmatpush1.msra.mxu0 0.0
    %1046 = vmatprep.subr.mxu0 0.0
    %1047 = vmatpush1.msra.mxu0 0.0
    %1048 = vmatprep.subr.mxu0 0.0
    %1049 = vmatpush1.msra.mxu0 %v258
    %1050 = vmatprep.subr.mxu0 0.0
    %1051 = vmatpush1.msra.mxu0 %v257
    %1052 = vmatprep.subr.mxu0 0.0
    %1053 = vmatpush1.msra.mxu0 %v256
    %1054 = vmatprep.subr.mxu0 0.0
    %1055 = vmatpush1.msra.mxu0 %v255
    %1056 = vmatprep.subr.mxu0 0.0
    %1057 = vmatpush2.msra.mxu0 0.0
    %1058 = vmatprep.subr.mxu0 0.0
    %1059 = vmatpush2.msra.mxu0 0.0
    %1060 = vmatprep.subr.mxu0 0.0
    %1061 = vmatpush2.msra.mxu0 0.0
    %1062 = vmatprep.subr.mxu0 0.0
    %1063 = vmatpush2.msra.mxu0 0.0
    %1064 = vmatprep.subr.mxu0 0.0
    %1065 = vmatpush2.msra.mxu0 0.0
    %1066 = vmatprep.subr.mxu0 0.0
    %1067 = vmatpush2.msra.mxu0 0.0
    %1068 = vmatprep.subr.mxu0 0.0
    %1069 = vmatpush2.msra.mxu0 0.0
    %1070 = vmatprep.subr.mxu0 0.0
    %1071 = vmatpush2.msra.mxu0 0.0
    %1072 = vmatprep.subr.mxu0 0.0
    %1073 = vmatpush2.msra.mxu0 0.0
    %1074 = vmatprep.subr.mxu0 0.0
    %1075 = vmatpush2.msra.mxu0 0.0
    %1076 = vmatprep.subr.mxu0 0.0
    %1077 = vmatpush2.msra.mxu0 0.0
    %1078 = vmatprep.subr.mxu0 0.0
    %1079 = vmatpush2.msra.mxu0 0.0
    %1080 = vmatprep.subr.mxu0 0.0
    %1081 = vmatpush2.msra.mxu0 0.0
    %1082 = vmatprep.subr.mxu0 0.0
    %1083 = vmatpush2.msra.mxu0 0.0
    %1084 = vmatprep.subr.mxu0 0.0
    %1085 = vmatpush2.msra.mxu0 0.0
    %1086 = vmatprep.subr.mxu0 0.0
    %1087 = vmatpush2.msra.mxu0 0.0
    %1088 = vmatprep.mubr.f32.mxu0 0.0
    %1089 = vmatmul.mubr.f32.gmra.mxu0 %v1022
    %v1090 = vpop.f32.mrf.mxu0
    %v1091 = vadd.f32 0.0, %v1090
    %v1092 = vpop.f32.mrf.mxu0
    %1093 = vdwg.mxu0
    %v1094 = vadd.f32 %v249, %v1091
    %v1095 = vxor.u32 %v1094, 2147483648
    %v1096 = vmul.f32 %v1095, 1.442695
    %v1097 = vpow.pop %v1096
    %v1098 = vadd.f32 %v1097, 1.0
    %v1099 = vrcp.pop %v1098
    %v1100 = vmul.f32 1.0, %v1099
    %v1101 = vtanh.pop %v1094
    %v1103 = vrot.slane %v894, 2
    %v1105 = vmul.f32 %v1100, %v1103
    %1107 = vrot.lane.b32.xlu0 %v1101, 64
    %v1108 = vpop.permute.xlu0 %1107
    %v1110 = vmul.f32 %v1100, %v1108
    %1112 = vrot.lane.b32.xlu0 %v1110, 32
    %v1113 = vpop.permute.xlu0 %1112
    %v1115 = vadd.f32 %v1105, %v1113
    %v1116 = vtanh.pop %v1115
    %1118 = vrot.lane.b32.xlu0 %v1116, 64
    %v1119 = vpop.permute.xlu0 %1118
    %v1121 = vmul.f32 %v1100, %v1119
    %1123 = vrot.lane.b32.xlu0 %v1018, 32
    %v1124 = vpop.permute.xlu0 %1123
    %vm1126 = vcmask 261126
    %1127 = vst.msk [vmem:[#allocation2] sm:$0xc0] %vm1126, %v1124
    %1129 = vrot.lane.b32.xlu0 %v1121, 64
    %v1130 = vpop.permute.xlu0 %1129
    %vm1132 = vcmask 517376
    %1133 = vst.msk [vmem:[#allocation2 + $0x8] sm:$0x3] %vm1132, %v1130
    %v1134 = vrot.slane %v1018, 6
    %1135 = vrot.lane.b32.xlu0 %v1134, 32
    %v1136 = vpop.permute.xlu0 %1135
    %v1137 = vsel %vm259, %v1136, 0
    %1139 = vmatprep.subr.mxu0 0.0
    %1140 = vmatpush1.msra.mxu0 0.0
    %1141 = vmatprep.subr.mxu0 0.0
    %1142 = vmatpush1.msra.mxu0 0.0
    %1143 = vmatprep.subr.mxu0 0.0
    %1144 = vmatpush1.msra.mxu0 0.0
    %1145 = vmatprep.subr.mxu0 0.0
    %1146 = vmatpush1.msra.mxu0 0.0
    %1147 = vmatprep.subr.mxu0 0.0
    %1148 = vmatpush1.msra.mxu0 0.0
    %1149 = vmatprep.subr.mxu0 0.0
    %1150 = vmatpush1.msra.mxu0 0.0
    %1151 = vmatprep.subr.mxu0 0.0
    %1152 = vmatpush1.msra.mxu0 0.0
    %1153 = vmatprep.subr.mxu0 0.0
    %1154 = vmatpush1.msra.mxu0 0.0
    %1155 = vmatprep.subr.mxu0 0.0
    %1156 = vmatpush1.msra.mxu0 0.0
    %1157 = vmatprep.subr.mxu0 0.0
    %1158 = vmatpush1.msra.mxu0 0.0
    %1159 = vmatprep.subr.mxu0 0.0
    %1160 = vmatpush1.msra.mxu0 0.0
    %1161 = vmatprep.subr.mxu0 0.0
    %1162 = vmatpush1.msra.mxu0 0.0
    %1163 = vmatprep.subr.mxu0 0.0
    %1164 = vmatpush1.msra.mxu0 %v254
    %1165 = vmatprep.subr.mxu0 0.0
    %1166 = vmatpush1.msra.mxu0 %v253
    %1167 = vmatprep.subr.mxu0 0.0
    %1168 = vmatpush1.msra.mxu0 %v252
    %1169 = vmatprep.subr.mxu0 0.0
    %1170 = vmatpush1.msra.mxu0 %v251
    %1171 = vmatprep.subr.mxu0 0.0
    %1172 = vmatpush2.msra.mxu0 0.0
    %1173 = vmatprep.subr.mxu0 0.0
    %1174 = vmatpush2.msra.mxu0 0.0
    %1175 = vmatprep.subr.mxu0 0.0
    %1176 = vmatpush2.msra.mxu0 0.0
    %1177 = vmatprep.subr.mxu0 0.0
    %1178 = vmatpush2.msra.mxu0 0.0
    %1179 = vmatprep.subr.mxu0 0.0
    %1180 = vmatpush2.msra.mxu0 0.0
    %1181 = vmatprep.subr.mxu0 0.0
    %1182 = vmatpush2.msra.mxu0 0.0
    %1183 = vmatprep.subr.mxu0 0.0
    %1184 = vmatpush2.msra.mxu0 0.0
    %1185 = vmatprep.subr.mxu0 0.0
    %1186 = vmatpush2.msra.mxu0 0.0
    %1187 = vmatprep.subr.mxu0 0.0
    %1188 = vmatpush2.msra.mxu0 0.0
    %1189 = vmatprep.subr.mxu0 0.0
    %1190 = vmatpush2.msra.mxu0 0.0
    %1191 = vmatprep.subr.mxu0 0.0
    %1192 = vmatpush2.msra.mxu0 0.0
    %1193 = vmatprep.subr.mxu0 0.0
    %1194 = vmatpush2.msra.mxu0 0.0
    %1195 = vmatprep.subr.mxu0 0.0
    %1196 = vmatpush2.msra.mxu0 0.0
    %1197 = vmatprep.subr.mxu0 0.0
    %1198 = vmatpush2.msra.mxu0 0.0
    %1199 = vmatprep.subr.mxu0 0.0
    %1200 = vmatpush2.msra.mxu0 0.0
    %1201 = vmatprep.subr.mxu0 0.0
    %1202 = vmatpush2.msra.mxu0 0.0
    %1203 = vmatprep.mubr.f32.mxu0 0.0
    %1204 = vmatmul.mubr.f32.gmra.mxu0 %v1137
    %v1205 = vpop.f32.mrf.mxu0
    %v1206 = vadd.f32 0.0, %v1205
    %v1207 = vpop.f32.mrf.mxu0
    %1208 = vdwg.mxu0
    %v1209 = vadd.f32 %v247, %v1206
    %v1210 = vxor.u32 %v1209, 2147483648
    %v1211 = vmul.f32 %v1210, 1.442695
    %v1212 = vpow.pop %v1211
    %v1213 = vadd.f32 %v1212, 1.0
    %v1214 = vrcp.pop %v1213
    %v1215 = vmul.f32 1.0, %v1214
    %v1216 = vtanh.pop %v1209
    %v1218 = vrot.slane %v1012, 6
    %v1220 = vmul.f32 %v1215, %v1218
    %1222 = vrot.lane.b32.xlu0 %v1216, 64
    %v1223 = vpop.permute.xlu0 %1222
    %v1225 = vmul.f32 %v1215, %v1223
    %1227 = vrot.lane.b32.xlu0 %v1225, 32
    %v1228 = vpop.permute.xlu0 %1227
    %v1230 = vadd.f32 %v1220, %v1228
    %v1231 = vtanh.pop %v1230
    %1233 = vrot.lane.b32.xlu0 %v1231, 64
    %v1234 = vpop.permute.xlu0 %1233
    %v1236 = vmul.f32 %v1215, %v1234
    %1237 = vrot.lane.b32.xlu0 %v1121, 32
    %v1238 = vpop.permute.xlu0 %1237
    %v1239 = vsel %vm259, %v1238, 0
    %1241 = vmatprep.subr.mxu0 0.0
    %1242 = vmatpush1.msra.mxu0 0.0
    %1243 = vmatprep.subr.mxu0 0.0
    %1244 = vmatpush1.msra.mxu0 0.0
    %1245 = vmatprep.subr.mxu0 0.0
    %1246 = vmatpush1.msra.mxu0 0.0
    %1247 = vmatprep.subr.mxu0 0.0
    %1248 = vmatpush1.msra.mxu0 0.0
    %1249 = vmatprep.subr.mxu0 0.0
    %1250 = vmatpush1.msra.mxu0 0.0
    %1251 = vmatprep.subr.mxu0 0.0
    %1252 = vmatpush1.msra.mxu0 0.0
    %1253 = vmatprep.subr.mxu0 0.0
    %1254 = vmatpush1.msra.mxu0 0.0
    %1255 = vmatprep.subr.mxu0 0.0
    %1256 = vmatpush1.msra.mxu0 0.0
    %1257 = vmatprep.subr.mxu0 0.0
    %1258 = vmatpush1.msra.mxu0 0.0
    %1259 = vmatprep.subr.mxu0 0.0
    %1260 = vmatpush1.msra.mxu0 0.0
    %1261 = vmatprep.subr.mxu0 0.0
    %1262 = vmatpush1.msra.mxu0 0.0
    %1263 = vmatprep.subr.mxu0 0.0
    %1264 = vmatpush1.msra.mxu0 0.0
    %1265 = vmatprep.subr.mxu0 0.0
    %1266 = vmatpush1.msra.mxu0 %v258
    %1267 = vmatprep.subr.mxu0 0.0
    %1268 = vmatpush1.msra.mxu0 %v257
    %1269 = vmatprep.subr.mxu0 0.0
    %1270 = vmatpush1.msra.mxu0 %v256
    %1271 = vmatprep.subr.mxu0 0.0
    %1272 = vmatpush1.msra.mxu0 %v255
    %1273 = vmatprep.subr.mxu0 0.0
    %1274 = vmatpush2.msra.mxu0 0.0
    %1275 = vmatprep.subr.mxu0 0.0
    %1276 = vmatpush2.msra.mxu0 0.0
    %1277 = vmatprep.subr.mxu0 0.0
    %1278 = vmatpush2.msra.mxu0 0.0
    %1279 = vmatprep.subr.mxu0 0.0
    %1280 = vmatpush2.msra.mxu0 0.0
    %1281 = vmatprep.subr.mxu0 0.0
    %1282 = vmatpush2.msra.mxu0 0.0
    %1283 = vmatprep.subr.mxu0 0.0
    %1284 = vmatpush2.msra.mxu0 0.0
    %1285 = vmatprep.subr.mxu0 0.0
    %1286 = vmatpush2.msra.mxu0 0.0
    %1287 = vmatprep.subr.mxu0 0.0
    %1288 = vmatpush2.msra.mxu0 0.0
    %1289 = vmatprep.subr.mxu0 0.0
    %1290 = vmatpush2.msra.mxu0 0.0
    %1291 = vmatprep.subr.mxu0 0.0
    %1292 = vmatpush2.msra.mxu0 0.0
    %1293 = vmatprep.subr.mxu0 0.0
    %1294 = vmatpush2.msra.mxu0 0.0
    %1295 = vmatprep.subr.mxu0 0.0
    %1296 = vmatpush2.msra.mxu0 0.0
    %1297 = vmatprep.subr.mxu0 0.0
    %1298 = vmatpush2.msra.mxu0 0.0
    %1299 = vmatprep.subr.mxu0 0.0
    %1300 = vmatpush2.msra.mxu0 0.0
    %1301 = vmatprep.subr.mxu0 0.0
    %1302 = vmatpush2.msra.mxu0 0.0
    %1303 = vmatprep.subr.mxu0 0.0
    %1304 = vmatpush2.msra.mxu0 0.0
    %1305 = vmatprep.mubr.f32.mxu0 0.0
    %1306 = vmatmul.mubr.f32.gmra.mxu0 %v1239
    %v1307 = vpop.f32.mrf.mxu0
    %v1308 = vadd.f32 0.0, %v1307
    %v1309 = vpop.f32.mrf.mxu0
    %1310 = vdwg.mxu0
    %v1312 = vrot.slane %v1308, 2
    %v1314 = vadd.f32 %v243, %v1312
    %v1315 = vxor.u32 %v1314, 2147483648
    %v1316 = vmul.f32 %v1315, 1.442695
    %v1317 = vpow.pop %v1316
    %v1318 = vadd.f32 %v1317, 1.0
    %v1319 = vrcp.pop %v1318
    %v1320 = vmul.f32 1.0, %v1319
    %v1321 = vtanh.pop %v1314
    %v1323 = vrot.slane %v1115, 2
    %v1325 = vmul.f32 %v1320, %v1323
    %1327 = vrot.lane.b32.xlu0 %v1321, 64
    %v1328 = vpop.permute.xlu0 %1327
    %v1330 = vmul.f32 %v1320, %v1328
    %1332 = vrot.lane.b32.xlu0 %v1330, 32
    %v1333 = vpop.permute.xlu0 %1332
    %v1335 = vadd.f32 %v1325, %v1333
    %v1336 = vtanh.pop %v1335
    %1338 = vrot.lane.b32.xlu0 %v1336, 64
    %v1339 = vpop.permute.xlu0 %1338
    %v1341 = vmul.f32 %v1320, %v1339
    %1343 = vrot.lane.b32.xlu0 %v1236, 32
    %v1344 = vpop.permute.xlu0 %1343
    %1346 = vst.msk [vmem:[#allocation2 + $0x8] sm:$0x3] %vm460, %v1344
    %1348 = vrot.lane.b32.xlu0 %v1341, 64
    %v1349 = vpop.permute.xlu0 %1348
    %1351 = vst.msk [vmem:[#allocation2] sm:$0xc0] %vm466, %v1349
    %v1352 = vsel %vm259, %v1344, 0
    %1354 = vmatprep.subr.mxu0 0.0
    %1355 = vmatpush1.msra.mxu0 0.0
    %1356 = vmatprep.subr.mxu0 0.0
    %1357 = vmatpush1.msra.mxu0 0.0
    %1358 = vmatprep.subr.mxu0 0.0
    %1359 = vmatpush1.msra.mxu0 0.0
    %1360 = vmatprep.subr.mxu0 0.0
    %1361 = vmatpush1.msra.mxu0 0.0
    %1362 = vmatprep.subr.mxu0 0.0
    %1363 = vmatpush1.msra.mxu0 0.0
    %1364 = vmatprep.subr.mxu0 0.0
    %1365 = vmatpush1.msra.mxu0 0.0
    %1366 = vmatprep.subr.mxu0 0.0
    %1367 = vmatpush1.msra.mxu0 0.0
    %1368 = vmatprep.subr.mxu0 0.0
    %1369 = vmatpush1.msra.mxu0 0.0
    %1370 = vmatprep.subr.mxu0 0.0
    %1371 = vmatpush1.msra.mxu0 0.0
    %1372 = vmatprep.subr.mxu0 0.0
    %1373 = vmatpush1.msra.mxu0 0.0
    %1374 = vmatprep.subr.mxu0 0.0
    %1375 = vmatpush1.msra.mxu0 0.0
    %1376 = vmatprep.subr.mxu0 0.0
    %1377 = vmatpush1.msra.mxu0 0.0
    %1378 = vmatprep.subr.mxu0 0.0
    %1379 = vmatpush1.msra.mxu0 %v254
    %1380 = vmatprep.subr.mxu0 0.0
    %1381 = vmatpush1.msra.mxu0 %v253
    %1382 = vmatprep.subr.mxu0 0.0
    %1383 = vmatpush1.msra.mxu0 %v252
    %1384 = vmatprep.subr.mxu0 0.0
    %1385 = vmatpush1.msra.mxu0 %v251
    %1386 = vmatprep.subr.mxu0 0.0
    %1387 = vmatpush2.msra.mxu0 0.0
    %1388 = vmatprep.subr.mxu0 0.0
    %1389 = vmatpush2.msra.mxu0 0.0
    %1390 = vmatprep.subr.mxu0 0.0
    %1391 = vmatpush2.msra.mxu0 0.0
    %1392 = vmatprep.subr.mxu0 0.0
    %1393 = vmatpush2.msra.mxu0 0.0
    %1394 = vmatprep.subr.mxu0 0.0
    %1395 = vmatpush2.msra.mxu0 0.0
    %1396 = vmatprep.subr.mxu0 0.0
    %1397 = vmatpush2.msra.mxu0 0.0
    %1398 = vmatprep.subr.mxu0 0.0
    %1399 = vmatpush2.msra.mxu0 0.0
    %1400 = vmatprep.subr.mxu0 0.0
    %1401 = vmatpush2.msra.mxu0 0.0
    %1402 = vmatprep.subr.mxu0 0.0
    %1403 = vmatpush2.msra.mxu0 0.0
    %1404 = vmatprep.subr.mxu0 0.0
    %1405 = vmatpush2.msra.mxu0 0.0
    %1406 = vmatprep.subr.mxu0 0.0
    %1407 = vmatpush2.msra.mxu0 0.0
    %1408 = vmatprep.subr.mxu0 0.0
    %1409 = vmatpush2.msra.mxu0 0.0
    %1410 = vmatprep.subr.mxu0 0.0
    %1411 = vmatpush2.msra.mxu0 0.0
    %1412 = vmatprep.subr.mxu0 0.0
    %1413 = vmatpush2.msra.mxu0 0.0
    %1414 = vmatprep.subr.mxu0 0.0
    %1415 = vmatpush2.msra.mxu0 0.0
    %1416 = vmatprep.subr.mxu0 0.0
    %1417 = vmatpush2.msra.mxu0 0.0
    %1418 = vmatprep.mubr.f32.mxu0 0.0
    %1419 = vmatmul.mubr.f32.gmra.mxu0 %v1352
    %v1420 = vpop.f32.mrf.mxu0
    %v1421 = vadd.f32 0.0, %v1420
    %v1422 = vpop.f32.mrf.mxu0
    %1423 = vdwg.mxu0
    %v1425 = vrot.slane %v1421, 6
    %v1427 = vadd.f32 %v247, %v1425
    %v1428 = vxor.u32 %v1427, 2147483648
    %v1429 = vmul.f32 %v1428, 1.442695
    %v1430 = vpow.pop %v1429
    %v1431 = vadd.f32 %v1430, 1.0
    %v1432 = vrcp.pop %v1431
    %v1433 = vmul.f32 1.0, %v1432
    %v1434 = vtanh.pop %v1427
    %v1436 = vrot.slane %v1230, 6
    %v1438 = vmul.f32 %v1433, %v1436
    %1440 = vrot.lane.b32.xlu0 %v1434, 64
    %v1441 = vpop.permute.xlu0 %1440
    %v1443 = vmul.f32 %v1433, %v1441
    %1445 = vrot.lane.b32.xlu0 %v1443, 32
    %v1446 = vpop.permute.xlu0 %1445
    %v1448 = vadd.f32 %v1438, %v1446
    %v1449 = vtanh.pop %v1448
    %1451 = vrot.lane.b32.xlu0 %v1449, 64
    %v1452 = vpop.permute.xlu0 %1451
    %v1454 = vmul.f32 %v1433, %v1452
    %v1455 = vrot.slane %v1341, 6
    %1456 = vrot.lane.b32.xlu0 %v1455, 32
    %v1457 = vpop.permute.xlu0 %1456
    %v1458 = vsel %vm259, %v1457, 0
    %1460 = vmatprep.subr.mxu0 0.0
    %1461 = vmatpush1.msra.mxu0 0.0
    %1462 = vmatprep.subr.mxu0 0.0
    %1463 = vmatpush1.msra.mxu0 0.0
    %1464 = vmatprep.subr.mxu0 0.0
    %1465 = vmatpush1.msra.mxu0 0.0
    %1466 = vmatprep.subr.mxu0 0.0
    %1467 = vmatpush1.msra.mxu0 0.0
    %1468 = vmatprep.subr.mxu0 0.0
    %1469 = vmatpush1.msra.mxu0 0.0
    %1470 = vmatprep.subr.mxu0 0.0
    %1471 = vmatpush1.msra.mxu0 0.0
    %1472 = vmatprep.subr.mxu0 0.0
    %1473 = vmatpush1.msra.mxu0 0.0
    %1474 = vmatprep.subr.mxu0 0.0
    %1475 = vmatpush1.msra.mxu0 0.0
    %1476 = vmatprep.subr.mxu0 0.0
    %1477 = vmatpush1.msra.mxu0 0.0
    %1478 = vmatprep.subr.mxu0 0.0
    %1479 = vmatpush1.msra.mxu0 0.0
    %1480 = vmatprep.subr.mxu0 0.0
    %1481 = vmatpush1.msra.mxu0 0.0
    %1482 = vmatprep.subr.mxu0 0.0
    %1483 = vmatpush1.msra.mxu0 0.0
    %1484 = vmatprep.subr.mxu0 0.0
    %1485 = vmatpush1.msra.mxu0 %v258
    %1486 = vmatprep.subr.mxu0 0.0
    %1487 = vmatpush1.msra.mxu0 %v257
    %1488 = vmatprep.subr.mxu0 0.0
    %1489 = vmatpush1.msra.mxu0 %v256
    %1490 = vmatprep.subr.mxu0 0.0
    %1491 = vmatpush1.msra.mxu0 %v255
    %1492 = vmatprep.subr.mxu0 0.0
    %1493 = vmatpush2.msra.mxu0 0.0
    %1494 = vmatprep.subr.mxu0 0.0
    %1495 = vmatpush2.msra.mxu0 0.0
    %1496 = vmatprep.subr.mxu0 0.0
    %1497 = vmatpush2.msra.mxu0 0.0
    %1498 = vmatprep.subr.mxu0 0.0
    %1499 = vmatpush2.msra.mxu0 0.0
    %1500 = vmatprep.subr.mxu0 0.0
    %1501 = vmatpush2.msra.mxu0 0.0
    %1502 = vmatprep.subr.mxu0 0.0
    %1503 = vmatpush2.msra.mxu0 0.0
    %1504 = vmatprep.subr.mxu0 0.0
    %1505 = vmatpush2.msra.mxu0 0.0
    %1506 = vmatprep.subr.mxu0 0.0
    %1507 = vmatpush2.msra.mxu0 0.0
    %1508 = vmatprep.subr.mxu0 0.0
    %1509 = vmatpush2.msra.mxu0 0.0
    %1510 = vmatprep.subr.mxu0 0.0
    %1511 = vmatpush2.msra.mxu0 0.0
    %1512 = vmatprep.subr.mxu0 0.0
    %1513 = vmatpush2.msra.mxu0 0.0
    %1514 = vmatprep.subr.mxu0 0.0
    %1515 = vmatpush2.msra.mxu0 0.0
    %1516 = vmatprep.subr.mxu0 0.0
    %1517 = vmatpush2.msra.mxu0 0.0
    %1518 = vmatprep.subr.mxu0 0.0
    %1519 = vmatpush2.msra.mxu0 0.0
    %1520 = vmatprep.subr.mxu0 0.0
    %1521 = vmatpush2.msra.mxu0 0.0
    %1522 = vmatprep.subr.mxu0 0.0
    %1523 = vmatpush2.msra.mxu0 0.0
    %1524 = vmatprep.mubr.f32.mxu0 0.0
    %1525 = vmatmul.mubr.f32.gmra.mxu0 %v1458
    %v1526 = vpop.f32.mrf.mxu0
    %v1527 = vadd.f32 0.0, %v1526
    %v1528 = vpop.f32.mrf.mxu0
    %1529 = vdwg.mxu0
    %v1531 = vrot.slane %v1527, 4
    %v1533 = vadd.f32 %v243, %v1531
    %v1534 = vxor.u32 %v1533, 2147483648
    %v1535 = vmul.f32 %v1534, 1.442695
    %v1536 = vpow.pop %v1535
    %v1537 = vadd.f32 %v1536, 1.0
    %v1538 = vrcp.pop %v1537
    %v1539 = vmul.f32 1.0, %v1538
    %v1540 = vtanh.pop %v1533
    %v1542 = vrot.slane %v1335, 2
    %v1544 = vmul.f32 %v1539, %v1542
    %1546 = vrot.lane.b32.xlu0 %v1540, 64
    %v1547 = vpop.permute.xlu0 %1546
    %v1549 = vmul.f32 %v1539, %v1547
    %1551 = vrot.lane.b32.xlu0 %v1549, 32
    %v1552 = vpop.permute.xlu0 %1551
    %v1554 = vadd.f32 %v1544, %v1552
    %v1555 = vtanh.pop %v1554
    %1557 = vrot.lane.b32.xlu0 %v1555, 64
    %v1558 = vpop.permute.xlu0 %1557
    %v1560 = vmul.f32 %v1539, %v1558
    %1562 = vrot.lane.b32.xlu0 %v1454, 32
    %v1563 = vpop.permute.xlu0 %1562
    %1565 = vst.msk [vmem:[#allocation2 + $0x8] sm:$0xc] %vm681, %v1563
    %1567 = vrot.lane.b32.xlu0 %v1560, 64
    %v1568 = vpop.permute.xlu0 %1567
    %1570 = vst.msk [vmem:[#allocation2] sm:$0x30] %vm687, %v1568
    %v1571 = vrot.slane %v1454, 2
    %1572 = vrot.lane.b32.xlu0 %v1571, 32
    %v1573 = vpop.permute.xlu0 %1572
    %v1574 = vsel %vm259, %v1573, 0
    %1576 = vmatprep.subr.mxu0 0.0
    %1577 = vmatpush1.msra.mxu0 0.0
    %1578 = vmatprep.subr.mxu0 0.0
    %1579 = vmatpush1.msra.mxu0 0.0
    %1580 = vmatprep.subr.mxu0 0.0
    %1581 = vmatpush1.msra.mxu0 0.0
    %1582 = vmatprep.subr.mxu0 0.0
    %1583 = vmatpush1.msra.mxu0 0.0
    %1584 = vmatprep.subr.mxu0 0.0
    %1585 = vmatpush1.msra.mxu0 0.0
    %1586 = vmatprep.subr.mxu0 0.0
    %1587 = vmatpush1.msra.mxu0 0.0
    %1588 = vmatprep.subr.mxu0 0.0
    %1589 = vmatpush1.msra.mxu0 0.0
    %1590 = vmatprep.subr.mxu0 0.0
    %1591 = vmatpush1.msra.mxu0 0.0
    %1592 = vmatprep.subr.mxu0 0.0
    %1593 = vmatpush1.msra.mxu0 0.0
    %1594 = vmatprep.subr.mxu0 0.0
    %1595 = vmatpush1.msra.mxu0 0.0
    %1596 = vmatprep.subr.mxu0 0.0
    %1597 = vmatpush1.msra.mxu0 0.0
    %1598 = vmatprep.subr.mxu0 0.0
    %1599 = vmatpush1.msra.mxu0 0.0
    %1600 = vmatprep.subr.mxu0 0.0
    %1601 = vmatpush1.msra.mxu0 %v254
    %1602 = vmatprep.subr.mxu0 0.0
    %1603 = vmatpush1.msra.mxu0 %v253
    %1604 = vmatprep.subr.mxu0 0.0
    %1605 = vmatpush1.msra.mxu0 %v252
    %1606 = vmatprep.subr.mxu0 0.0
    %1607 = vmatpush1.msra.mxu0 %v251
    %1608 = vmatprep.subr.mxu0 0.0
    %1609 = vmatpush2.msra.mxu0 0.0
    %1610 = vmatprep.subr.mxu0 0.0
    %1611 = vmatpush2.msra.mxu0 0.0
    %1612 = vmatprep.subr.mxu0 0.0
    %1613 = vmatpush2.msra.mxu0 0.0
    %1614 = vmatprep.subr.mxu0 0.0
    %1615 = vmatpush2.msra.mxu0 0.0
    %1616 = vmatprep.subr.mxu0 0.0
    %1617 = vmatpush2.msra.mxu0 0.0
    %1618 = vmatprep.subr.mxu0 0.0
    %1619 = vmatpush2.msra.mxu0 0.0
    %1620 = vmatprep.subr.mxu0 0.0
    %1621 = vmatpush2.msra.mxu0 0.0
    %1622 = vmatprep.subr.mxu0 0.0
    %1623 = vmatpush2.msra.mxu0 0.0
    %1624 = vmatprep.subr.mxu0 0.0
    %1625 = vmatpush2.msra.mxu0 0.0
    %1626 = vmatprep.subr.mxu0 0.0
    %1627 = vmatpush2.msra.mxu0 0.0
    %1628 = vmatprep.subr.mxu0 0.0
    %1629 = vmatpush2.msra.mxu0 0.0
    %1630 = vmatprep.subr.mxu0 0.0
    %1631 = vmatpush2.msra.mxu0 0.0
    %1632 = vmatprep.subr.mxu0 0.0
    %1633 = vmatpush2.msra.mxu0 0.0
    %1634 = vmatprep.subr.mxu0 0.0
    %1635 = vmatpush2.msra.mxu0 0.0
    %1636 = vmatprep.subr.mxu0 0.0
    %1637 = vmatpush2.msra.mxu0 0.0
    %1638 = vmatprep.subr.mxu0 0.0
    %1639 = vmatpush2.msra.mxu0 0.0
    %1640 = vmatprep.mubr.f32.mxu0 0.0
    %1641 = vmatmul.mubr.f32.gmra.mxu0 %v1574
    %v1642 = vpop.f32.mrf.mxu0
    %v1643 = vadd.f32 0.0, %v1642
    %v1644 = vpop.f32.mrf.mxu0
    %1645 = vdwg.mxu0
    %v1647 = vrot.slane %v1643, 4
    %v1649 = vadd.f32 %v247, %v1647
    %v1650 = vxor.u32 %v1649, 2147483648
    %v1651 = vmul.f32 %v1650, 1.442695
    %v1652 = vpow.pop %v1651
    %v1653 = vadd.f32 %v1652, 1.0
    %v1654 = vrcp.pop %v1653
    %v1655 = vmul.f32 1.0, %v1654
    %v1656 = vtanh.pop %v1649
    %v1658 = vrot.slane %v1448, 6
    %v1660 = vmul.f32 %v1655, %v1658
    %1662 = vrot.lane.b32.xlu0 %v1656, 64
    %v1663 = vpop.permute.xlu0 %1662
    %v1665 = vmul.f32 %v1655, %v1663
    %1667 = vrot.lane.b32.xlu0 %v1665, 32
    %v1668 = vpop.permute.xlu0 %1667
    %v1670 = vadd.f32 %v1660, %v1668
    %v1671 = vtanh.pop %v1670
    %1673 = vrot.lane.b32.xlu0 %v1671, 64
    %v1674 = vpop.permute.xlu0 %1673
    %v1676 = vmul.f32 %v1655, %v1674
    %v1677 = vrot.slane %v1560, 4
    %1678 = vrot.lane.b32.xlu0 %v1677, 32
    %v1679 = vpop.permute.xlu0 %1678
    %v1680 = vsel %vm259, %v1679, 0
    %1682 = vmatprep.subr.mxu0 0.0
    %1683 = vmatpush1.msra.mxu0 0.0
    %1684 = vmatprep.subr.mxu0 0.0
    %1685 = vmatpush1.msra.mxu0 0.0
    %1686 = vmatprep.subr.mxu0 0.0
    %1687 = vmatpush1.msra.mxu0 0.0
    %1688 = vmatprep.subr.mxu0 0.0
    %1689 = vmatpush1.msra.mxu0 0.0
    %1690 = vmatprep.subr.mxu0 0.0
    %1691 = vmatpush1.msra.mxu0 0.0
    %1692 = vmatprep.subr.mxu0 0.0
    %1693 = vmatpush1.msra.mxu0 0.0
    %1694 = vmatprep.subr.mxu0 0.0
    %1695 = vmatpush1.msra.mxu0 0.0
    %1696 = vmatprep.subr.mxu0 0.0
    %1697 = vmatpush1.msra.mxu0 0.0
    %1698 = vmatprep.subr.mxu0 0.0
    %1699 = vmatpush1.msra.mxu0 0.0
    %1700 = vmatprep.subr.mxu0 0.0
    %1701 = vmatpush1.msra.mxu0 0.0
    %1702 = vmatprep.subr.mxu0 0.0
    %1703 = vmatpush1.msra.mxu0 0.0
    %1704 = vmatprep.subr.mxu0 0.0
    %1705 = vmatpush1.msra.mxu0 0.0
    %1706 = vmatprep.subr.mxu0 0.0
    %1707 = vmatpush1.msra.mxu0 %v258
    %1708 = vmatprep.subr.mxu0 0.0
    %1709 = vmatpush1.msra.mxu0 %v257
    %1710 = vmatprep.subr.mxu0 0.0
    %1711 = vmatpush1.msra.mxu0 %v256
    %1712 = vmatprep.subr.mxu0 0.0
    %1713 = vmatpush1.msra.mxu0 %v255
    %1714 = vmatprep.subr.mxu0 0.0
    %1715 = vmatpush2.msra.mxu0 0.0
    %1716 = vmatprep.subr.mxu0 0.0
    %1717 = vmatpush2.msra.mxu0 0.0
    %1718 = vmatprep.subr.mxu0 0.0
    %1719 = vmatpush2.msra.mxu0 0.0
    %1720 = vmatprep.subr.mxu0 0.0
    %1721 = vmatpush2.msra.mxu0 0.0
    %1722 = vmatprep.subr.mxu0 0.0
    %1723 = vmatpush2.msra.mxu0 0.0
    %1724 = vmatprep.subr.mxu0 0.0
    %1725 = vmatpush2.msra.mxu0 0.0
    %1726 = vmatprep.subr.mxu0 0.0
    %1727 = vmatpush2.msra.mxu0 0.0
    %1728 = vmatprep.subr.mxu0 0.0
    %1729 = vmatpush2.msra.mxu0 0.0
    %1730 = vmatprep.subr.mxu0 0.0
    %1731 = vmatpush2.msra.mxu0 0.0
    %1732 = vmatprep.subr.mxu0 0.0
    %1733 = vmatpush2.msra.mxu0 0.0
    %1734 = vmatprep.subr.mxu0 0.0
    %1735 = vmatpush2.msra.mxu0 0.0
    %1736 = vmatprep.subr.mxu0 0.0
    %1737 = vmatpush2.msra.mxu0 0.0
    %1738 = vmatprep.subr.mxu0 0.0
    %1739 = vmatpush2.msra.mxu0 0.0
    %1740 = vmatprep.subr.mxu0 0.0
    %1741 = vmatpush2.msra.mxu0 0.0
    %1742 = vmatprep.subr.mxu0 0.0
    %1743 = vmatpush2.msra.mxu0 0.0
    %1744 = vmatprep.subr.mxu0 0.0
    %1745 = vmatpush2.msra.mxu0 0.0
    %1746 = vmatprep.mubr.f32.mxu0 0.0
    %1747 = vmatmul.mubr.f32.gmra.mxu0 %v1680
    %v1748 = vpop.f32.mrf.mxu0
    %v1749 = vadd.f32 0.0, %v1748
    %v1750 = vpop.f32.mrf.mxu0
    %1751 = vdwg.mxu0
    %v1753 = vrot.slane %v1749, 6
    %v1755 = vadd.f32 %v243, %v1753
    %v1756 = vxor.u32 %v1755, 2147483648
    %v1757 = vmul.f32 %v1756, 1.442695
    %v1758 = vpow.pop %v1757
    %v1759 = vadd.f32 %v1758, 1.0
    %v1760 = vrcp.pop %v1759
    %v1761 = vmul.f32 1.0, %v1760
    %v1762 = vtanh.pop %v1755
    %v1764 = vrot.slane %v1554, 2
    %v1766 = vmul.f32 %v1761, %v1764
    %1768 = vrot.lane.b32.xlu0 %v1762, 64
    %v1769 = vpop.permute.xlu0 %1768
    %v1771 = vmul.f32 %v1761, %v1769
    %1773 = vrot.lane.b32.xlu0 %v1771, 32
    %v1774 = vpop.permute.xlu0 %1773
    %v1776 = vadd.f32 %v1766, %v1774
    %v1777 = vtanh.pop %v1776
    %1779 = vrot.lane.b32.xlu0 %v1777, 64
    %v1780 = vpop.permute.xlu0 %1779
    %v1782 = vmul.f32 %v1761, %v1780
    %1784 = vrot.lane.b32.xlu0 %v1676, 32
    %v1785 = vpop.permute.xlu0 %1784
    %1787 = vst.msk [vmem:[#allocation2 + $0x8] sm:$0x30] %vm905, %v1785
    %1789 = vrot.lane.b32.xlu0 %v1782, 64
    %v1790 = vpop.permute.xlu0 %1789
    %1792 = vst.msk [vmem:[#allocation2] sm:$0xc] %vm911, %v1790
    %v1793 = vrot.slane %v1676, 4
    %1794 = vrot.lane.b32.xlu0 %v1793, 32
    %v1795 = vpop.permute.xlu0 %1794
    %v1796 = vsel %vm259, %v1795, 0
    %1798 = vmatprep.subr.mxu0 0.0
    %1799 = vmatpush1.msra.mxu0 0.0
    %1800 = vmatprep.subr.mxu0 0.0
    %1801 = vmatpush1.msra.mxu0 0.0
    %1802 = vmatprep.subr.mxu0 0.0
    %1803 = vmatpush1.msra.mxu0 0.0
    %1804 = vmatprep.subr.mxu0 0.0
    %1805 = vmatpush1.msra.mxu0 0.0
    %1806 = vmatprep.subr.mxu0 0.0
    %1807 = vmatpush1.msra.mxu0 0.0
    %1808 = vmatprep.subr.mxu0 0.0
    %1809 = vmatpush1.msra.mxu0 0.0
    %1810 = vmatprep.subr.mxu0 0.0
    %1811 = vmatpush1.msra.mxu0 0.0
    %1812 = vmatprep.subr.mxu0 0.0
    %1813 = vmatpush1.msra.mxu0 0.0
    %1814 = vmatprep.subr.mxu0 0.0
    %1815 = vmatpush1.msra.mxu0 0.0
    %1816 = vmatprep.subr.mxu0 0.0
    %1817 = vmatpush1.msra.mxu0 0.0
    %1818 = vmatprep.subr.mxu0 0.0
    %1819 = vmatpush1.msra.mxu0 0.0
    %1820 = vmatprep.subr.mxu0 0.0
    %1821 = vmatpush1.msra.mxu0 0.0
    %1822 = vmatprep.subr.mxu0 0.0
    %1823 = vmatpush1.msra.mxu0 %v254
    %1824 = vmatprep.subr.mxu0 0.0
    %1825 = vmatpush1.msra.mxu0 %v253
    %1826 = vmatprep.subr.mxu0 0.0
    %1827 = vmatpush1.msra.mxu0 %v252
    %1828 = vmatprep.subr.mxu0 0.0
    %1829 = vmatpush1.msra.mxu0 %v251
    %1830 = vmatprep.subr.mxu0 0.0
    %1831 = vmatpush2.msra.mxu0 0.0
    %1832 = vmatprep.subr.mxu0 0.0
    %1833 = vmatpush2.msra.mxu0 0.0
    %1834 = vmatprep.subr.mxu0 0.0
    %1835 = vmatpush2.msra.mxu0 0.0
    %1836 = vmatprep.subr.mxu0 0.0
    %1837 = vmatpush2.msra.mxu0 0.0
    %1838 = vmatprep.subr.mxu0 0.0
    %1839 = vmatpush2.msra.mxu0 0.0
    %1840 = vmatprep.subr.mxu0 0.0
    %1841 = vmatpush2.msra.mxu0 0.0
    %1842 = vmatprep.subr.mxu0 0.0
    %1843 = vmatpush2.msra.mxu0 0.0
    %1844 = vmatprep.subr.mxu0 0.0
    %1845 = vmatpush2.msra.mxu0 0.0
    %1846 = vmatprep.subr.mxu0 0.0
    %1847 = vmatpush2.msra.mxu0 0.0
    %1848 = vmatprep.subr.mxu0 0.0
    %1849 = vmatpush2.msra.mxu0 0.0
    %1850 = vmatprep.subr.mxu0 0.0
    %1851 = vmatpush2.msra.mxu0 0.0
    %1852 = vmatprep.subr.mxu0 0.0
    %1853 = vmatpush2.msra.mxu0 0.0
    %1854 = vmatprep.subr.mxu0 0.0
    %1855 = vmatpush2.msra.mxu0 0.0
    %1856 = vmatprep.subr.mxu0 0.0
    %1857 = vmatpush2.msra.mxu0 0.0
    %1858 = vmatprep.subr.mxu0 0.0
    %1859 = vmatpush2.msra.mxu0 0.0
    %1860 = vmatprep.subr.mxu0 0.0
    %1861 = vmatpush2.msra.mxu0 0.0
    %1862 = vmatprep.mubr.f32.mxu0 0.0
    %1863 = vmatmul.mubr.f32.gmra.mxu0 %v1796
    %v1864 = vpop.f32.mrf.mxu0
    %v1865 = vadd.f32 0.0, %v1864
    %v1866 = vpop.f32.mrf.mxu0
    %1867 = vdwg.mxu0
    %v1869 = vrot.slane %v1865, 2
    %v1871 = vadd.f32 %v247, %v1869
    %v1872 = vxor.u32 %v1871, 2147483648
    %v1873 = vmul.f32 %v1872, 1.442695
    %v1874 = vpow.pop %v1873
    %v1875 = vadd.f32 %v1874, 1.0
    %v1876 = vrcp.pop %v1875
    %v1877 = vmul.f32 1.0, %v1876
    %v1878 = vtanh.pop %v1871
    %v1880 = vrot.slane %v1670, 6
    %v1882 = vmul.f32 %v1877, %v1880
    %1884 = vrot.lane.b32.xlu0 %v1878, 64
    %v1885 = vpop.permute.xlu0 %1884
    %v1887 = vmul.f32 %v1877, %v1885
    %1889 = vrot.lane.b32.xlu0 %v1887, 32
    %v1890 = vpop.permute.xlu0 %1889
    %v1892 = vadd.f32 %v1882, %v1890
    %v1893 = vtanh.pop %v1892
    %1895 = vrot.lane.b32.xlu0 %v1893, 64
    %v1896 = vpop.permute.xlu0 %1895
    %v1898 = vmul.f32 %v1877, %v1896
    %v1899 = vrot.slane %v1782, 2
    %1900 = vrot.lane.b32.xlu0 %v1899, 32
    %v1901 = vpop.permute.xlu0 %1900
    %v1902 = vsel %vm259, %v1901, 0
    %1904 = vmatprep.subr.mxu0 0.0
    %1905 = vmatpush1.msra.mxu0 0.0
    %1906 = vmatprep.subr.mxu0 0.0
    %1907 = vmatpush1.msra.mxu0 0.0
    %1908 = vmatprep.subr.mxu0 0.0
    %1909 = vmatpush1.msra.mxu0 0.0
    %1910 = vmatprep.subr.mxu0 0.0
    %1911 = vmatpush1.msra.mxu0 0.0
    %1912 = vmatprep.subr.mxu0 0.0
    %1913 = vmatpush1.msra.mxu0 0.0
    %1914 = vmatprep.subr.mxu0 0.0
    %1915 = vmatpush1.msra.mxu0 0.0
    %1916 = vmatprep.subr.mxu0 0.0
    %1917 = vmatpush1.msra.mxu0 0.0
    %1918 = vmatprep.subr.mxu0 0.0
    %1919 = vmatpush1.msra.mxu0 0.0
    %1920 = vmatprep.subr.mxu0 0.0
    %1921 = vmatpush1.msra.mxu0 0.0
    %1922 = vmatprep.subr.mxu0 0.0
    %1923 = vmatpush1.msra.mxu0 0.0
    %1924 = vmatprep.subr.mxu0 0.0
    %1925 = vmatpush1.msra.mxu0 0.0
    %1926 = vmatprep.subr.mxu0 0.0
    %1927 = vmatpush1.msra.mxu0 0.0
    %1928 = vmatprep.subr.mxu0 0.0
    %1929 = vmatpush1.msra.mxu0 %v258
    %1930 = vmatprep.subr.mxu0 0.0
    %1931 = vmatpush1.msra.mxu0 %v257
    %1932 = vmatprep.subr.mxu0 0.0
    %1933 = vmatpush1.msra.mxu0 %v256
    %1934 = vmatprep.subr.mxu0 0.0
    %1935 = vmatpush1.msra.mxu0 %v255
    %1936 = vmatprep.subr.mxu0 0.0
    %1937 = vmatpush2.msra.mxu0 0.0
    %1938 = vmatprep.subr.mxu0 0.0
    %1939 = vmatpush2.msra.mxu0 0.0
    %1940 = vmatprep.subr.mxu0 0.0
    %1941 = vmatpush2.msra.mxu0 0.0
    %1942 = vmatprep.subr.mxu0 0.0
    %1943 = vmatpush2.msra.mxu0 0.0
    %1944 = vmatprep.subr.mxu0 0.0
    %1945 = vmatpush2.msra.mxu0 0.0
    %1946 = vmatprep.subr.mxu0 0.0
    %1947 = vmatpush2.msra.mxu0 0.0
    %1948 = vmatprep.subr.mxu0 0.0
    %1949 = vmatpush2.msra.mxu0 0.0
    %1950 = vmatprep.subr.mxu0 0.0
    %1951 = vmatpush2.msra.mxu0 0.0
    %1952 = vmatprep.subr.mxu0 0.0
    %1953 = vmatpush2.msra.mxu0 0.0
    %1954 = vmatprep.subr.mxu0 0.0
    %1955 = vmatpush2.msra.mxu0 0.0
    %1956 = vmatprep.subr.mxu0 0.0
    %1957 = vmatpush2.msra.mxu0 0.0
    %1958 = vmatprep.subr.mxu0 0.0
    %1959 = vmatpush2.msra.mxu0 0.0
    %1960 = vmatprep.subr.mxu0 0.0
    %1961 = vmatpush2.msra.mxu0 0.0
    %1962 = vmatprep.subr.mxu0 0.0
    %1963 = vmatpush2.msra.mxu0 0.0
    %1964 = vmatprep.subr.mxu0 0.0
    %1965 = vmatpush2.msra.mxu0 0.0
    %1966 = vmatprep.subr.mxu0 0.0
    %1967 = vmatpush2.msra.mxu0 0.0
    %1968 = vmatprep.mubr.f32.mxu0 0.0
    %1969 = vmatmul.mubr.f32.gmra.mxu0 %v1902
    %v1970 = vpop.f32.mrf.mxu0
    %v1971 = vadd.f32 0.0, %v1970
    %v1972 = vpop.f32.mrf.mxu0
    %1973 = vdwg.mxu0
    %v1974 = vadd.f32 %v243, %v1971
    %v1975 = vxor.u32 %v1974, 2147483648
    %v1976 = vmul.f32 %v1975, 1.442695
    %v1977 = vpow.pop %v1976
    %v1978 = vadd.f32 %v1977, 1.0
    %v1979 = vrcp.pop %v1978
    %v1980 = vmul.f32 1.0, %v1979
    %v1981 = vtanh.pop %v1974
    %v1983 = vrot.slane %v1776, 2
    %v1985 = vmul.f32 %v1980, %v1983
    %1987 = vrot.lane.b32.xlu0 %v1981, 64
    %v1988 = vpop.permute.xlu0 %1987
    %v1990 = vmul.f32 %v1980, %v1988
    %1992 = vrot.lane.b32.xlu0 %v1990, 32
    %v1993 = vpop.permute.xlu0 %1992
    %v1995 = vadd.f32 %v1985, %v1993
    %v1996 = vtanh.pop %v1995
    %1998 = vrot.lane.b32.xlu0 %v1996, 64
    %v1999 = vpop.permute.xlu0 %1998
    %v2001 = vmul.f32 %v1980, %v1999
    %2003 = vrot.lane.b32.xlu0 %v1898, 32
    %v2004 = vpop.permute.xlu0 %2003
    %2006 = vst.msk [vmem:[#allocation2 + $0x8] sm:$0xc0] %vm1126, %v2004
    %2008 = vrot.lane.b32.xlu0 %v2001, 64
    %v2009 = vpop.permute.xlu0 %2008
    %2011 = vst.msk [vmem:[#allocation2] sm:$0x3] %vm1132, %v2009
    %v2012 = vld [vmem:[#allocation2] sm:$0xff]
    %v2013 = vld [vmem:[#allocation2 + $0x8] sm:$0xff]
    %v2014 = vld [vmem:[%s6] sm:$0xff]
    %v2015 = vld [vmem:[%s6 + $0x8] sm:$0xff]
    %v2016 = vld [vmem:[%s6 + $0x10] sm:$0xff]
    %v2017 = vld [vmem:[%s6 + $0x18] sm:$0xff]
    %v2018 = vld [vmem:[%s6 + $0x20] sm:$0xff]
    %v2019 = vld [vmem:[%s6 + $0x28] sm:$0xff]
    %v2020 = vld [vmem:[%s6 + $0x30] sm:$0xff]
    %v2021 = vld [vmem:[%s6 + $0x38] sm:$0xff]
    %v2022 = vld [vmem:[%s6 + $0x40] sm:$0xff]
    %v2023 = vld [vmem:[%s6 + $0x48] sm:$0xff]
    %v2024 = vld [vmem:[%s6 + $0x50] sm:$0xff]
    %v2025 = vld [vmem:[%s6 + $0x58] sm:$0xff]
    %v2026 = vld [vmem:[%s6 + $0x60] sm:$0xff]
    %v2027 = vld [vmem:[%s6 + $0x68] sm:$0xff]
    %v2028 = vld [vmem:[%s6 + $0x70] sm:$0xff]
    %v2029 = vld [vmem:[%s6 + $0x78] sm:$0xff]
    %v2030 = vld [vmem:[%s7] sm:$0x3]
    %v2032 = vlaneseq
    %v2033 = vshrl.u32 %v2032, 7
    %v2034 = vsub.s32 0, %v2033
    %v2035 = vrot.slane %v2030, %v2034
    %v2036 = vlaneseq
    %v2037 = vshrl.u32 %v2036, 7
    %v2038 = vsub.s32 1, %v2037
    %v2039 = vrot.slane %v2030, %v2038
    %vm2042 = vcmask 523264
    %v2044 = vsel %vm2042, %v2012, 0
    %v2047 = vsel %vm2042, %v2013, 0
    %2049 = vmatprep.subr.mxu0 0.0
    %2050 = vmatpush1.msra.mxu0 0.0
    %2051 = vmatprep.subr.mxu0 0.0
    %2052 = vmatpush1.msra.mxu0 0.0
    %2053 = vmatprep.subr.mxu0 0.0
    %2054 = vmatpush1.msra.mxu0 0.0
    %2055 = vmatprep.subr.mxu0 0.0
    %2056 = vmatpush1.msra.mxu0 0.0
    %2057 = vmatprep.subr.mxu0 0.0
    %2058 = vmatpush1.msra.mxu0 0.0
    %2059 = vmatprep.subr.mxu0 0.0
    %2060 = vmatpush1.msra.mxu0 0.0
    %2061 = vmatprep.subr.mxu0 0.0
    %2062 = vmatpush1.msra.mxu0 0.0
    %2063 = vmatprep.subr.mxu0 0.0
    %2064 = vmatpush1.msra.mxu0 0.0
    %2065 = vmatprep.subr.mxu0 %v2029
    %2066 = vmatpush1.msra.mxu0 %v2028
    %2067 = vmatprep.subr.mxu0 %v2027
    %2068 = vmatpush1.msra.mxu0 %v2026
    %2069 = vmatprep.subr.mxu0 %v2025
    %2070 = vmatpush1.msra.mxu0 %v2024
    %2071 = vmatprep.subr.mxu0 %v2023
    %2072 = vmatpush1.msra.mxu0 %v2022
    %2073 = vmatprep.subr.mxu0 %v2021
    %2074 = vmatpush1.msra.mxu0 %v2020
    %2075 = vmatprep.subr.mxu0 %v2019
    %2076 = vmatpush1.msra.mxu0 %v2018
    %2077 = vmatprep.subr.mxu0 %v2017
    %2078 = vmatpush1.msra.mxu0 %v2016
    %2079 = vmatprep.subr.mxu0 %v2015
    %2080 = vmatpush1.msra.mxu0 %v2014
    %2081 = vmatprep.subr.mxu0 0.0
    %2082 = vmatpush2.msra.mxu0 0.0
    %2083 = vmatprep.subr.mxu0 0.0
    %2084 = vmatpush2.msra.mxu0 0.0
    %2085 = vmatprep.subr.mxu0 0.0
    %2086 = vmatpush2.msra.mxu0 0.0
    %2087 = vmatprep.subr.mxu0 0.0
    %2088 = vmatpush2.msra.mxu0 0.0
    %2089 = vmatprep.subr.mxu0 0.0
    %2090 = vmatpush2.msra.mxu0 0.0
    %2091 = vmatprep.subr.mxu0 0.0
    %2092 = vmatpush2.msra.mxu0 0.0
    %2093 = vmatprep.subr.mxu0 0.0
    %2094 = vmatpush2.msra.mxu0 0.0
    %2095 = vmatprep.subr.mxu0 0.0
    %2096 = vmatpush2.msra.mxu0 0.0
    %2097 = vmatprep.subr.mxu0 0.0
    %2098 = vmatpush2.msra.mxu0 0.0
    %2099 = vmatprep.subr.mxu0 0.0
    %2100 = vmatpush2.msra.mxu0 0.0
    %2101 = vmatprep.subr.mxu0 0.0
    %2102 = vmatpush2.msra.mxu0 0.0
    %2103 = vmatprep.subr.mxu0 0.0
    %2104 = vmatpush2.msra.mxu0 0.0
    %2105 = vmatprep.subr.mxu0 0.0
    %2106 = vmatpush2.msra.mxu0 0.0
    %2107 = vmatprep.subr.mxu0 0.0
    %2108 = vmatpush2.msra.mxu0 0.0
    %2109 = vmatprep.subr.mxu0 0.0
    %2110 = vmatpush2.msra.mxu0 0.0
    %2111 = vmatprep.subr.mxu0 0.0
    %2112 = vmatpush2.msra.mxu0 0.0
    %2113 = vmatprep.mubr.f32.mxu0 0.0
    %2114 = vmatmul.mubr.f32.gmra.mxu0 %v2044
    %v2115 = vpop.f32.mrf.mxu0
    %v2116 = vadd.f32 %v2035, %v2115
    %v2117 = vpop.f32.mrf.mxu0
    %v2118 = vadd.f32 %v2039, %v2117
    %2119 = vmatprep.mubr.f32.mxu0 0.0
    %2120 = vmatmul.mubr.f32.gmra.mxu0 %v2047
    %v2121 = vpop.f32.mrf.mxu0
    %v2122 = vadd.f32 %v2035, %v2121
    %v2123 = vpop.f32.mrf.mxu0
    %v2124 = vadd.f32 %v2039, %v2123
    %2125 = vdwg.mxu0
    %v2126 = vld [vmem:[%s8] sm:$0xff]
    %v2127 = vld [vmem:[%s8 + $0x8] sm:$0xff]
    %v2128 = vld [vmem:[%s8 + $0x10] sm:$0xff]
    %v2129 = vld [vmem:[%s8 + $0x18] sm:$0xff]
    %v2130 = vld [vmem:[%s9] sm:$0xff]
    %v2131 = vld [vmem:[%s9 + $0x8] sm:$0xff]
    %v2132 = vld [vmem:[%s9 + $0x10] sm:$0xff]
    %v2133 = vld [vmem:[%s9 + $0x18] sm:$0xff]
    %2134 = vmatprep.subr.mxu0 0.0
    %2135 = vmatpush1.msra.mxu0 0.0
    %2136 = vmatprep.subr.mxu0 0.0
    %2137 = vmatpush1.msra.mxu0 0.0
    %2138 = vmatprep.subr.mxu0 0.0
    %2139 = vmatpush1.msra.mxu0 0.0
    %2140 = vmatprep.subr.mxu0 0.0
    %2141 = vmatpush1.msra.mxu0 0.0
    %2142 = vmatprep.subr.mxu0 0.0
    %2143 = vmatpush1.msra.mxu0 0.0
    %2144 = vmatprep.subr.mxu0 0.0
    %2145 = vmatpush1.msra.mxu0 0.0
    %2146 = vmatprep.subr.mxu0 0.0
    %2147 = vmatpush1.msra.mxu0 0.0
    %2148 = vmatprep.subr.mxu0 0.0
    %2149 = vmatpush1.msra.mxu0 0.0
    %2150 = vmatprep.subr.mxu0 0.0
    %2151 = vmatpush1.msra.mxu0 0.0
    %2152 = vmatprep.subr.mxu0 0.0
    %2153 = vmatpush1.msra.mxu0 0.0
    %2154 = vmatprep.subr.mxu0 0.0
    %2155 = vmatpush1.msra.mxu0 0.0
    %2156 = vmatprep.subr.mxu0 0.0
    %2157 = vmatpush1.msra.mxu0 0.0
    %2158 = vmatprep.subr.mxu0 0.0
    %2159 = vmatpush1.msra.mxu0 %v2129
    %2160 = vmatprep.subr.mxu0 0.0
    %2161 = vmatpush1.msra.mxu0 %v2128
    %2162 = vmatprep.subr.mxu0 0.0
    %2163 = vmatpush1.msra.mxu0 %v2127
    %2164 = vmatprep.subr.mxu0 0.0
    %2165 = vmatpush1.msra.mxu0 %v2126
    %2166 = vmatprep.subr.mxu0 0.0
    %2167 = vmatpush2.msra.mxu0 0.0
    %2168 = vmatprep.subr.mxu0 0.0
    %2169 = vmatpush2.msra.mxu0 0.0
    %2170 = vmatprep.subr.mxu0 0.0
    %2171 = vmatpush2.msra.mxu0 0.0
    %2172 = vmatprep.subr.mxu0 0.0
    %2173 = vmatpush2.msra.mxu0 0.0
    %2174 = vmatprep.subr.mxu0 0.0
    %2175 = vmatpush2.msra.mxu0 0.0
    %2176 = vmatprep.subr.mxu0 0.0
    %2177 = vmatpush2.msra.mxu0 0.0
    %2178 = vmatprep.subr.mxu0 0.0
    %2179 = vmatpush2.msra.mxu0 0.0
    %2180 = vmatprep.subr.mxu0 0.0
    %2181 = vmatpush2.msra.mxu0 0.0
    %2182 = vmatprep.subr.mxu0 0.0
    %2183 = vmatpush2.msra.mxu0 0.0
    %2184 = vmatprep.subr.mxu0 0.0
    %2185 = vmatpush2.msra.mxu0 0.0
    %2186 = vmatprep.subr.mxu0 0.0
    %2187 = vmatpush2.msra.mxu0 0.0
    %2188 = vmatprep.subr.mxu0 0.0
    %2189 = vmatpush2.msra.mxu0 0.0
    %2190 = vmatprep.subr.mxu0 0.0
    %2191 = vmatpush2.msra.mxu0 0.0
    %2192 = vmatprep.subr.mxu0 0.0
    %2193 = vmatpush2.msra.mxu0 0.0
    %2194 = vmatprep.subr.mxu0 0.0
    %2195 = vmatpush2.msra.mxu0 0.0
    %2196 = vmatprep.subr.mxu0 0.0
    %2197 = vmatpush2.msra.mxu0 0.0
    %2198 = vmatprep.mubr.f32.mxu0 0.0
    %2199 = vmatmul.mubr.f32.gmra.mxu0 %v261
    %v2200 = vpop.f32.mrf.mxu0
    %v2201 = vadd.f32 0.0, %v2200
    %v2202 = vpop.f32.mrf.mxu0
    %2203 = vdwg.mxu0
    %v2204 = vadd.f32 %v2116, %v2201
    %v2205 = vxor.u32 %v2204, 2147483648
    %v2206 = vmul.f32 %v2205, 1.442695
    %v2207 = vpow.pop %v2206
    %v2208 = vadd.f32 %v2207, 1.0
    %v2209 = vrcp.pop %v2208
    %v2210 = vmul.f32 1.0, %v2209
    %v2211 = vtanh.pop %v2204
    %v2212 = vmul.f32 %v2210, 0.0
    %2214 = vrot.lane.b32.xlu0 %v2211, 64
    %v2215 = vpop.permute.xlu0 %2214
    %v2217 = vmul.f32 %v2210, %v2215
    %2219 = vrot.lane.b32.xlu0 %v2217, 32
    %v2220 = vpop.permute.xlu0 %2219
    %v2222 = vadd.f32 %v2212, %v2220
    %v2223 = vtanh.pop %v2222
    %2225 = vrot.lane.b32.xlu0 %v2223, 64
    %v2226 = vpop.permute.xlu0 %2225
    %v2228 = vmul.f32 %v2210, %v2226
    %2229 = vmatprep.subr.mxu0 0.0
    %2230 = vmatpush1.msra.mxu0 0.0
    %2231 = vmatprep.subr.mxu0 0.0
    %2232 = vmatpush1.msra.mxu0 0.0
    %2233 = vmatprep.subr.mxu0 0.0
    %2234 = vmatpush1.msra.mxu0 0.0
    %2235 = vmatprep.subr.mxu0 0.0
    %2236 = vmatpush1.msra.mxu0 0.0
    %2237 = vmatprep.subr.mxu0 0.0
    %2238 = vmatpush1.msra.mxu0 0.0
    %2239 = vmatprep.subr.mxu0 0.0
    %2240 = vmatpush1.msra.mxu0 0.0
    %2241 = vmatprep.subr.mxu0 0.0
    %2242 = vmatpush1.msra.mxu0 0.0
    %2243 = vmatprep.subr.mxu0 0.0
    %2244 = vmatpush1.msra.mxu0 0.0
    %2245 = vmatprep.subr.mxu0 0.0
    %2246 = vmatpush1.msra.mxu0 0.0
    %2247 = vmatprep.subr.mxu0 0.0
    %2248 = vmatpush1.msra.mxu0 0.0
    %2249 = vmatprep.subr.mxu0 0.0
    %2250 = vmatpush1.msra.mxu0 0.0
    %2251 = vmatprep.subr.mxu0 0.0
    %2252 = vmatpush1.msra.mxu0 0.0
    %2253 = vmatprep.subr.mxu0 0.0
    %2254 = vmatpush1.msra.mxu0 %v2133
    %2255 = vmatprep.subr.mxu0 0.0
    %2256 = vmatpush1.msra.mxu0 %v2132
    %2257 = vmatprep.subr.mxu0 0.0
    %2258 = vmatpush1.msra.mxu0 %v2131
    %2259 = vmatprep.subr.mxu0 0.0
    %2260 = vmatpush1.msra.mxu0 %v2130
    %2261 = vmatprep.subr.mxu0 0.0
    %2262 = vmatpush2.msra.mxu0 0.0
    %2263 = vmatprep.subr.mxu0 0.0
    %2264 = vmatpush2.msra.mxu0 0.0
    %2265 = vmatprep.subr.mxu0 0.0
    %2266 = vmatpush2.msra.mxu0 0.0
    %2267 = vmatprep.subr.mxu0 0.0
    %2268 = vmatpush2.msra.mxu0 0.0
    %2269 = vmatprep.subr.mxu0 0.0
    %2270 = vmatpush2.msra.mxu0 0.0
    %2271 = vmatprep.subr.mxu0 0.0
    %2272 = vmatpush2.msra.mxu0 0.0
    %2273 = vmatprep.subr.mxu0 0.0
    %2274 = vmatpush2.msra.mxu0 0.0
    %2275 = vmatprep.subr.mxu0 0.0
    %2276 = vmatpush2.msra.mxu0 0.0
    %2277 = vmatprep.subr.mxu0 0.0
    %2278 = vmatpush2.msra.mxu0 0.0
    %2279 = vmatprep.subr.mxu0 0.0
    %2280 = vmatpush2.msra.mxu0 0.0
    %2281 = vmatprep.subr.mxu0 0.0
    %2282 = vmatpush2.msra.mxu0 0.0
    %2283 = vmatprep.subr.mxu0 0.0
    %2284 = vmatpush2.msra.mxu0 0.0
    %2285 = vmatprep.subr.mxu0 0.0
    %2286 = vmatpush2.msra.mxu0 0.0
    %2287 = vmatprep.subr.mxu0 0.0
    %2288 = vmatpush2.msra.mxu0 0.0
    %2289 = vmatprep.subr.mxu0 0.0
    %2290 = vmatpush2.msra.mxu0 0.0
    %2291 = vmatprep.subr.mxu0 0.0
    %2292 = vmatpush2.msra.mxu0 0.0
    %2293 = vmatprep.mubr.f32.mxu0 0.0
    %2294 = vmatmul.mubr.f32.gmra.mxu0 %v261
    %v2295 = vpop.f32.mrf.mxu0
    %v2296 = vadd.f32 0.0, %v2295
    %v2297 = vpop.f32.mrf.mxu0
    %2298 = vdwg.mxu0
    %v2300 = vrot.slane %v2296, 2
    %v2302 = vadd.f32 %v2124, %v2300
    %v2303 = vxor.u32 %v2302, 2147483648
    %v2304 = vmul.f32 %v2303, 1.442695
    %v2305 = vpow.pop %v2304
    %v2306 = vadd.f32 %v2305, 1.0
    %v2307 = vrcp.pop %v2306
    %v2308 = vmul.f32 1.0, %v2307
    %v2309 = vtanh.pop %v2302
    %v2310 = vmul.f32 %v2308, 0.0
    %2312 = vrot.lane.b32.xlu0 %v2309, 64
    %v2313 = vpop.permute.xlu0 %2312
    %v2315 = vmul.f32 %v2308, %v2313
    %2317 = vrot.lane.b32.xlu0 %v2315, 32
    %v2318 = vpop.permute.xlu0 %2317
    %v2320 = vadd.f32 %v2310, %v2318
    %v2321 = vtanh.pop %v2320
    %2323 = vrot.lane.b32.xlu0 %v2321, 64
    %v2324 = vpop.permute.xlu0 %2323
    %v2326 = vmul.f32 %v2308, %v2324
    %2328 = vrot.lane.b32.xlu0 %v2228, 32
    %v2329 = vpop.permute.xlu0 %2328
    %v2330 = vsel %vm259, %v2329, 0
    %2332 = vmatprep.subr.mxu0 0.0
    %2333 = vmatpush1.msra.mxu0 0.0
    %2334 = vmatprep.subr.mxu0 0.0
    %2335 = vmatpush1.msra.mxu0 0.0
    %2336 = vmatprep.subr.mxu0 0.0
    %2337 = vmatpush1.msra.mxu0 0.0
    %2338 = vmatprep.subr.mxu0 0.0
    %2339 = vmatpush1.msra.mxu0 0.0
    %2340 = vmatprep.subr.mxu0 0.0
    %2341 = vmatpush1.msra.mxu0 0.0
    %2342 = vmatprep.subr.mxu0 0.0
    %2343 = vmatpush1.msra.mxu0 0.0
    %2344 = vmatprep.subr.mxu0 0.0
    %2345 = vmatpush1.msra.mxu0 0.0
    %2346 = vmatprep.subr.mxu0 0.0
    %2347 = vmatpush1.msra.mxu0 0.0
    %2348 = vmatprep.subr.mxu0 0.0
    %2349 = vmatpush1.msra.mxu0 0.0
    %2350 = vmatprep.subr.mxu0 0.0
    %2351 = vmatpush1.msra.mxu0 0.0
    %2352 = vmatprep.subr.mxu0 0.0
    %2353 = vmatpush1.msra.mxu0 0.0
    %2354 = vmatprep.subr.mxu0 0.0
    %2355 = vmatpush1.msra.mxu0 0.0
    %2356 = vmatprep.subr.mxu0 0.0
    %2357 = vmatpush1.msra.mxu0 %v2129
    %2358 = vmatprep.subr.mxu0 0.0
    %2359 = vmatpush1.msra.mxu0 %v2128
    %2360 = vmatprep.subr.mxu0 0.0
    %2361 = vmatpush1.msra.mxu0 %v2127
    %2362 = vmatprep.subr.mxu0 0.0
    %2363 = vmatpush1.msra.mxu0 %v2126
    %2364 = vmatprep.subr.mxu0 0.0
    %2365 = vmatpush2.msra.mxu0 0.0
    %2366 = vmatprep.subr.mxu0 0.0
    %2367 = vmatpush2.msra.mxu0 0.0
    %2368 = vmatprep.subr.mxu0 0.0
    %2369 = vmatpush2.msra.mxu0 0.0
    %2370 = vmatprep.subr.mxu0 0.0
    %2371 = vmatpush2.msra.mxu0 0.0
    %2372 = vmatprep.subr.mxu0 0.0
    %2373 = vmatpush2.msra.mxu0 0.0
    %2374 = vmatprep.subr.mxu0 0.0
    %2375 = vmatpush2.msra.mxu0 0.0
    %2376 = vmatprep.subr.mxu0 0.0
    %2377 = vmatpush2.msra.mxu0 0.0
    %2378 = vmatprep.subr.mxu0 0.0
    %2379 = vmatpush2.msra.mxu0 0.0
    %2380 = vmatprep.subr.mxu0 0.0
    %2381 = vmatpush2.msra.mxu0 0.0
    %2382 = vmatprep.subr.mxu0 0.0
    %2383 = vmatpush2.msra.mxu0 0.0
    %2384 = vmatprep.subr.mxu0 0.0
    %2385 = vmatpush2.msra.mxu0 0.0
    %2386 = vmatprep.subr.mxu0 0.0
    %2387 = vmatpush2.msra.mxu0 0.0
    %2388 = vmatprep.subr.mxu0 0.0
    %2389 = vmatpush2.msra.mxu0 0.0
    %2390 = vmatprep.subr.mxu0 0.0
    %2391 = vmatpush2.msra.mxu0 0.0
    %2392 = vmatprep.subr.mxu0 0.0
    %2393 = vmatpush2.msra.mxu0 0.0
    %2394 = vmatprep.subr.mxu0 0.0
    %2395 = vmatpush2.msra.mxu0 0.0
    %2396 = vmatprep.mubr.f32.mxu0 0.0
    %2397 = vmatmul.mubr.f32.gmra.mxu0 %v2330
    %v2398 = vpop.f32.mrf.mxu0
    %v2399 = vadd.f32 0.0, %v2398
    %v2400 = vpop.f32.mrf.mxu0
    %2401 = vdwg.mxu0
    %v2403 = vrot.slane %v2399, 6
    %v2405 = vadd.f32 %v2116, %v2403
    %v2406 = vxor.u32 %v2405, 2147483648
    %v2407 = vmul.f32 %v2406, 1.442695
    %v2408 = vpow.pop %v2407
    %v2409 = vadd.f32 %v2408, 1.0
    %v2410 = vrcp.pop %v2409
    %v2411 = vmul.f32 1.0, %v2410
    %v2412 = vtanh.pop %v2405
    %v2414 = vrot.slane %v2222, 6
    %v2416 = vmul.f32 %v2411, %v2414
    %2418 = vrot.lane.b32.xlu0 %v2412, 64
    %v2419 = vpop.permute.xlu0 %2418
    %v2421 = vmul.f32 %v2411, %v2419
    %2423 = vrot.lane.b32.xlu0 %v2421, 32
    %v2424 = vpop.permute.xlu0 %2423
    %v2426 = vadd.f32 %v2416, %v2424
    %v2427 = vtanh.pop %v2426
    %2429 = vrot.lane.b32.xlu0 %v2427, 64
    %v2430 = vpop.permute.xlu0 %2429
    %v2432 = vmul.f32 %v2411, %v2430
    %v2434 = vrot.slane %v2326, 6
    %2435 = vrot.lane.b32.xlu0 %v2434, 32
    %v2436 = vpop.permute.xlu0 %2435
    %v2437 = vsel %vm259, %v2436, 0
    %2439 = vmatprep.subr.mxu0 0.0
    %2440 = vmatpush1.msra.mxu0 0.0
    %2441 = vmatprep.subr.mxu0 0.0
    %2442 = vmatpush1.msra.mxu0 0.0
    %2443 = vmatprep.subr.mxu0 0.0
    %2444 = vmatpush1.msra.mxu0 0.0
    %2445 = vmatprep.subr.mxu0 0.0
    %2446 = vmatpush1.msra.mxu0 0.0
    %2447 = vmatprep.subr.mxu0 0.0
    %2448 = vmatpush1.msra.mxu0 0.0
    %2449 = vmatprep.subr.mxu0 0.0
    %2450 = vmatpush1.msra.mxu0 0.0
    %2451 = vmatprep.subr.mxu0 0.0
    %2452 = vmatpush1.msra.mxu0 0.0
    %2453 = vmatprep.subr.mxu0 0.0
    %2454 = vmatpush1.msra.mxu0 0.0
    %2455 = vmatprep.subr.mxu0 0.0
    %2456 = vmatpush1.msra.mxu0 0.0
    %2457 = vmatprep.subr.mxu0 0.0
    %2458 = vmatpush1.msra.mxu0 0.0
    %2459 = vmatprep.subr.mxu0 0.0
    %2460 = vmatpush1.msra.mxu0 0.0
    %2461 = vmatprep.subr.mxu0 0.0
    %2462 = vmatpush1.msra.mxu0 0.0
    %2463 = vmatprep.subr.mxu0 0.0
    %2464 = vmatpush1.msra.mxu0 %v2133
    %2465 = vmatprep.subr.mxu0 0.0
    %2466 = vmatpush1.msra.mxu0 %v2132
    %2467 = vmatprep.subr.mxu0 0.0
    %2468 = vmatpush1.msra.mxu0 %v2131
    %2469 = vmatprep.subr.mxu0 0.0
    %2470 = vmatpush1.msra.mxu0 %v2130
    %2471 = vmatprep.subr.mxu0 0.0
    %2472 = vmatpush2.msra.mxu0 0.0
    %2473 = vmatprep.subr.mxu0 0.0
    %2474 = vmatpush2.msra.mxu0 0.0
    %2475 = vmatprep.subr.mxu0 0.0
    %2476 = vmatpush2.msra.mxu0 0.0
    %2477 = vmatprep.subr.mxu0 0.0
    %2478 = vmatpush2.msra.mxu0 0.0
    %2479 = vmatprep.subr.mxu0 0.0
    %2480 = vmatpush2.msra.mxu0 0.0
    %2481 = vmatprep.subr.mxu0 0.0
    %2482 = vmatpush2.msra.mxu0 0.0
    %2483 = vmatprep.subr.mxu0 0.0
    %2484 = vmatpush2.msra.mxu0 0.0
    %2485 = vmatprep.subr.mxu0 0.0
    %2486 = vmatpush2.msra.mxu0 0.0
    %2487 = vmatprep.subr.mxu0 0.0
    %2488 = vmatpush2.msra.mxu0 0.0
    %2489 = vmatprep.subr.mxu0 0.0
    %2490 = vmatpush2.msra.mxu0 0.0
    %2491 = vmatprep.subr.mxu0 0.0
    %2492 = vmatpush2.msra.mxu0 0.0
    %2493 = vmatprep.subr.mxu0 0.0
    %2494 = vmatpush2.msra.mxu0 0.0
    %2495 = vmatprep.subr.mxu0 0.0
    %2496 = vmatpush2.msra.mxu0 0.0
    %2497 = vmatprep.subr.mxu0 0.0
    %2498 = vmatpush2.msra.mxu0 0.0
    %2499 = vmatprep.subr.mxu0 0.0
    %2500 = vmatpush2.msra.mxu0 0.0
    %2501 = vmatprep.subr.mxu0 0.0
    %2502 = vmatpush2.msra.mxu0 0.0
    %2503 = vmatprep.mubr.f32.mxu0 0.0
    %2504 = vmatmul.mubr.f32.gmra.mxu0 %v2437
    %v2505 = vpop.f32.mrf.mxu0
    %v2506 = vadd.f32 0.0, %v2505
    %v2507 = vpop.f32.mrf.mxu0
    %2508 = vdwg.mxu0
    %v2510 = vrot.slane %v2506, 4
    %v2512 = vadd.f32 %v2124, %v2510
    %v2513 = vxor.u32 %v2512, 2147483648
    %v2514 = vmul.f32 %v2513, 1.442695
    %v2515 = vpow.pop %v2514
    %v2516 = vadd.f32 %v2515, 1.0
    %v2517 = vrcp.pop %v2516
    %v2518 = vmul.f32 1.0, %v2517
    %v2519 = vtanh.pop %v2512
    %v2521 = vrot.slane %v2320, 2
    %v2523 = vmul.f32 %v2518, %v2521
    %2525 = vrot.lane.b32.xlu0 %v2519, 64
    %v2526 = vpop.permute.xlu0 %2525
    %v2528 = vmul.f32 %v2518, %v2526
    %2530 = vrot.lane.b32.xlu0 %v2528, 32
    %v2531 = vpop.permute.xlu0 %2530
    %v2533 = vadd.f32 %v2523, %v2531
    %v2534 = vtanh.pop %v2533
    %2536 = vrot.lane.b32.xlu0 %v2534, 64
    %v2537 = vpop.permute.xlu0 %2536
    %v2539 = vmul.f32 %v2518, %v2537
    %v2541 = vrot.slane %v2432, 2
    %2542 = vrot.lane.b32.xlu0 %v2541, 32
    %v2543 = vpop.permute.xlu0 %2542
    %v2544 = vsel %vm259, %v2543, 0
    %2546 = vmatprep.subr.mxu0 0.0
    %2547 = vmatpush1.msra.mxu0 0.0
    %2548 = vmatprep.subr.mxu0 0.0
    %2549 = vmatpush1.msra.mxu0 0.0
    %2550 = vmatprep.subr.mxu0 0.0
    %2551 = vmatpush1.msra.mxu0 0.0
    %2552 = vmatprep.subr.mxu0 0.0
    %2553 = vmatpush1.msra.mxu0 0.0
    %2554 = vmatprep.subr.mxu0 0.0
    %2555 = vmatpush1.msra.mxu0 0.0
    %2556 = vmatprep.subr.mxu0 0.0
    %2557 = vmatpush1.msra.mxu0 0.0
    %2558 = vmatprep.subr.mxu0 0.0
    %2559 = vmatpush1.msra.mxu0 0.0
    %2560 = vmatprep.subr.mxu0 0.0
    %2561 = vmatpush1.msra.mxu0 0.0
    %2562 = vmatprep.subr.mxu0 0.0
    %2563 = vmatpush1.msra.mxu0 0.0
    %2564 = vmatprep.subr.mxu0 0.0
    %2565 = vmatpush1.msra.mxu0 0.0
    %2566 = vmatprep.subr.mxu0 0.0
    %2567 = vmatpush1.msra.mxu0 0.0
    %2568 = vmatprep.subr.mxu0 0.0
    %2569 = vmatpush1.msra.mxu0 0.0
    %2570 = vmatprep.subr.mxu0 0.0
    %2571 = vmatpush1.msra.mxu0 %v2129
    %2572 = vmatprep.subr.mxu0 0.0
    %2573 = vmatpush1.msra.mxu0 %v2128
    %2574 = vmatprep.subr.mxu0 0.0
    %2575 = vmatpush1.msra.mxu0 %v2127
    %2576 = vmatprep.subr.mxu0 0.0
    %2577 = vmatpush1.msra.mxu0 %v2126
    %2578 = vmatprep.subr.mxu0 0.0
    %2579 = vmatpush2.msra.mxu0 0.0
    %2580 = vmatprep.subr.mxu0 0.0
    %2581 = vmatpush2.msra.mxu0 0.0
    %2582 = vmatprep.subr.mxu0 0.0
    %2583 = vmatpush2.msra.mxu0 0.0
    %2584 = vmatprep.subr.mxu0 0.0
    %2585 = vmatpush2.msra.mxu0 0.0
    %2586 = vmatprep.subr.mxu0 0.0
    %2587 = vmatpush2.msra.mxu0 0.0
    %2588 = vmatprep.subr.mxu0 0.0
    %2589 = vmatpush2.msra.mxu0 0.0
    %2590 = vmatprep.subr.mxu0 0.0
    %2591 = vmatpush2.msra.mxu0 0.0
    %2592 = vmatprep.subr.mxu0 0.0
    %2593 = vmatpush2.msra.mxu0 0.0
    %2594 = vmatprep.subr.mxu0 0.0
    %2595 = vmatpush2.msra.mxu0 0.0
    %2596 = vmatprep.subr.mxu0 0.0
    %2597 = vmatpush2.msra.mxu0 0.0
    %2598 = vmatprep.subr.mxu0 0.0
    %2599 = vmatpush2.msra.mxu0 0.0
    %2600 = vmatprep.subr.mxu0 0.0
    %2601 = vmatpush2.msra.mxu0 0.0
    %2602 = vmatprep.subr.mxu0 0.0
    %2603 = vmatpush2.msra.mxu0 0.0
    %2604 = vmatprep.subr.mxu0 0.0
    %2605 = vmatpush2.msra.mxu0 0.0
    %2606 = vmatprep.subr.mxu0 0.0
    %2607 = vmatpush2.msra.mxu0 0.0
    %2608 = vmatprep.subr.mxu0 0.0
    %2609 = vmatpush2.msra.mxu0 0.0
    %2610 = vmatprep.mubr.f32.mxu0 0.0
    %2611 = vmatmul.mubr.f32.gmra.mxu0 %v2544
    %v2612 = vpop.f32.mrf.mxu0
    %v2613 = vadd.f32 0.0, %v2612
    %v2614 = vpop.f32.mrf.mxu0
    %2615 = vdwg.mxu0
    %v2617 = vrot.slane %v2613, 4
    %v2619 = vadd.f32 %v2116, %v2617
    %v2620 = vxor.u32 %v2619, 2147483648
    %v2621 = vmul.f32 %v2620, 1.442695
    %v2622 = vpow.pop %v2621
    %v2623 = vadd.f32 %v2622, 1.0
    %v2624 = vrcp.pop %v2623
    %v2625 = vmul.f32 1.0, %v2624
    %v2626 = vtanh.pop %v2619
    %v2628 = vrot.slane %v2426, 6
    %v2630 = vmul.f32 %v2625, %v2628
    %2632 = vrot.lane.b32.xlu0 %v2626, 64
    %v2633 = vpop.permute.xlu0 %2632
    %v2635 = vmul.f32 %v2625, %v2633
    %2637 = vrot.lane.b32.xlu0 %v2635, 32
    %v2638 = vpop.permute.xlu0 %2637
    %v2640 = vadd.f32 %v2630, %v2638
    %v2641 = vtanh.pop %v2640
    %2643 = vrot.lane.b32.xlu0 %v2641, 64
    %v2644 = vpop.permute.xlu0 %2643
    %v2646 = vmul.f32 %v2625, %v2644
    %v2648 = vrot.slane %v2539, 4
    %2649 = vrot.lane.b32.xlu0 %v2648, 32
    %v2650 = vpop.permute.xlu0 %2649
    %v2651 = vsel %vm259, %v2650, 0
    %2653 = vmatprep.subr.mxu0 0.0
    %2654 = vmatpush1.msra.mxu0 0.0
    %2655 = vmatprep.subr.mxu0 0.0
    %2656 = vmatpush1.msra.mxu0 0.0
    %2657 = vmatprep.subr.mxu0 0.0
    %2658 = vmatpush1.msra.mxu0 0.0
    %2659 = vmatprep.subr.mxu0 0.0
    %2660 = vmatpush1.msra.mxu0 0.0
    %2661 = vmatprep.subr.mxu0 0.0
    %2662 = vmatpush1.msra.mxu0 0.0
    %2663 = vmatprep.subr.mxu0 0.0
    %2664 = vmatpush1.msra.mxu0 0.0
    %2665 = vmatprep.subr.mxu0 0.0
    %2666 = vmatpush1.msra.mxu0 0.0
    %2667 = vmatprep.subr.mxu0 0.0
    %2668 = vmatpush1.msra.mxu0 0.0
    %2669 = vmatprep.subr.mxu0 0.0
    %2670 = vmatpush1.msra.mxu0 0.0
    %2671 = vmatprep.subr.mxu0 0.0
    %2672 = vmatpush1.msra.mxu0 0.0
    %2673 = vmatprep.subr.mxu0 0.0
    %2674 = vmatpush1.msra.mxu0 0.0
    %2675 = vmatprep.subr.mxu0 0.0
    %2676 = vmatpush1.msra.mxu0 0.0
    %2677 = vmatprep.subr.mxu0 0.0
    %2678 = vmatpush1.msra.mxu0 %v2133
    %2679 = vmatprep.subr.mxu0 0.0
    %2680 = vmatpush1.msra.mxu0 %v2132
    %2681 = vmatprep.subr.mxu0 0.0
    %2682 = vmatpush1.msra.mxu0 %v2131
    %2683 = vmatprep.subr.mxu0 0.0
    %2684 = vmatpush1.msra.mxu0 %v2130
    %2685 = vmatprep.subr.mxu0 0.0
    %2686 = vmatpush2.msra.mxu0 0.0
    %2687 = vmatprep.subr.mxu0 0.0
    %2688 = vmatpush2.msra.mxu0 0.0
    %2689 = vmatprep.subr.mxu0 0.0
    %2690 = vmatpush2.msra.mxu0 0.0
    %2691 = vmatprep.subr.mxu0 0.0
    %2692 = vmatpush2.msra.mxu0 0.0
    %2693 = vmatprep.subr.mxu0 0.0
    %2694 = vmatpush2.msra.mxu0 0.0
    %2695 = vmatprep.subr.mxu0 0.0
    %2696 = vmatpush2.msra.mxu0 0.0
    %2697 = vmatprep.subr.mxu0 0.0
    %2698 = vmatpush2.msra.mxu0 0.0
    %2699 = vmatprep.subr.mxu0 0.0
    %2700 = vmatpush2.msra.mxu0 0.0
    %2701 = vmatprep.subr.mxu0 0.0
    %2702 = vmatpush2.msra.mxu0 0.0
    %2703 = vmatprep.subr.mxu0 0.0
    %2704 = vmatpush2.msra.mxu0 0.0
    %2705 = vmatprep.subr.mxu0 0.0
    %2706 = vmatpush2.msra.mxu0 0.0
    %2707 = vmatprep.subr.mxu0 0.0
    %2708 = vmatpush2.msra.mxu0 0.0
    %2709 = vmatprep.subr.mxu0 0.0
    %2710 = vmatpush2.msra.mxu0 0.0
    %2711 = vmatprep.subr.mxu0 0.0
    %2712 = vmatpush2.msra.mxu0 0.0
    %2713 = vmatprep.subr.mxu0 0.0
    %2714 = vmatpush2.msra.mxu0 0.0
    %2715 = vmatprep.subr.mxu0 0.0
    %2716 = vmatpush2.msra.mxu0 0.0
    %2717 = vmatprep.mubr.f32.mxu0 0.0
    %2718 = vmatmul.mubr.f32.gmra.mxu0 %v2651
    %v2719 = vpop.f32.mrf.mxu0
    %v2720 = vadd.f32 0.0, %v2719
    %v2721 = vpop.f32.mrf.mxu0
    %2722 = vdwg.mxu0
    %v2724 = vrot.slane %v2720, 6
    %v2726 = vadd.f32 %v2124, %v2724
    %v2727 = vxor.u32 %v2726, 2147483648
    %v2728 = vmul.f32 %v2727, 1.442695
    %v2729 = vpow.pop %v2728
    %v2730 = vadd.f32 %v2729, 1.0
    %v2731 = vrcp.pop %v2730
    %v2732 = vmul.f32 1.0, %v2731
    %v2733 = vtanh.pop %v2726
    %v2735 = vrot.slane %v2533, 2
    %v2737 = vmul.f32 %v2732, %v2735
    %2739 = vrot.lane.b32.xlu0 %v2733, 64
    %v2740 = vpop.permute.xlu0 %2739
    %v2742 = vmul.f32 %v2732, %v2740
    %2744 = vrot.lane.b32.xlu0 %v2742, 32
    %v2745 = vpop.permute.xlu0 %2744
    %v2747 = vadd.f32 %v2737, %v2745
    %v2748 = vtanh.pop %v2747
    %2750 = vrot.lane.b32.xlu0 %v2748, 64
    %v2751 = vpop.permute.xlu0 %2750
    %v2753 = vmul.f32 %v2732, %v2751
    %v2755 = vrot.slane %v2646, 4
    %2756 = vrot.lane.b32.xlu0 %v2755, 32
    %v2757 = vpop.permute.xlu0 %2756
    %v2758 = vsel %vm259, %v2757, 0
    %2760 = vmatprep.subr.mxu0 0.0
    %2761 = vmatpush1.msra.mxu0 0.0
    %2762 = vmatprep.subr.mxu0 0.0
    %2763 = vmatpush1.msra.mxu0 0.0
    %2764 = vmatprep.subr.mxu0 0.0
    %2765 = vmatpush1.msra.mxu0 0.0
    %2766 = vmatprep.subr.mxu0 0.0
    %2767 = vmatpush1.msra.mxu0 0.0
    %2768 = vmatprep.subr.mxu0 0.0
    %2769 = vmatpush1.msra.mxu0 0.0
    %2770 = vmatprep.subr.mxu0 0.0
    %2771 = vmatpush1.msra.mxu0 0.0
    %2772 = vmatprep.subr.mxu0 0.0
    %2773 = vmatpush1.msra.mxu0 0.0
    %2774 = vmatprep.subr.mxu0 0.0
    %2775 = vmatpush1.msra.mxu0 0.0
    %2776 = vmatprep.subr.mxu0 0.0
    %2777 = vmatpush1.msra.mxu0 0.0
    %2778 = vmatprep.subr.mxu0 0.0
    %2779 = vmatpush1.msra.mxu0 0.0
    %2780 = vmatprep.subr.mxu0 0.0
    %2781 = vmatpush1.msra.mxu0 0.0
    %2782 = vmatprep.subr.mxu0 0.0
    %2783 = vmatpush1.msra.mxu0 0.0
    %2784 = vmatprep.subr.mxu0 0.0
    %2785 = vmatpush1.msra.mxu0 %v2129
    %2786 = vmatprep.subr.mxu0 0.0
    %2787 = vmatpush1.msra.mxu0 %v2128
    %2788 = vmatprep.subr.mxu0 0.0
    %2789 = vmatpush1.msra.mxu0 %v2127
    %2790 = vmatprep.subr.mxu0 0.0
    %2791 = vmatpush1.msra.mxu0 %v2126
    %2792 = vmatprep.subr.mxu0 0.0
    %2793 = vmatpush2.msra.mxu0 0.0
    %2794 = vmatprep.subr.mxu0 0.0
    %2795 = vmatpush2.msra.mxu0 0.0
    %2796 = vmatprep.subr.mxu0 0.0
    %2797 = vmatpush2.msra.mxu0 0.0
    %2798 = vmatprep.subr.mxu0 0.0
    %2799 = vmatpush2.msra.mxu0 0.0
    %2800 = vmatprep.subr.mxu0 0.0
    %2801 = vmatpush2.msra.mxu0 0.0
    %2802 = vmatprep.subr.mxu0 0.0
    %2803 = vmatpush2.msra.mxu0 0.0
    %2804 = vmatprep.subr.mxu0 0.0
    %2805 = vmatpush2.msra.mxu0 0.0
    %2806 = vmatprep.subr.mxu0 0.0
    %2807 = vmatpush2.msra.mxu0 0.0
    %2808 = vmatprep.subr.mxu0 0.0
    %2809 = vmatpush2.msra.mxu0 0.0
    %2810 = vmatprep.subr.mxu0 0.0
    %2811 = vmatpush2.msra.mxu0 0.0
    %2812 = vmatprep.subr.mxu0 0.0
    %2813 = vmatpush2.msra.mxu0 0.0
    %2814 = vmatprep.subr.mxu0 0.0
    %2815 = vmatpush2.msra.mxu0 0.0
    %2816 = vmatprep.subr.mxu0 0.0
    %2817 = vmatpush2.msra.mxu0 0.0
    %2818 = vmatprep.subr.mxu0 0.0
    %2819 = vmatpush2.msra.mxu0 0.0
    %2820 = vmatprep.subr.mxu0 0.0
    %2821 = vmatpush2.msra.mxu0 0.0
    %2822 = vmatprep.subr.mxu0 0.0
    %2823 = vmatpush2.msra.mxu0 0.0
    %2824 = vmatprep.mubr.f32.mxu0 0.0
    %2825 = vmatmul.mubr.f32.gmra.mxu0 %v2758
    %v2826 = vpop.f32.mrf.mxu0
    %v2827 = vadd.f32 0.0, %v2826
    %v2828 = vpop.f32.mrf.mxu0
    %2829 = vdwg.mxu0
    %v2831 = vrot.slane %v2827, 2
    %v2833 = vadd.f32 %v2116, %v2831
    %v2834 = vxor.u32 %v2833, 2147483648
    %v2835 = vmul.f32 %v2834, 1.442695
    %v2836 = vpow.pop %v2835
    %v2837 = vadd.f32 %v2836, 1.0
    %v2838 = vrcp.pop %v2837
    %v2839 = vmul.f32 1.0, %v2838
    %v2840 = vtanh.pop %v2833
    %v2842 = vrot.slane %v2640, 6
    %v2844 = vmul.f32 %v2839, %v2842
    %2846 = vrot.lane.b32.xlu0 %v2840, 64
    %v2847 = vpop.permute.xlu0 %2846
    %v2849 = vmul.f32 %v2839, %v2847
    %2851 = vrot.lane.b32.xlu0 %v2849, 32
    %v2852 = vpop.permute.xlu0 %2851
    %v2854 = vadd.f32 %v2844, %v2852
    %v2855 = vtanh.pop %v2854
    %2857 = vrot.lane.b32.xlu0 %v2855, 64
    %v2858 = vpop.permute.xlu0 %2857
    %v2860 = vmul.f32 %v2839, %v2858
    %v2862 = vrot.slane %v2753, 2
    %2863 = vrot.lane.b32.xlu0 %v2862, 32
    %v2864 = vpop.permute.xlu0 %2863
    %v2865 = vsel %vm259, %v2864, 0
    %2867 = vmatprep.subr.mxu0 0.0
    %2868 = vmatpush1.msra.mxu0 0.0
    %2869 = vmatprep.subr.mxu0 0.0
    %2870 = vmatpush1.msra.mxu0 0.0
    %2871 = vmatprep.subr.mxu0 0.0
    %2872 = vmatpush1.msra.mxu0 0.0
    %2873 = vmatprep.subr.mxu0 0.0
    %2874 = vmatpush1.msra.mxu0 0.0
    %2875 = vmatprep.subr.mxu0 0.0
    %2876 = vmatpush1.msra.mxu0 0.0
    %2877 = vmatprep.subr.mxu0 0.0
    %2878 = vmatpush1.msra.mxu0 0.0
    %2879 = vmatprep.subr.mxu0 0.0
    %2880 = vmatpush1.msra.mxu0 0.0
    %2881 = vmatprep.subr.mxu0 0.0
    %2882 = vmatpush1.msra.mxu0 0.0
    %2883 = vmatprep.subr.mxu0 0.0
    %2884 = vmatpush1.msra.mxu0 0.0
    %2885 = vmatprep.subr.mxu0 0.0
    %2886 = vmatpush1.msra.mxu0 0.0
    %2887 = vmatprep.subr.mxu0 0.0
    %2888 = vmatpush1.msra.mxu0 0.0
    %2889 = vmatprep.subr.mxu0 0.0
    %2890 = vmatpush1.msra.mxu0 0.0
    %2891 = vmatprep.subr.mxu0 0.0
    %2892 = vmatpush1.msra.mxu0 %v2133
    %2893 = vmatprep.subr.mxu0 0.0
    %2894 = vmatpush1.msra.mxu0 %v2132
    %2895 = vmatprep.subr.mxu0 0.0
    %2896 = vmatpush1.msra.mxu0 %v2131
    %2897 = vmatprep.subr.mxu0 0.0
    %2898 = vmatpush1.msra.mxu0 %v2130
    %2899 = vmatprep.subr.mxu0 0.0
    %2900 = vmatpush2.msra.mxu0 0.0
    %2901 = vmatprep.subr.mxu0 0.0
    %2902 = vmatpush2.msra.mxu0 0.0
    %2903 = vmatprep.subr.mxu0 0.0
    %2904 = vmatpush2.msra.mxu0 0.0
    %2905 = vmatprep.subr.mxu0 0.0
    %2906 = vmatpush2.msra.mxu0 0.0
    %2907 = vmatprep.subr.mxu0 0.0
    %2908 = vmatpush2.msra.mxu0 0.0
    %2909 = vmatprep.subr.mxu0 0.0
    %2910 = vmatpush2.msra.mxu0 0.0
    %2911 = vmatprep.subr.mxu0 0.0
    %2912 = vmatpush2.msra.mxu0 0.0
    %2913 = vmatprep.subr.mxu0 0.0
    %2914 = vmatpush2.msra.mxu0 0.0
    %2915 = vmatprep.subr.mxu0 0.0
    %2916 = vmatpush2.msra.mxu0 0.0
    %2917 = vmatprep.subr.mxu0 0.0
    %2918 = vmatpush2.msra.mxu0 0.0
    %2919 = vmatprep.subr.mxu0 0.0
    %2920 = vmatpush2.msra.mxu0 0.0
    %2921 = vmatprep.subr.mxu0 0.0
    %2922 = vmatpush2.msra.mxu0 0.0
    %2923 = vmatprep.subr.mxu0 0.0
    %2924 = vmatpush2.msra.mxu0 0.0
    %2925 = vmatprep.subr.mxu0 0.0
    %2926 = vmatpush2.msra.mxu0 0.0
    %2927 = vmatprep.subr.mxu0 0.0
    %2928 = vmatpush2.msra.mxu0 0.0
    %2929 = vmatprep.subr.mxu0 0.0
    %2930 = vmatpush2.msra.mxu0 0.0
    %2931 = vmatprep.mubr.f32.mxu0 0.0
    %2932 = vmatmul.mubr.f32.gmra.mxu0 %v2865
    %v2933 = vpop.f32.mrf.mxu0
    %v2934 = vadd.f32 0.0, %v2933
    %v2935 = vpop.f32.mrf.mxu0
    %2936 = vdwg.mxu0
    %v2937 = vadd.f32 %v2124, %v2934
    %v2938 = vxor.u32 %v2937, 2147483648
    %v2939 = vmul.f32 %v2938, 1.442695
    %v2940 = vpow.pop %v2939
    %v2941 = vadd.f32 %v2940, 1.0
    %v2942 = vrcp.pop %v2941
    %v2943 = vmul.f32 1.0, %v2942
    %v2944 = vtanh.pop %v2937
    %v2946 = vrot.slane %v2747, 2
    %v2948 = vmul.f32 %v2943, %v2946
    %2950 = vrot.lane.b32.xlu0 %v2944, 64
    %v2951 = vpop.permute.xlu0 %2950
    %v2953 = vmul.f32 %v2943, %v2951
    %2955 = vrot.lane.b32.xlu0 %v2953, 32
    %v2956 = vpop.permute.xlu0 %2955
    %v2958 = vadd.f32 %v2948, %v2956
    %v2959 = vtanh.pop %v2958
    %2961 = vrot.lane.b32.xlu0 %v2959, 64
    %v2962 = vpop.permute.xlu0 %2961
    %v2964 = vmul.f32 %v2943, %v2962
    %v2966 = vrot.slane %v2860, 6
    %2967 = vrot.lane.b32.xlu0 %v2966, 32
    %v2968 = vpop.permute.xlu0 %2967
    %v2969 = vsel %vm259, %v2968, 0
    %2971 = vmatprep.subr.mxu0 0.0
    %2972 = vmatpush1.msra.mxu0 0.0
    %2973 = vmatprep.subr.mxu0 0.0
    %2974 = vmatpush1.msra.mxu0 0.0
    %2975 = vmatprep.subr.mxu0 0.0
    %2976 = vmatpush1.msra.mxu0 0.0
    %2977 = vmatprep.subr.mxu0 0.0
    %2978 = vmatpush1.msra.mxu0 0.0
    %2979 = vmatprep.subr.mxu0 0.0
    %2980 = vmatpush1.msra.mxu0 0.0
    %2981 = vmatprep.subr.mxu0 0.0
    %2982 = vmatpush1.msra.mxu0 0.0
    %2983 = vmatprep.subr.mxu0 0.0
    %2984 = vmatpush1.msra.mxu0 0.0
    %2985 = vmatprep.subr.mxu0 0.0
    %2986 = vmatpush1.msra.mxu0 0.0
    %2987 = vmatprep.subr.mxu0 0.0
    %2988 = vmatpush1.msra.mxu0 0.0
    %2989 = vmatprep.subr.mxu0 0.0
    %2990 = vmatpush1.msra.mxu0 0.0
    %2991 = vmatprep.subr.mxu0 0.0
    %2992 = vmatpush1.msra.mxu0 0.0
    %2993 = vmatprep.subr.mxu0 0.0
    %2994 = vmatpush1.msra.mxu0 0.0
    %2995 = vmatprep.subr.mxu0 0.0
    %2996 = vmatpush1.msra.mxu0 %v2129
    %2997 = vmatprep.subr.mxu0 0.0
    %2998 = vmatpush1.msra.mxu0 %v2128
    %2999 = vmatprep.subr.mxu0 0.0
    %3000 = vmatpush1.msra.mxu0 %v2127
    %3001 = vmatprep.subr.mxu0 0.0
    %3002 = vmatpush1.msra.mxu0 %v2126
    %3003 = vmatprep.subr.mxu0 0.0
    %3004 = vmatpush2.msra.mxu0 0.0
    %3005 = vmatprep.subr.mxu0 0.0
    %3006 = vmatpush2.msra.mxu0 0.0
    %3007 = vmatprep.subr.mxu0 0.0
    %3008 = vmatpush2.msra.mxu0 0.0
    %3009 = vmatprep.subr.mxu0 0.0
    %3010 = vmatpush2.msra.mxu0 0.0
    %3011 = vmatprep.subr.mxu0 0.0
    %3012 = vmatpush2.msra.mxu0 0.0
    %3013 = vmatprep.subr.mxu0 0.0
    %3014 = vmatpush2.msra.mxu0 0.0
    %3015 = vmatprep.subr.mxu0 0.0
    %3016 = vmatpush2.msra.mxu0 0.0
    %3017 = vmatprep.subr.mxu0 0.0
    %3018 = vmatpush2.msra.mxu0 0.0
    %3019 = vmatprep.subr.mxu0 0.0
    %3020 = vmatpush2.msra.mxu0 0.0
    %3021 = vmatprep.subr.mxu0 0.0
    %3022 = vmatpush2.msra.mxu0 0.0
    %3023 = vmatprep.subr.mxu0 0.0
    %3024 = vmatpush2.msra.mxu0 0.0
    %3025 = vmatprep.subr.mxu0 0.0
    %3026 = vmatpush2.msra.mxu0 0.0
    %3027 = vmatprep.subr.mxu0 0.0
    %3028 = vmatpush2.msra.mxu0 0.0
    %3029 = vmatprep.subr.mxu0 0.0
    %3030 = vmatpush2.msra.mxu0 0.0
    %3031 = vmatprep.subr.mxu0 0.0
    %3032 = vmatpush2.msra.mxu0 0.0
    %3033 = vmatprep.subr.mxu0 0.0
    %3034 = vmatpush2.msra.mxu0 0.0
    %3035 = vmatprep.mubr.f32.mxu0 0.0
    %3036 = vmatmul.mubr.f32.gmra.mxu0 %v2969
    %v3037 = vpop.f32.mrf.mxu0
    %v3038 = vadd.f32 0.0, %v3037
    %v3039 = vpop.f32.mrf.mxu0
    %3040 = vdwg.mxu0
    %v3041 = vadd.f32 %v2122, %v3038
    %v3042 = vxor.u32 %v3041, 2147483648
    %v3043 = vmul.f32 %v3042, 1.442695
    %v3044 = vpow.pop %v3043
    %v3045 = vadd.f32 %v3044, 1.0
    %v3046 = vrcp.pop %v3045
    %v3047 = vmul.f32 1.0, %v3046
    %v3048 = vtanh.pop %v3041
    %v3050 = vrot.slane %v2854, 6
    %v3052 = vmul.f32 %v3047, %v3050
    %3054 = vrot.lane.b32.xlu0 %v3048, 64
    %v3055 = vpop.permute.xlu0 %3054
    %v3057 = vmul.f32 %v3047, %v3055
    %3059 = vrot.lane.b32.xlu0 %v3057, 32
    %v3060 = vpop.permute.xlu0 %3059
    %v3062 = vadd.f32 %v3052, %v3060
    %v3063 = vtanh.pop %v3062
    %3065 = vrot.lane.b32.xlu0 %v3063, 64
    %v3066 = vpop.permute.xlu0 %3065
    %v3068 = vmul.f32 %v3047, %v3066
    %3070 = vrot.lane.b32.xlu0 %v2964, 32
    %v3071 = vpop.permute.xlu0 %3070
    %v3072 = vsel %vm259, %v3071, 0
    %3074 = vmatprep.subr.mxu0 0.0
    %3075 = vmatpush1.msra.mxu0 0.0
    %3076 = vmatprep.subr.mxu0 0.0
    %3077 = vmatpush1.msra.mxu0 0.0
    %3078 = vmatprep.subr.mxu0 0.0
    %3079 = vmatpush1.msra.mxu0 0.0
    %3080 = vmatprep.subr.mxu0 0.0
    %3081 = vmatpush1.msra.mxu0 0.0
    %3082 = vmatprep.subr.mxu0 0.0
    %3083 = vmatpush1.msra.mxu0 0.0
    %3084 = vmatprep.subr.mxu0 0.0
    %3085 = vmatpush1.msra.mxu0 0.0
    %3086 = vmatprep.subr.mxu0 0.0
    %3087 = vmatpush1.msra.mxu0 0.0
    %3088 = vmatprep.subr.mxu0 0.0
    %3089 = vmatpush1.msra.mxu0 0.0
    %3090 = vmatprep.subr.mxu0 0.0
    %3091 = vmatpush1.msra.mxu0 0.0
    %3092 = vmatprep.subr.mxu0 0.0
    %3093 = vmatpush1.msra.mxu0 0.0
    %3094 = vmatprep.subr.mxu0 0.0
    %3095 = vmatpush1.msra.mxu0 0.0
    %3096 = vmatprep.subr.mxu0 0.0
    %3097 = vmatpush1.msra.mxu0 0.0
    %3098 = vmatprep.subr.mxu0 0.0
    %3099 = vmatpush1.msra.mxu0 %v2133
    %3100 = vmatprep.subr.mxu0 0.0
    %3101 = vmatpush1.msra.mxu0 %v2132
    %3102 = vmatprep.subr.mxu0 0.0
    %3103 = vmatpush1.msra.mxu0 %v2131
    %3104 = vmatprep.subr.mxu0 0.0
    %3105 = vmatpush1.msra.mxu0 %v2130
    %3106 = vmatprep.subr.mxu0 0.0
    %3107 = vmatpush2.msra.mxu0 0.0
    %3108 = vmatprep.subr.mxu0 0.0
    %3109 = vmatpush2.msra.mxu0 0.0
    %3110 = vmatprep.subr.mxu0 0.0
    %3111 = vmatpush2.msra.mxu0 0.0
    %3112 = vmatprep.subr.mxu0 0.0
    %3113 = vmatpush2.msra.mxu0 0.0
    %3114 = vmatprep.subr.mxu0 0.0
    %3115 = vmatpush2.msra.mxu0 0.0
    %3116 = vmatprep.subr.mxu0 0.0
    %3117 = vmatpush2.msra.mxu0 0.0
    %3118 = vmatprep.subr.mxu0 0.0
    %3119 = vmatpush2.msra.mxu0 0.0
    %3120 = vmatprep.subr.mxu0 0.0
    %3121 = vmatpush2.msra.mxu0 0.0
    %3122 = vmatprep.subr.mxu0 0.0
    %3123 = vmatpush2.msra.mxu0 0.0
    %3124 = vmatprep.subr.mxu0 0.0
    %3125 = vmatpush2.msra.mxu0 0.0
    %3126 = vmatprep.subr.mxu0 0.0
    %3127 = vmatpush2.msra.mxu0 0.0
    %3128 = vmatprep.subr.mxu0 0.0
    %3129 = vmatpush2.msra.mxu0 0.0
    %3130 = vmatprep.subr.mxu0 0.0
    %3131 = vmatpush2.msra.mxu0 0.0
    %3132 = vmatprep.subr.mxu0 0.0
    %3133 = vmatpush2.msra.mxu0 0.0
    %3134 = vmatprep.subr.mxu0 0.0
    %3135 = vmatpush2.msra.mxu0 0.0
    %3136 = vmatprep.subr.mxu0 0.0
    %3137 = vmatpush2.msra.mxu0 0.0
    %3138 = vmatprep.mubr.f32.mxu0 0.0
    %3139 = vmatmul.mubr.f32.gmra.mxu0 %v3072
    %v3140 = vpop.f32.mrf.mxu0
    %v3141 = vadd.f32 0.0, %v3140
    %v3142 = vpop.f32.mrf.mxu0
    %3143 = vdwg.mxu0
    %v3145 = vrot.slane %v3141, 2
    %v3147 = vadd.f32 %v2118, %v3145
    %v3148 = vxor.u32 %v3147, 2147483648
    %v3149 = vmul.f32 %v3148, 1.442695
    %v3150 = vpow.pop %v3149
    %v3151 = vadd.f32 %v3150, 1.0
    %v3152 = vrcp.pop %v3151
    %v3153 = vmul.f32 1.0, %v3152
    %v3154 = vtanh.pop %v3147
    %v3156 = vrot.slane %v2958, 2
    %v3158 = vmul.f32 %v3153, %v3156
    %3160 = vrot.lane.b32.xlu0 %v3154, 64
    %v3161 = vpop.permute.xlu0 %3160
    %v3163 = vmul.f32 %v3153, %v3161
    %3165 = vrot.lane.b32.xlu0 %v3163, 32
    %v3166 = vpop.permute.xlu0 %3165
    %v3168 = vadd.f32 %v3158, %v3166
    %v3169 = vtanh.pop %v3168
    %3171 = vrot.lane.b32.xlu0 %v3169, 64
    %v3172 = vpop.permute.xlu0 %3171
    %v3174 = vmul.f32 %v3153, %v3172
    %3176 = vrot.lane.b32.xlu0 %v3068, 32
    %v3177 = vpop.permute.xlu0 %3176
    %v3178 = vsel %vm259, %v3177, 0
    %3180 = vmatprep.subr.mxu0 0.0
    %3181 = vmatpush1.msra.mxu0 0.0
    %3182 = vmatprep.subr.mxu0 0.0
    %3183 = vmatpush1.msra.mxu0 0.0
    %3184 = vmatprep.subr.mxu0 0.0
    %3185 = vmatpush1.msra.mxu0 0.0
    %3186 = vmatprep.subr.mxu0 0.0
    %3187 = vmatpush1.msra.mxu0 0.0
    %3188 = vmatprep.subr.mxu0 0.0
    %3189 = vmatpush1.msra.mxu0 0.0
    %3190 = vmatprep.subr.mxu0 0.0
    %3191 = vmatpush1.msra.mxu0 0.0
    %3192 = vmatprep.subr.mxu0 0.0
    %3193 = vmatpush1.msra.mxu0 0.0
    %3194 = vmatprep.subr.mxu0 0.0
    %3195 = vmatpush1.msra.mxu0 0.0
    %3196 = vmatprep.subr.mxu0 0.0
    %3197 = vmatpush1.msra.mxu0 0.0
    %3198 = vmatprep.subr.mxu0 0.0
    %3199 = vmatpush1.msra.mxu0 0.0
    %3200 = vmatprep.subr.mxu0 0.0
    %3201 = vmatpush1.msra.mxu0 0.0
    %3202 = vmatprep.subr.mxu0 0.0
    %3203 = vmatpush1.msra.mxu0 0.0
    %3204 = vmatprep.subr.mxu0 0.0
    %3205 = vmatpush1.msra.mxu0 %v2129
    %3206 = vmatprep.subr.mxu0 0.0
    %3207 = vmatpush1.msra.mxu0 %v2128
    %3208 = vmatprep.subr.mxu0 0.0
    %3209 = vmatpush1.msra.mxu0 %v2127
    %3210 = vmatprep.subr.mxu0 0.0
    %3211 = vmatpush1.msra.mxu0 %v2126
    %3212 = vmatprep.subr.mxu0 0.0
    %3213 = vmatpush2.msra.mxu0 0.0
    %3214 = vmatprep.subr.mxu0 0.0
    %3215 = vmatpush2.msra.mxu0 0.0
    %3216 = vmatprep.subr.mxu0 0.0
    %3217 = vmatpush2.msra.mxu0 0.0
    %3218 = vmatprep.subr.mxu0 0.0
    %3219 = vmatpush2.msra.mxu0 0.0
    %3220 = vmatprep.subr.mxu0 0.0
    %3221 = vmatpush2.msra.mxu0 0.0
    %3222 = vmatprep.subr.mxu0 0.0
    %3223 = vmatpush2.msra.mxu0 0.0
    %3224 = vmatprep.subr.mxu0 0.0
    %3225 = vmatpush2.msra.mxu0 0.0
    %3226 = vmatprep.subr.mxu0 0.0
    %3227 = vmatpush2.msra.mxu0 0.0
    %3228 = vmatprep.subr.mxu0 0.0
    %3229 = vmatpush2.msra.mxu0 0.0
    %3230 = vmatprep.subr.mxu0 0.0
    %3231 = vmatpush2.msra.mxu0 0.0
    %3232 = vmatprep.subr.mxu0 0.0
    %3233 = vmatpush2.msra.mxu0 0.0
    %3234 = vmatprep.subr.mxu0 0.0
    %3235 = vmatpush2.msra.mxu0 0.0
    %3236 = vmatprep.subr.mxu0 0.0
    %3237 = vmatpush2.msra.mxu0 0.0
    %3238 = vmatprep.subr.mxu0 0.0
    %3239 = vmatpush2.msra.mxu0 0.0
    %3240 = vmatprep.subr.mxu0 0.0
    %3241 = vmatpush2.msra.mxu0 0.0
    %3242 = vmatprep.subr.mxu0 0.0
    %3243 = vmatpush2.msra.mxu0 0.0
    %3244 = vmatprep.mubr.f32.mxu0 0.0
    %3245 = vmatmul.mubr.f32.gmra.mxu0 %v3178
    %v3246 = vpop.f32.mrf.mxu0
    %v3247 = vadd.f32 0.0, %v3246
    %v3248 = vpop.f32.mrf.mxu0
    %3249 = vdwg.mxu0
    %v3251 = vrot.slane %v3247, 6
    %v3253 = vadd.f32 %v2122, %v3251
    %v3254 = vxor.u32 %v3253, 2147483648
    %v3255 = vmul.f32 %v3254, 1.442695
    %v3256 = vpow.pop %v3255
    %v3257 = vadd.f32 %v3256, 1.0
    %v3258 = vrcp.pop %v3257
    %v3259 = vmul.f32 1.0, %v3258
    %v3260 = vtanh.pop %v3253
    %v3262 = vrot.slane %v3062, 6
    %v3264 = vmul.f32 %v3259, %v3262
    %3266 = vrot.lane.b32.xlu0 %v3260, 64
    %v3267 = vpop.permute.xlu0 %3266
    %v3269 = vmul.f32 %v3259, %v3267
    %3271 = vrot.lane.b32.xlu0 %v3269, 32
    %v3272 = vpop.permute.xlu0 %3271
    %v3274 = vadd.f32 %v3264, %v3272
    %v3275 = vtanh.pop %v3274
    %3277 = vrot.lane.b32.xlu0 %v3275, 64
    %v3278 = vpop.permute.xlu0 %3277
    %v3280 = vmul.f32 %v3259, %v3278
    %v3282 = vrot.slane %v3174, 6
    %3283 = vrot.lane.b32.xlu0 %v3282, 32
    %v3284 = vpop.permute.xlu0 %3283
    %v3285 = vsel %vm259, %v3284, 0
    %3287 = vmatprep.subr.mxu0 0.0
    %3288 = vmatpush1.msra.mxu0 0.0
    %3289 = vmatprep.subr.mxu0 0.0
    %3290 = vmatpush1.msra.mxu0 0.0
    %3291 = vmatprep.subr.mxu0 0.0
    %3292 = vmatpush1.msra.mxu0 0.0
    %3293 = vmatprep.subr.mxu0 0.0
    %3294 = vmatpush1.msra.mxu0 0.0
    %3295 = vmatprep.subr.mxu0 0.0
    %3296 = vmatpush1.msra.mxu0 0.0
    %3297 = vmatprep.subr.mxu0 0.0
    %3298 = vmatpush1.msra.mxu0 0.0
    %3299 = vmatprep.subr.mxu0 0.0
    %3300 = vmatpush1.msra.mxu0 0.0
    %3301 = vmatprep.subr.mxu0 0.0
    %3302 = vmatpush1.msra.mxu0 0.0
    %3303 = vmatprep.subr.mxu0 0.0
    %3304 = vmatpush1.msra.mxu0 0.0
    %3305 = vmatprep.subr.mxu0 0.0
    %3306 = vmatpush1.msra.mxu0 0.0
    %3307 = vmatprep.subr.mxu0 0.0
    %3308 = vmatpush1.msra.mxu0 0.0
    %3309 = vmatprep.subr.mxu0 0.0
    %3310 = vmatpush1.msra.mxu0 0.0
    %3311 = vmatprep.subr.mxu0 0.0
    %3312 = vmatpush1.msra.mxu0 %v2133
    %3313 = vmatprep.subr.mxu0 0.0
    %3314 = vmatpush1.msra.mxu0 %v2132
    %3315 = vmatprep.subr.mxu0 0.0
    %3316 = vmatpush1.msra.mxu0 %v2131
    %3317 = vmatprep.subr.mxu0 0.0
    %3318 = vmatpush1.msra.mxu0 %v2130
    %3319 = vmatprep.subr.mxu0 0.0
    %3320 = vmatpush2.msra.mxu0 0.0
    %3321 = vmatprep.subr.mxu0 0.0
    %3322 = vmatpush2.msra.mxu0 0.0
    %3323 = vmatprep.subr.mxu0 0.0
    %3324 = vmatpush2.msra.mxu0 0.0
    %3325 = vmatprep.subr.mxu0 0.0
    %3326 = vmatpush2.msra.mxu0 0.0
    %3327 = vmatprep.subr.mxu0 0.0
    %3328 = vmatpush2.msra.mxu0 0.0
    %3329 = vmatprep.subr.mxu0 0.0
    %3330 = vmatpush2.msra.mxu0 0.0
    %3331 = vmatprep.subr.mxu0 0.0
    %3332 = vmatpush2.msra.mxu0 0.0
    %3333 = vmatprep.subr.mxu0 0.0
    %3334 = vmatpush2.msra.mxu0 0.0
    %3335 = vmatprep.subr.mxu0 0.0
    %3336 = vmatpush2.msra.mxu0 0.0
    %3337 = vmatprep.subr.mxu0 0.0
    %3338 = vmatpush2.msra.mxu0 0.0
    %3339 = vmatprep.subr.mxu0 0.0
    %3340 = vmatpush2.msra.mxu0 0.0
    %3341 = vmatprep.subr.mxu0 0.0
    %3342 = vmatpush2.msra.mxu0 0.0
    %3343 = vmatprep.subr.mxu0 0.0
    %3344 = vmatpush2.msra.mxu0 0.0
    %3345 = vmatprep.subr.mxu0 0.0
    %3346 = vmatpush2.msra.mxu0 0.0
    %3347 = vmatprep.subr.mxu0 0.0
    %3348 = vmatpush2.msra.mxu0 0.0
    %3349 = vmatprep.subr.mxu0 0.0
    %3350 = vmatpush2.msra.mxu0 0.0
    %3351 = vmatprep.mubr.f32.mxu0 0.0
    %3352 = vmatmul.mubr.f32.gmra.mxu0 %v3285
    %v3353 = vpop.f32.mrf.mxu0
    %v3354 = vadd.f32 0.0, %v3353
    %v3355 = vpop.f32.mrf.mxu0
    %3356 = vdwg.mxu0
    %v3358 = vrot.slane %v3354, 4
    %v3360 = vadd.f32 %v2118, %v3358
    %v3361 = vxor.u32 %v3360, 2147483648
    %v3362 = vmul.f32 %v3361, 1.442695
    %v3363 = vpow.pop %v3362
    %v3364 = vadd.f32 %v3363, 1.0
    %v3365 = vrcp.pop %v3364
    %v3366 = vmul.f32 1.0, %v3365
    %v3367 = vtanh.pop %v3360
    %v3369 = vrot.slane %v3168, 2
    %v3371 = vmul.f32 %v3366, %v3369
    %3373 = vrot.lane.b32.xlu0 %v3367, 64
    %v3374 = vpop.permute.xlu0 %3373
    %v3376 = vmul.f32 %v3366, %v3374
    %3378 = vrot.lane.b32.xlu0 %v3376, 32
    %v3379 = vpop.permute.xlu0 %3378
    %v3381 = vadd.f32 %v3371, %v3379
    %v3382 = vtanh.pop %v3381
    %3384 = vrot.lane.b32.xlu0 %v3382, 64
    %v3385 = vpop.permute.xlu0 %3384
    %v3387 = vmul.f32 %v3366, %v3385
    %v3389 = vrot.slane %v3280, 2
    %3390 = vrot.lane.b32.xlu0 %v3389, 32
    %v3391 = vpop.permute.xlu0 %3390
    %v3392 = vsel %vm259, %v3391, 0
    %3394 = vmatprep.subr.mxu0 0.0
    %3395 = vmatpush1.msra.mxu0 0.0
    %3396 = vmatprep.subr.mxu0 0.0
    %3397 = vmatpush1.msra.mxu0 0.0
    %3398 = vmatprep.subr.mxu0 0.0
    %3399 = vmatpush1.msra.mxu0 0.0
    %3400 = vmatprep.subr.mxu0 0.0
    %3401 = vmatpush1.msra.mxu0 0.0
    %3402 = vmatprep.subr.mxu0 0.0
    %3403 = vmatpush1.msra.mxu0 0.0
    %3404 = vmatprep.subr.mxu0 0.0
    %3405 = vmatpush1.msra.mxu0 0.0
    %3406 = vmatprep.subr.mxu0 0.0
    %3407 = vmatpush1.msra.mxu0 0.0
    %3408 = vmatprep.subr.mxu0 0.0
    %3409 = vmatpush1.msra.mxu0 0.0
    %3410 = vmatprep.subr.mxu0 0.0
    %3411 = vmatpush1.msra.mxu0 0.0
    %3412 = vmatprep.subr.mxu0 0.0
    %3413 = vmatpush1.msra.mxu0 0.0
    %3414 = vmatprep.subr.mxu0 0.0
    %3415 = vmatpush1.msra.mxu0 0.0
    %3416 = vmatprep.subr.mxu0 0.0
    %3417 = vmatpush1.msra.mxu0 0.0
    %3418 = vmatprep.subr.mxu0 0.0
    %3419 = vmatpush1.msra.mxu0 %v2129
    %3420 = vmatprep.subr.mxu0 0.0
    %3421 = vmatpush1.msra.mxu0 %v2128
    %3422 = vmatprep.subr.mxu0 0.0
    %3423 = vmatpush1.msra.mxu0 %v2127
    %3424 = vmatprep.subr.mxu0 0.0
    %3425 = vmatpush1.msra.mxu0 %v2126
    %3426 = vmatprep.subr.mxu0 0.0
    %3427 = vmatpush2.msra.mxu0 0.0
    %3428 = vmatprep.subr.mxu0 0.0
    %3429 = vmatpush2.msra.mxu0 0.0
    %3430 = vmatprep.subr.mxu0 0.0
    %3431 = vmatpush2.msra.mxu0 0.0
    %3432 = vmatprep.subr.mxu0 0.0
    %3433 = vmatpush2.msra.mxu0 0.0
    %3434 = vmatprep.subr.mxu0 0.0
    %3435 = vmatpush2.msra.mxu0 0.0
    %3436 = vmatprep.subr.mxu0 0.0
    %3437 = vmatpush2.msra.mxu0 0.0
    %3438 = vmatprep.subr.mxu0 0.0
    %3439 = vmatpush2.msra.mxu0 0.0
    %3440 = vmatprep.subr.mxu0 0.0
    %3441 = vmatpush2.msra.mxu0 0.0
    %3442 = vmatprep.subr.mxu0 0.0
    %3443 = vmatpush2.msra.mxu0 0.0
    %3444 = vmatprep.subr.mxu0 0.0
    %3445 = vmatpush2.msra.mxu0 0.0
    %3446 = vmatprep.subr.mxu0 0.0
    %3447 = vmatpush2.msra.mxu0 0.0
    %3448 = vmatprep.subr.mxu0 0.0
    %3449 = vmatpush2.msra.mxu0 0.0
    %3450 = vmatprep.subr.mxu0 0.0
    %3451 = vmatpush2.msra.mxu0 0.0
    %3452 = vmatprep.subr.mxu0 0.0
    %3453 = vmatpush2.msra.mxu0 0.0
    %3454 = vmatprep.subr.mxu0 0.0
    %3455 = vmatpush2.msra.mxu0 0.0
    %3456 = vmatprep.subr.mxu0 0.0
    %3457 = vmatpush2.msra.mxu0 0.0
    %3458 = vmatprep.mubr.f32.mxu0 0.0
    %3459 = vmatmul.mubr.f32.gmra.mxu0 %v3392
    %v3460 = vpop.f32.mrf.mxu0
    %v3461 = vadd.f32 0.0, %v3460
    %v3462 = vpop.f32.mrf.mxu0
    %3463 = vdwg.mxu0
    %v3465 = vrot.slane %v3461, 4
    %v3467 = vadd.f32 %v2122, %v3465
    %v3468 = vxor.u32 %v3467, 2147483648
    %v3469 = vmul.f32 %v3468, 1.442695
    %v3470 = vpow.pop %v3469
    %v3471 = vadd.f32 %v3470, 1.0
    %v3472 = vrcp.pop %v3471
    %v3473 = vmul.f32 1.0, %v3472
    %v3474 = vtanh.pop %v3467
    %v3476 = vrot.slane %v3274, 6
    %v3478 = vmul.f32 %v3473, %v3476
    %3480 = vrot.lane.b32.xlu0 %v3474, 64
    %v3481 = vpop.permute.xlu0 %3480
    %v3483 = vmul.f32 %v3473, %v3481
    %3485 = vrot.lane.b32.xlu0 %v3483, 32
    %v3486 = vpop.permute.xlu0 %3485
    %v3488 = vadd.f32 %v3478, %v3486
    %v3489 = vtanh.pop %v3488
    %3491 = vrot.lane.b32.xlu0 %v3489, 64
    %v3492 = vpop.permute.xlu0 %3491
    %v3494 = vmul.f32 %v3473, %v3492
    %v3496 = vrot.slane %v3387, 4
    %3497 = vrot.lane.b32.xlu0 %v3496, 32
    %v3498 = vpop.permute.xlu0 %3497
    %v3499 = vsel %vm259, %v3498, 0
    %3501 = vmatprep.subr.mxu0 0.0
    %3502 = vmatpush1.msra.mxu0 0.0
    %3503 = vmatprep.subr.mxu0 0.0
    %3504 = vmatpush1.msra.mxu0 0.0
    %3505 = vmatprep.subr.mxu0 0.0
    %3506 = vmatpush1.msra.mxu0 0.0
    %3507 = vmatprep.subr.mxu0 0.0
    %3508 = vmatpush1.msra.mxu0 0.0
    %3509 = vmatprep.subr.mxu0 0.0
    %3510 = vmatpush1.msra.mxu0 0.0
    %3511 = vmatprep.subr.mxu0 0.0
    %3512 = vmatpush1.msra.mxu0 0.0
    %3513 = vmatprep.subr.mxu0 0.0
    %3514 = vmatpush1.msra.mxu0 0.0
    %3515 = vmatprep.subr.mxu0 0.0
    %3516 = vmatpush1.msra.mxu0 0.0
    %3517 = vmatprep.subr.mxu0 0.0
    %3518 = vmatpush1.msra.mxu0 0.0
    %3519 = vmatprep.subr.mxu0 0.0
    %3520 = vmatpush1.msra.mxu0 0.0
    %3521 = vmatprep.subr.mxu0 0.0
    %3522 = vmatpush1.msra.mxu0 0.0
    %3523 = vmatprep.subr.mxu0 0.0
    %3524 = vmatpush1.msra.mxu0 0.0
    %3525 = vmatprep.subr.mxu0 0.0
    %3526 = vmatpush1.msra.mxu0 %v2133
    %3527 = vmatprep.subr.mxu0 0.0
    %3528 = vmatpush1.msra.mxu0 %v2132
    %3529 = vmatprep.subr.mxu0 0.0
    %3530 = vmatpush1.msra.mxu0 %v2131
    %3531 = vmatprep.subr.mxu0 0.0
    %3532 = vmatpush1.msra.mxu0 %v2130
    %3533 = vmatprep.subr.mxu0 0.0
    %3534 = vmatpush2.msra.mxu0 0.0
    %3535 = vmatprep.subr.mxu0 0.0
    %3536 = vmatpush2.msra.mxu0 0.0
    %3537 = vmatprep.subr.mxu0 0.0
    %3538 = vmatpush2.msra.mxu0 0.0
    %3539 = vmatprep.subr.mxu0 0.0
    %3540 = vmatpush2.msra.mxu0 0.0
    %3541 = vmatprep.subr.mxu0 0.0
    %3542 = vmatpush2.msra.mxu0 0.0
    %3543 = vmatprep.subr.mxu0 0.0
    %3544 = vmatpush2.msra.mxu0 0.0
    %3545 = vmatprep.subr.mxu0 0.0
    %3546 = vmatpush2.msra.mxu0 0.0
    %3547 = vmatprep.subr.mxu0 0.0
    %3548 = vmatpush2.msra.mxu0 0.0
    %3549 = vmatprep.subr.mxu0 0.0
    %3550 = vmatpush2.msra.mxu0 0.0
    %3551 = vmatprep.subr.mxu0 0.0
    %3552 = vmatpush2.msra.mxu0 0.0
    %3553 = vmatprep.subr.mxu0 0.0
    %3554 = vmatpush2.msra.mxu0 0.0
    %3555 = vmatprep.subr.mxu0 0.0
    %3556 = vmatpush2.msra.mxu0 0.0
    %3557 = vmatprep.subr.mxu0 0.0
    %3558 = vmatpush2.msra.mxu0 0.0
    %3559 = vmatprep.subr.mxu0 0.0
    %3560 = vmatpush2.msra.mxu0 0.0
    %3561 = vmatprep.subr.mxu0 0.0
    %3562 = vmatpush2.msra.mxu0 0.0
    %3563 = vmatprep.subr.mxu0 0.0
    %3564 = vmatpush2.msra.mxu0 0.0
    %3565 = vmatprep.mubr.f32.mxu0 0.0
    %3566 = vmatmul.mubr.f32.gmra.mxu0 %v3499
    %v3567 = vpop.f32.mrf.mxu0
    %v3568 = vadd.f32 0.0, %v3567
    %v3569 = vpop.f32.mrf.mxu0
    %3570 = vdwg.mxu0
    %v3572 = vrot.slane %v3568, 6
    %v3574 = vadd.f32 %v2118, %v3572
    %v3575 = vxor.u32 %v3574, 2147483648
    %v3576 = vmul.f32 %v3575, 1.442695
    %v3577 = vpow.pop %v3576
    %v3578 = vadd.f32 %v3577, 1.0
    %v3579 = vrcp.pop %v3578
    %v3580 = vmul.f32 1.0, %v3579
    %v3581 = vtanh.pop %v3574
    %v3583 = vrot.slane %v3381, 2
    %v3585 = vmul.f32 %v3580, %v3583
    %3587 = vrot.lane.b32.xlu0 %v3581, 64
    %v3588 = vpop.permute.xlu0 %3587
    %v3590 = vmul.f32 %v3580, %v3588
    %3592 = vrot.lane.b32.xlu0 %v3590, 32
    %v3593 = vpop.permute.xlu0 %3592
    %v3595 = vadd.f32 %v3585, %v3593
    %v3596 = vtanh.pop %v3595
    %3598 = vrot.lane.b32.xlu0 %v3596, 64
    %v3599 = vpop.permute.xlu0 %3598
    %v3601 = vmul.f32 %v3580, %v3599
    %v3603 = vrot.slane %v3494, 4
    %3604 = vrot.lane.b32.xlu0 %v3603, 32
    %v3605 = vpop.permute.xlu0 %3604
    %v3606 = vsel %vm259, %v3605, 0
    %3608 = vmatprep.subr.mxu0 0.0
    %3609 = vmatpush1.msra.mxu0 0.0
    %3610 = vmatprep.subr.mxu0 0.0
    %3611 = vmatpush1.msra.mxu0 0.0
    %3612 = vmatprep.subr.mxu0 0.0
    %3613 = vmatpush1.msra.mxu0 0.0
    %3614 = vmatprep.subr.mxu0 0.0
    %3615 = vmatpush1.msra.mxu0 0.0
    %3616 = vmatprep.subr.mxu0 0.0
    %3617 = vmatpush1.msra.mxu0 0.0
    %3618 = vmatprep.subr.mxu0 0.0
    %3619 = vmatpush1.msra.mxu0 0.0
    %3620 = vmatprep.subr.mxu0 0.0
    %3621 = vmatpush1.msra.mxu0 0.0
    %3622 = vmatprep.subr.mxu0 0.0
    %3623 = vmatpush1.msra.mxu0 0.0
    %3624 = vmatprep.subr.mxu0 0.0
    %3625 = vmatpush1.msra.mxu0 0.0
    %3626 = vmatprep.subr.mxu0 0.0
    %3627 = vmatpush1.msra.mxu0 0.0
    %3628 = vmatprep.subr.mxu0 0.0
    %3629 = vmatpush1.msra.mxu0 0.0
    %3630 = vmatprep.subr.mxu0 0.0
    %3631 = vmatpush1.msra.mxu0 0.0
    %3632 = vmatprep.subr.mxu0 0.0
    %3633 = vmatpush1.msra.mxu0 %v2129
    %3634 = vmatprep.subr.mxu0 0.0
    %3635 = vmatpush1.msra.mxu0 %v2128
    %3636 = vmatprep.subr.mxu0 0.0
    %3637 = vmatpush1.msra.mxu0 %v2127
    %3638 = vmatprep.subr.mxu0 0.0
    %3639 = vmatpush1.msra.mxu0 %v2126
    %3640 = vmatprep.subr.mxu0 0.0
    %3641 = vmatpush2.msra.mxu0 0.0
    %3642 = vmatprep.subr.mxu0 0.0
    %3643 = vmatpush2.msra.mxu0 0.0
    %3644 = vmatprep.subr.mxu0 0.0
    %3645 = vmatpush2.msra.mxu0 0.0
    %3646 = vmatprep.subr.mxu0 0.0
    %3647 = vmatpush2.msra.mxu0 0.0
    %3648 = vmatprep.subr.mxu0 0.0
    %3649 = vmatpush2.msra.mxu0 0.0
    %3650 = vmatprep.subr.mxu0 0.0
    %3651 = vmatpush2.msra.mxu0 0.0
    %3652 = vmatprep.subr.mxu0 0.0
    %3653 = vmatpush2.msra.mxu0 0.0
    %3654 = vmatprep.subr.mxu0 0.0
    %3655 = vmatpush2.msra.mxu0 0.0
    %3656 = vmatprep.subr.mxu0 0.0
    %3657 = vmatpush2.msra.mxu0 0.0
    %3658 = vmatprep.subr.mxu0 0.0
    %3659 = vmatpush2.msra.mxu0 0.0
    %3660 = vmatprep.subr.mxu0 0.0
    %3661 = vmatpush2.msra.mxu0 0.0
    %3662 = vmatprep.subr.mxu0 0.0
    %3663 = vmatpush2.msra.mxu0 0.0
    %3664 = vmatprep.subr.mxu0 0.0
    %3665 = vmatpush2.msra.mxu0 0.0
    %3666 = vmatprep.subr.mxu0 0.0
    %3667 = vmatpush2.msra.mxu0 0.0
    %3668 = vmatprep.subr.mxu0 0.0
    %3669 = vmatpush2.msra.mxu0 0.0
    %3670 = vmatprep.subr.mxu0 0.0
    %3671 = vmatpush2.msra.mxu0 0.0
    %3672 = vmatprep.mubr.f32.mxu0 0.0
    %3673 = vmatmul.mubr.f32.gmra.mxu0 %v3606
    %v3674 = vpop.f32.mrf.mxu0
    %v3675 = vadd.f32 0.0, %v3674
    %v3676 = vpop.f32.mrf.mxu0
    %3677 = vdwg.mxu0
    %v3679 = vrot.slane %v3675, 2
    %v3681 = vadd.f32 %v2122, %v3679
    %v3682 = vxor.u32 %v3681, 2147483648
    %v3683 = vmul.f32 %v3682, 1.442695
    %v3684 = vpow.pop %v3683
    %v3685 = vadd.f32 %v3684, 1.0
    %v3686 = vrcp.pop %v3685
    %v3687 = vmul.f32 1.0, %v3686
    %v3688 = vtanh.pop %v3681
    %v3690 = vrot.slane %v3488, 6
    %v3692 = vmul.f32 %v3687, %v3690
    %3694 = vrot.lane.b32.xlu0 %v3688, 64
    %v3695 = vpop.permute.xlu0 %3694
    %v3697 = vmul.f32 %v3687, %v3695
    %3699 = vrot.lane.b32.xlu0 %v3697, 32
    %v3700 = vpop.permute.xlu0 %3699
    %v3702 = vadd.f32 %v3692, %v3700
    %v3703 = vtanh.pop %v3702
    %3705 = vrot.lane.b32.xlu0 %v3703, 64
    %v3706 = vpop.permute.xlu0 %3705
    %v3708 = vmul.f32 %v3687, %v3706
    %v3710 = vrot.slane %v3601, 2
    %3711 = vrot.lane.b32.xlu0 %v3710, 32
    %v3712 = vpop.permute.xlu0 %3711
    %v3713 = vsel %vm259, %v3712, 0
    %3715 = vmatprep.subr.mxu0 0.0
    %3716 = vmatpush1.msra.mxu0 0.0
    %3717 = vmatprep.subr.mxu0 0.0
    %3718 = vmatpush1.msra.mxu0 0.0
    %3719 = vmatprep.subr.mxu0 0.0
    %3720 = vmatpush1.msra.mxu0 0.0
    %3721 = vmatprep.subr.mxu0 0.0
    %3722 = vmatpush1.msra.mxu0 0.0
    %3723 = vmatprep.subr.mxu0 0.0
    %3724 = vmatpush1.msra.mxu0 0.0
    %3725 = vmatprep.subr.mxu0 0.0
    %3726 = vmatpush1.msra.mxu0 0.0
    %3727 = vmatprep.subr.mxu0 0.0
    %3728 = vmatpush1.msra.mxu0 0.0
    %3729 = vmatprep.subr.mxu0 0.0
    %3730 = vmatpush1.msra.mxu0 0.0
    %3731 = vmatprep.subr.mxu0 0.0
    %3732 = vmatpush1.msra.mxu0 0.0
    %3733 = vmatprep.subr.mxu0 0.0
    %3734 = vmatpush1.msra.mxu0 0.0
    %3735 = vmatprep.subr.mxu0 0.0
    %3736 = vmatpush1.msra.mxu0 0.0
    %3737 = vmatprep.subr.mxu0 0.0
    %3738 = vmatpush1.msra.mxu0 0.0
    %3739 = vmatprep.subr.mxu0 0.0
    %3740 = vmatpush1.msra.mxu0 %v2133
    %3741 = vmatprep.subr.mxu0 0.0
    %3742 = vmatpush1.msra.mxu0 %v2132
    %3743 = vmatprep.subr.mxu0 0.0
    %3744 = vmatpush1.msra.mxu0 %v2131
    %3745 = vmatprep.subr.mxu0 0.0
    %3746 = vmatpush1.msra.mxu0 %v2130
    %3747 = vmatprep.subr.mxu0 0.0
    %3748 = vmatpush2.msra.mxu0 0.0
    %3749 = vmatprep.subr.mxu0 0.0
    %3750 = vmatpush2.msra.mxu0 0.0
    %3751 = vmatprep.subr.mxu0 0.0
    %3752 = vmatpush2.msra.mxu0 0.0
    %3753 = vmatprep.subr.mxu0 0.0
    %3754 = vmatpush2.msra.mxu0 0.0
    %3755 = vmatprep.subr.mxu0 0.0
    %3756 = vmatpush2.msra.mxu0 0.0
    %3757 = vmatprep.subr.mxu0 0.0
    %3758 = vmatpush2.msra.mxu0 0.0
    %3759 = vmatprep.subr.mxu0 0.0
    %3760 = vmatpush2.msra.mxu0 0.0
    %3761 = vmatprep.subr.mxu0 0.0
    %3762 = vmatpush2.msra.mxu0 0.0
    %3763 = vmatprep.subr.mxu0 0.0
    %3764 = vmatpush2.msra.mxu0 0.0
    %3765 = vmatprep.subr.mxu0 0.0
    %3766 = vmatpush2.msra.mxu0 0.0
    %3767 = vmatprep.subr.mxu0 0.0
    %3768 = vmatpush2.msra.mxu0 0.0
    %3769 = vmatprep.subr.mxu0 0.0
    %3770 = vmatpush2.msra.mxu0 0.0
    %3771 = vmatprep.subr.mxu0 0.0
    %3772 = vmatpush2.msra.mxu0 0.0
    %3773 = vmatprep.subr.mxu0 0.0
    %3774 = vmatpush2.msra.mxu0 0.0
    %3775 = vmatprep.subr.mxu0 0.0
    %3776 = vmatpush2.msra.mxu0 0.0
    %3777 = vmatprep.subr.mxu0 0.0
    %3778 = vmatpush2.msra.mxu0 0.0
    %3779 = vmatprep.mubr.f32.mxu0 0.0
    %3780 = vmatmul.mubr.f32.gmra.mxu0 %v3713
    %v3781 = vpop.f32.mrf.mxu0
    %v3782 = vadd.f32 0.0, %v3781
    %v3783 = vpop.f32.mrf.mxu0
    %3784 = vdwg.mxu0
    %v3785 = vadd.f32 %v2118, %v3782
    %v3786 = vxor.u32 %v3785, 2147483648
    %v3787 = vmul.f32 %v3786, 1.442695
    %v3788 = vpow.pop %v3787
    %v3789 = vadd.f32 %v3788, 1.0
    %v3790 = vrcp.pop %v3789
    %v3791 = vmul.f32 1.0, %v3790
    %v3792 = vtanh.pop %v3785
    %v3794 = vrot.slane %v3595, 2
    %v3796 = vmul.f32 %v3791, %v3794
    %3798 = vrot.lane.b32.xlu0 %v3792, 64
    %v3799 = vpop.permute.xlu0 %3798
    %v3801 = vmul.f32 %v3791, %v3799
    %3803 = vrot.lane.b32.xlu0 %v3801, 32
    %v3804 = vpop.permute.xlu0 %3803
    %v3806 = vadd.f32 %v3796, %v3804
    %v3807 = vtanh.pop %v3806
    %3809 = vrot.lane.b32.xlu0 %v3807, 64
    %v3810 = vpop.permute.xlu0 %3809
    %v3812 = vmul.f32 %v3791, %v3810
    %3815 = vrot.lane.b32.xlu0 %v3812, 64
    %v3816 = vpop.permute.xlu0 %3815
    %v3819 = vrot.slane %v3708, 6
    %3820 = vrot.lane.b32.xlu0 %v3819, 96
    %v3821 = vpop.permute.xlu0 %3820
    %v3824 = vsel %vm259, %v2329, %v3816
    %v3825 = vsel %vm2042, %v3824, %v3821
    %vm3826 = vcmask 785408
    %v3827 = vsel %vm3826, %v3825, %v2434
    %v3828 = vld [vmem:[%s10] sm:$0xff]
    %v3829 = vld [vmem:[%s10 + $0x8] sm:$0xff]
    %v3830 = vld [vmem:[%s10 + $0x10] sm:$0xff]
    %v3831 = vld [vmem:[%s10 + $0x18] sm:$0xff]
    %v3832 = vld [vmem:[%s10 + $0x20] sm:$0xff]
    %v3833 = vld [vmem:[%s10 + $0x28] sm:$0xff]
    %v3834 = vld [vmem:[%s10 + $0x30] sm:$0xff]
    %v3835 = vld [vmem:[%s10 + $0x38] sm:$0xff]
    %v3836 = vld [vmem:[%s10 + $0x40] sm:$0xff]
    %v3837 = vld [vmem:[%s10 + $0x48] sm:$0xff]
    %v3838 = vld [vmem:[%s10 + $0x50] sm:$0xff]
    %v3839 = vld [vmem:[%s10 + $0x58] sm:$0xff]
    %v3840 = vld [vmem:[%s10 + $0x60] sm:$0xff]
    %v3841 = vld [vmem:[%s10 + $0x68] sm:$0xff]
    %v3842 = vld [vmem:[%s10 + $0x70] sm:$0xff]
    %v3843 = vld [vmem:[%s10 + $0x78] sm:$0xff]
    %v3844 = vld [vmem:[%s11] sm:$0x1]
    %v3846 = vlaneseq
    %v3847 = vshrl.u32 %v3846, 7
    %v3848 = vsub.s32 0, %v3847
    %v3849 = vrot.slane %v3844, %v3848
    %3851 = vmatprep.subr.mxu0 0.0
    %3852 = vmatpush1.msra.mxu0 %v3843
    %3853 = vmatprep.subr.mxu0 0.0
    %3854 = vmatpush1.msra.mxu0 %v3842
    %3855 = vmatprep.subr.mxu0 0.0
    %3856 = vmatpush1.msra.mxu0 %v3841
    %3857 = vmatprep.subr.mxu0 0.0
    %3858 = vmatpush1.msra.mxu0 %v3840
    %3859 = vmatprep.subr.mxu0 0.0
    %3860 = vmatpush1.msra.mxu0 %v3839
    %3861 = vmatprep.subr.mxu0 0.0
    %3862 = vmatpush1.msra.mxu0 %v3838
    %3863 = vmatprep.subr.mxu0 0.0
    %3864 = vmatpush1.msra.mxu0 %v3837
    %3865 = vmatprep.subr.mxu0 0.0
    %3866 = vmatpush1.msra.mxu0 %v3836
    %3867 = vmatprep.subr.mxu0 0.0
    %3868 = vmatpush1.msra.mxu0 %v3835
    %3869 = vmatprep.subr.mxu0 0.0
    %3870 = vmatpush1.msra.mxu0 %v3834
    %3871 = vmatprep.subr.mxu0 0.0
    %3872 = vmatpush1.msra.mxu0 %v3833
    %3873 = vmatprep.subr.mxu0 0.0
    %3874 = vmatpush1.msra.mxu0 %v3832
    %3875 = vmatprep.subr.mxu0 0.0
    %3876 = vmatpush1.msra.mxu0 %v3831
    %3877 = vmatprep.subr.mxu0 0.0
    %3878 = vmatpush1.msra.mxu0 %v3830
    %3879 = vmatprep.subr.mxu0 0.0
    %3880 = vmatpush1.msra.mxu0 %v3829
    %3881 = vmatprep.subr.mxu0 0.0
    %3882 = vmatpush1.msra.mxu0 %v3828
    %3883 = vmatprep.subr.mxu0 0.0
    %3884 = vmatpush2.msra.mxu0 0.0
    %3885 = vmatprep.subr.mxu0 0.0
    %3886 = vmatpush2.msra.mxu0 0.0
    %3887 = vmatprep.subr.mxu0 0.0
    %3888 = vmatpush2.msra.mxu0 0.0
    %3889 = vmatprep.subr.mxu0 0.0
    %3890 = vmatpush2.msra.mxu0 0.0
    %3891 = vmatprep.subr.mxu0 0.0
    %3892 = vmatpush2.msra.mxu0 0.0
    %3893 = vmatprep.subr.mxu0 0.0
    %3894 = vmatpush2.msra.mxu0 0.0
    %3895 = vmatprep.subr.mxu0 0.0
    %3896 = vmatpush2.msra.mxu0 0.0
    %3897 = vmatprep.subr.mxu0 0.0
    %3898 = vmatpush2.msra.mxu0 0.0
    %3899 = vmatprep.subr.mxu0 0.0
    %3900 = vmatpush2.msra.mxu0 0.0
    %3901 = vmatprep.subr.mxu0 0.0
    %3902 = vmatpush2.msra.mxu0 0.0
    %3903 = vmatprep.subr.mxu0 0.0
    %3904 = vmatpush2.msra.mxu0 0.0
    %3905 = vmatprep.subr.mxu0 0.0
    %3906 = vmatpush2.msra.mxu0 0.0
    %3907 = vmatprep.subr.mxu0 0.0
    %3908 = vmatpush2.msra.mxu0 0.0
    %3909 = vmatprep.subr.mxu0 0.0
    %3910 = vmatpush2.msra.mxu0 0.0
    %3911 = vmatprep.subr.mxu0 0.0
    %3912 = vmatpush2.msra.mxu0 0.0
    %3913 = vmatprep.subr.mxu0 0.0
    %3914 = vmatpush2.msra.mxu0 0.0
    %3915 = vmatprep.mubr.f32.mxu0 0.0
    %3916 = vmatmul.mubr.f32.gmra.mxu0 %v3827
    %v3917 = vpop.f32.mrf.mxu0
    %v3918 = vadd.f32 %v3849, %v3917
    %v3919 = vpop.f32.mrf.mxu0
    %3920 = vdwg.mxu0
    %vm3921 = vcmask 74752
    %3922 = vst.msk [vmem:[#allocation3] sm:$0x3] %vm3921, %v3918
    // Predicated region
    $region50: #{birnn_forward.1} parent=1 // pred_check
      _
    $region51: #{birnn_forward.1} parent=1 // pred_check_branch
      %3924 = sbr.rel (0) target = $region53
    $region52: #{birnn_forward.1} parent=1 // pred_region
      %s3926 = ssub.s32 32, 32
      %3927 = vsyncadd [#allocation4], %s3926
      %s3929 = sshll.u32 [#allocation3], 4
      %s3930 = int_to_ptr.vmem [resolvable:$true] %s3929
      %3932 = dma.vmem_to_hbm [thread:$0]  %s3930, 32, %s12, [#allocation4]
    $region53: #{birnn_forward.1} parent=1 // pred_fallthru
      _
    // Predicated region
    $region54: #{birnn_forward.1} parent=1 // pred_check
      _
    $region55: #{birnn_forward.1} parent=1 // pred_check_branch
      %3934 = sbr.rel (0) target = $region57
    $region56: #{birnn_forward.1} parent=1 // pred_region
      %3935 = dma.done [#allocation4], 32
    $region57: #{birnn_forward.1} parent=1 // pred_fallthru
      _
    %3936 = vsyncpa [#allocation4], 1

</llo_original>
